<compile_context>
chip_gen: v6e
topology: v6e:2x2x1
jax: 0.10.0
libtpu: 0.0.40
codegen_flags: <defaults>
</compile_context>

<pallas_src>
import functools
import math

import jax
import jax.numpy as jnp
from jax.experimental import pallas as pl
from jax.experimental.pallas import tpu as pltpu


def _residual_group_kernel(x_ref, wdt_ref, bdt_ref, wds_ref, bds_ref,
                           wrs_ref, brs_ref, out_ref, pad_ref, stage_ref, *,
                           num_layers, dilation_cycle, maxd_pad):
    L = x_ref.shape[1]
    C = x_ref.shape[2]
    S = out_ref.shape[2]

    x = x_ref[0].astype(jnp.float32)                 # residual signal, f32 (L, C)

    # Zero only the two halo margins of the padded staging buffer (once);
    # the middle [maxd_pad, maxd_pad+L) is overwritten every layer.
    margin = jnp.zeros((maxd_pad, C), pad_ref.dtype)
    pad_ref[0:maxd_pad, :] = margin
    pad_ref[maxd_pad + L:maxd_pad + L + maxd_pad, :] = margin

    out_ref[0] = jnp.zeros((L, S), jnp.float32)      # skip accumulator (VMEM-resident)

    inv_sqrt2 = jnp.float32(math.sqrt(0.5))

    # NOTE: static unroll is fine for small num_layers (demo N=4). For realistic
    # N (~30), replace with lax.fori_loop + per-layer dilation from an SMEM table
    # and dynamic pl.ds starts to bound code size / vreg live ranges.
    for n in range(num_layers):
        d = 2 ** (n % dilation_cycle)

        xb = x.astype(jnp.bfloat16)                  # bf16 matmul operand
        pad_ref[maxd_pad:maxd_pad + L, :] = xb       # re-stage current residual

        # Fused 3-tap staging: [x[l-d] | x[l] | x[l+d]] -> (L, 3C)
        stage_ref[:, C:2 * C] = xb
        stage_ref[:, 0:C] = pad_ref[maxd_pad - d:maxd_pad - d + L, :]
        stage_ref[:, 2 * C:3 * C] = pad_ref[maxd_pad + d:maxd_pad + d + L, :]
        xcat = stage_ref[...]                        # (L, 3C) bf16

        # Dilated conv (k=3) as one K=3C matmul per gate half (no lane slicing of h).
        h_t = jnp.dot(xcat, wdt_ref[n], preferred_element_type=jnp.float32) + bdt_ref[n]
        h_s = jnp.dot(xcat, wds_ref[n], preferred_element_type=jnp.float32) + bds_ref[n]
        gate = jnp.tanh(h_t) * jax.nn.sigmoid(h_s)   # f32 (L, C)

        # Fused res/skip 1x1 convs: one (C, C+S) matmul, split the result columns.
        rs = jnp.dot(gate.astype(jnp.bfloat16), wrs_ref[n],
                     preferred_element_type=jnp.float32) + brs_ref[n]   # (L, C+S)

        out_ref[0] = out_ref[0] + rs[:, C:C + S]     # skip accumulate
        x = (x + rs[:, 0:C]) * inv_sqrt2             # residual update

    out_ref[0] = out_ref[0] * jnp.float32(math.sqrt(1.0 / num_layers))


def residual_group_pallas(x_ncl, stacked, num_layers, dilation_cycle):
    """x_ncl: (B, C, L) like PyTorch. Returns skip of shape (B, S, L)."""
    wdt, bdt, wds, bds, wrs, brs = stacked
    B, C, L = x_ncl.shape
    S = wrs.shape[-1] - C
    N = num_layers
    maxd = 2 ** (dilation_cycle - 1)
    maxd_pad = max(8, ((maxd + 7) // 8) * 8)         # sublane-aligned halo

    x_blc = jnp.transpose(x_ncl, (0, 2, 1))          # (B, L, C)

    kernel = functools.partial(_residual_group_kernel,
                               num_layers=num_layers,
                               dilation_cycle=dilation_cycle,
                               maxd_pad=maxd_pad)

    out = pl.pallas_call(
        kernel,
        out_shape=jax.ShapeDtypeStruct((B, L, S), jnp.float32),
        grid_spec=pltpu.PrefetchScalarGridSpec(
            num_scalar_prefetch=0,
            grid=(B,),
            in_specs=[
                pl.BlockSpec((1, L, C), lambda b: (b, 0, 0)),
                pl.BlockSpec((N, 3 * C, C), lambda b: (0, 0, 0)),      # wdil tanh half (bf16)
                pl.BlockSpec((N, 1, C), lambda b: (0, 0, 0)),          # bdil tanh half
                pl.BlockSpec((N, 3 * C, C), lambda b: (0, 0, 0)),      # wdil sigmoid half (bf16)
                pl.BlockSpec((N, 1, C), lambda b: (0, 0, 0)),          # bdil sigmoid half
                pl.BlockSpec((N, C, C + S), lambda b: (0, 0, 0)),      # fused [W_res|W_skip] (bf16)
                pl.BlockSpec((N, 1, C + S), lambda b: (0, 0, 0)),      # fused [b_res|b_skip]
            ],
            out_specs=pl.BlockSpec((1, L, S), lambda b: (b, 0, 0)),
            scratch_shapes=[
                pltpu.VMEM((L + 2 * maxd_pad, C), jnp.bfloat16),       # padded residual
                pltpu.VMEM((L, 3 * C), jnp.bfloat16),                  # [xm|x|xp] stage
            ],
        ),
        compiler_params=pltpu.CompilerParams(dimension_semantics=("parallel",)),
    )(x_blc, wdt, bdt, wds, bds, wrs, brs)

    return jnp.transpose(out, (0, 2, 1))             # (B, S, L)


# ------------------------- pure-JAX reference ------------------------------
def _conv1d_ref(x, w, b, dilation):
    """x: (B, Cin, L), w: (Cout, Cin, K), b: (Cout,). 'same' dilated conv."""
    pad = dilation * (w.shape[-1] - 1) // 2
    y = jax.lax.conv_general_dilated(
        x, w, window_strides=(1,), padding=[(pad, pad)],
        rhs_dilation=(dilation,), dimension_numbers=("NCH", "OIH", "NCH"))
    return y + b[None, :, None]


def residual_group_ref(x_ncl, layer_params, num_layers, dilation_cycle):
    h = x_ncl
    skip = 0.0
    C = x_ncl.shape[1]
    for n in range(num_layers):
        d = 2 ** (n % dilation_cycle)
        p = layer_params[n]
        hd = _conv1d_ref(h, p["wdil"], p["bdil"], d)
        gate = jnp.tanh(hd[:, :C]) * jax.nn.sigmoid(hd[:, C:])
        res = _conv1d_ref(gate, p["wres"], p["bres"], 1)
        sk = _conv1d_ref(gate, p["wskip"], p["bskip"], 1)
        h = (h + res) * math.sqrt(0.5)
        skip = skip + sk
    return skip * math.sqrt(1.0 / num_layers)


# ------------------------- parameter construction --------------------------
def make_params(key, res_ch, skip_ch, num_layers):
    """Kaiming-normal weights (weight_norm at init is the identity)."""
    layers = []
    for _ in range(num_layers):
        key, k1, k2, k3, k4, k5, k6 = jax.random.split(key, 7)
        fan_dil = res_ch * 3
        wdil = jax.random.normal(k1, (2 * res_ch, res_ch, 3), jnp.float32) * math.sqrt(2.0 / fan_dil)
        bdil = jax.random.uniform(k2, (2 * res_ch,), jnp.float32,
                                  -1.0 / math.sqrt(fan_dil), 1.0 / math.sqrt(fan_dil))
        wres = jax.random.normal(k3, (res_ch, res_ch, 1), jnp.float32) * math.sqrt(2.0 / res_ch)
        bres = jax.random.uniform(k4, (res_ch,), jnp.float32,
                                  -1.0 / math.sqrt(res_ch), 1.0 / math.sqrt(res_ch))
        wskip = jax.random.normal(k5, (skip_ch, res_ch, 1), jnp.float32) * math.sqrt(2.0 / res_ch)
        bskip = jax.random.uniform(k6, (skip_ch,), jnp.float32,
                                   -1.0 / math.sqrt(res_ch), 1.0 / math.sqrt(res_ch))
        layers.append(dict(wdil=wdil, bdil=bdil, wres=wres, bres=bres,
                           wskip=wskip, bskip=bskip))

    # Kernel-layout (fused) weights:
    #  - dilated conv: (Cout, Cin, 3) -> (3*Cin, 2*Cout) with row index (tap*C + cin),
    #    then split columns into the tanh half and the sigmoid half.
    #  - res/skip 1x1: concatenated into one (C, C+S) matmul.
    C = res_ch
    wdt_l, bdt_l, wds_l, bds_l, wrs_l, brs_l = [], [], [], [], [], []
    for p in layers:
        wfull = p["wdil"].transpose(2, 1, 0).reshape(3 * C, 2 * C)       # (3C, 2C)
        wdt_l.append(wfull[:, :C])
        wds_l.append(wfull[:, C:])
        bdt_l.append(p["bdil"][None, :C])
        bds_l.append(p["bdil"][None, C:])
        wrs_l.append(jnp.concatenate([p["wres"][:, :, 0].T,
                                      p["wskip"][:, :, 0].T], axis=-1))  # (C, C+S)
        brs_l.append(jnp.concatenate([p["bres"], p["bskip"]])[None, :])  # (1, C+S)

    stacked = (jnp.stack(wdt_l).astype(jnp.bfloat16),   # (N, 3C, C)
               jnp.stack(bdt_l),                        # (N, 1, C)  f32
               jnp.stack(wds_l).astype(jnp.bfloat16),   # (N, 3C, C)
               jnp.stack(bds_l),                        # (N, 1, C)  f32
               jnp.stack(wrs_l).astype(jnp.bfloat16),   # (N, C, C+S)
               jnp.stack(brs_l))                        # (N, 1, C+S) f32
    return layers, stacked


if __name__ == "__main__":
    B, C, S, L = 2, 8, 8, 64           # batch, res_channels, skip_channels, length
    NUM_LAYERS, DIL_CYCLE = 4, 2

    key = jax.random.PRNGKey(0)
    key, kx = jax.random.split(key)
    x = jax.random.normal(kx, (B, C, L), jnp.float32)   # PyTorch NCL input

    layer_params, stacked = make_params(key, C, S, NUM_LAYERS)

    out = residual_group_pallas(x, stacked, NUM_LAYERS, DIL_CYCLE)
    out = jax.block_until_ready(out)

    ref = residual_group_ref(x, layer_params, NUM_LAYERS, DIL_CYCLE)
    ref = jax.block_until_ready(ref)

    assert out.shape == (B, S, L)
    # bf16 matmul operands (f32 accumulation) -> relaxed tolerance vs f32 reference.
    assert jnp.allclose(out, ref, atol=3e-2, rtol=3e-2), \
        f"max abs err {jnp.max(jnp.abs(out - ref))}"

    print("KERNEL_OK")
</pallas_src>

<mosaic_0001>
module attributes {stable_mosaic.version = 11 : i64} {
  func.func @_residual_group_kernel(%arg0: i32, %arg1: memref<1x64x8xf32, #tpu.memory_space<vmem>>, %arg2: memref<4x24x8xbf16, #tpu.memory_space<vmem>>, %arg3: memref<4x1x8xf32, #tpu.memory_space<vmem>>, %arg4: memref<4x24x8xbf16, #tpu.memory_space<vmem>>, %arg5: memref<4x1x8xf32, #tpu.memory_space<vmem>>, %arg6: memref<4x8x16xbf16, #tpu.memory_space<vmem>>, %arg7: memref<4x1x16xf32, #tpu.memory_space<vmem>>, %arg8: memref<1x64x8xf32, #tpu.memory_space<vmem>>, %arg9: memref<80x8xbf16, #tpu.memory_space<vmem>>, %arg10: memref<64x24xbf16, #tpu.memory_space<vmem>>) attributes {dimension_semantics = [#tpu.dimension_semantics<parallel>], iteration_bounds = array<i64: 2>, scalar_prefetch = 0 : i64, scratch_operands = 2 : i64, tpu.core_type = #tpu.core_type<tc>, window_params = [{transform_indices = @transform_0, window_bounds = array<i64: 1, 64, 8>}, {pipeline_mode = #tpu.pipeline_mode<synchronous>, transform_indices = @transform_1, window_bounds = array<i64: 4, 24, 8>}, {pipeline_mode = #tpu.pipeline_mode<synchronous>, transform_indices = @transform_2, window_bounds = array<i64: 4, 1, 8>}, {pipeline_mode = #tpu.pipeline_mode<synchronous>, transform_indices = @transform_3, window_bounds = array<i64: 4, 24, 8>}, {pipeline_mode = #tpu.pipeline_mode<synchronous>, transform_indices = @transform_4, window_bounds = array<i64: 4, 1, 8>}, {pipeline_mode = #tpu.pipeline_mode<synchronous>, transform_indices = @transform_5, window_bounds = array<i64: 4, 8, 16>}, {pipeline_mode = #tpu.pipeline_mode<synchronous>, transform_indices = @transform_6, window_bounds = array<i64: 4, 1, 16>}, {transform_indices = @transform_7, window_bounds = array<i64: 1, 64, 8>}]} {
    %c0 = arith.constant 0 : index
    %c0_0 = arith.constant 0 : index
    %c0_1 = arith.constant 0 : index
    %0 = vector.load %arg1[%c0, %c0_0, %c0_1] : memref<1x64x8xf32, #tpu.memory_space<vmem>>, vector<1x64x8xf32>
    %1 = vector.shape_cast %0 : vector<1x64x8xf32> to vector<64x8xf32>
    %cst = arith.constant 0.000000e+00 : bf16
    %2 = vector.broadcast %cst : bf16 to vector<8x8xbf16>
    %c0_2 = arith.constant 0 : index
    %c0_3 = arith.constant 0 : index
    %3 = vector.load %arg9[%c0_2, %c0_3] : memref<80x8xbf16, #tpu.memory_space<vmem>>, vector<8x8xbf16>
    tpu.vector_store %arg9[%c0_2, %c0_3], %2 {strides = array<i32>} : memref<80x8xbf16, #tpu.memory_space<vmem>>, vector<8x8xbf16>,
    %c72 = arith.constant 72 : index
    %c0_4 = arith.constant 0 : index
    %4 = vector.load %arg9[%c72, %c0_4] : memref<80x8xbf16, #tpu.memory_space<vmem>>, vector<8x8xbf16>
    tpu.vector_store %arg9[%c72, %c0_4], %2 {strides = array<i32>} : memref<80x8xbf16, #tpu.memory_space<vmem>>, vector<8x8xbf16>,
    %cst_5 = arith.constant 0.000000e+00 : f32
    %5 = vector.broadcast %cst_5 : f32 to vector<64x8xf32>
    %c0_6 = arith.constant 0 : index
    %c0_7 = arith.constant 0 : index
    %c0_8 = arith.constant 0 : index
    %6 = vector.load %arg8[%c0_6, %c0_7, %c0_8] : memref<1x64x8xf32, #tpu.memory_space<vmem>>, vector<1x64x8xf32>
    %7 = vector.shape_cast %6 : vector<1x64x8xf32> to vector<64x8xf32>
    %8 = vector.shape_cast %5 : vector<64x8xf32> to vector<1x64x8xf32>
    tpu.vector_store %arg8[%c0_6, %c0_7, %c0_8], %8 {strides = array<i32>} : memref<1x64x8xf32, #tpu.memory_space<vmem>>, vector<1x64x8xf32>,
    %9 = arith.truncf %1 : vector<64x8xf32> to vector<64x8xbf16>
    %c8 = arith.constant 8 : index
    %c0_9 = arith.constant 0 : index
    %10 = vector.load %arg9[%c8, %c0_9] : memref<80x8xbf16, #tpu.memory_space<vmem>>, vector<64x8xbf16>
    tpu.vector_store %arg9[%c8, %c0_9], %9 {strides = array<i32>} : memref<80x8xbf16, #tpu.memory_space<vmem>>, vector<64x8xbf16>,
    %c0_10 = arith.constant 0 : index
    %c8_11 = arith.constant 8 : index
    %11 = vector.load %arg10[%c0_10, %c8_11] : memref<64x24xbf16, #tpu.memory_space<vmem>>, vector<64x8xbf16>
    tpu.vector_store %arg10[%c0_10, %c8_11], %9 {strides = array<i32>} : memref<64x24xbf16, #tpu.memory_space<vmem>>, vector<64x8xbf16>,
    %c7 = arith.constant 7 : index
    %c0_12 = arith.constant 0 : index
    %12 = vector.load %arg9[%c7, %c0_12] : memref<80x8xbf16, #tpu.memory_space<vmem>>, vector<64x8xbf16>
    %c0_13 = arith.constant 0 : index
    %c0_14 = arith.constant 0 : index
    %13 = vector.load %arg10[%c0_13, %c0_14] : memref<64x24xbf16, #tpu.memory_space<vmem>>, vector<64x8xbf16>
    tpu.vector_store %arg10[%c0_13, %c0_14], %12 {strides = array<i32>} : memref<64x24xbf16, #tpu.memory_space<vmem>>, vector<64x8xbf16>,
    %c9 = arith.constant 9 : index
    %c0_15 = arith.constant 0 : index
    %14 = vector.load %arg9[%c9, %c0_15] : memref<80x8xbf16, #tpu.memory_space<vmem>>, vector<64x8xbf16>
    %c0_16 = arith.constant 0 : index
    %c16 = arith.constant 16 : index
    %15 = vector.load %arg10[%c0_16, %c16] : memref<64x24xbf16, #tpu.memory_space<vmem>>, vector<64x8xbf16>
    tpu.vector_store %arg10[%c0_16, %c16], %14 {strides = array<i32>} : memref<64x24xbf16, #tpu.memory_space<vmem>>, vector<64x8xbf16>,
    %c0_17 = arith.constant 0 : index
    %c0_18 = arith.constant 0 : index
    %16 = vector.load %arg10[%c0_17, %c0_18] : memref<64x24xbf16, #tpu.memory_space<vmem>>, vector<64x24xbf16>
    %c0_19 = arith.constant 0 : index
    %c0_20 = arith.constant 0 : index
    %c0_21 = arith.constant 0 : index
    %17 = vector.load %arg2[%c0_19, %c0_20, %c0_21] : memref<4x24x8xbf16, #tpu.memory_space<vmem>>, vector<1x24x8xbf16>
    %18 = vector.shape_cast %17 : vector<1x24x8xbf16> to vector<24x8xbf16>
    %cst_22 = arith.constant dense<0.000000e+00> : vector<64x8xf32>
    %19 = tpu.matmul %16, %18, %cst_22 {dimension_numbers = #tpu.dot_dimension_numbers<[1], [0], [0], [1], [0, 0, 1, 1], [], []>} : vector<64x24xbf16>, vector<24x8xbf16>, vector<64x8xf32> -> vector<64x8xf32>
    %c0_23 = arith.constant 0 : index
    %c0_24 = arith.constant 0 : index
    %c0_25 = arith.constant 0 : index
    %20 = vector.load %arg3[%c0_23, %c0_24, %c0_25] : memref<4x1x8xf32, #tpu.memory_space<vmem>>, vector<1x1x8xf32>
    %21 = vector.shape_cast %20 : vector<1x1x8xf32> to vector<1x8xf32>
    %22 = vector.broadcast %21 : vector<1x8xf32> to vector<64x8xf32>
    %23 = arith.addf %19, %22 : vector<64x8xf32>
    %c0_26 = arith.constant 0 : index
    %c0_27 = arith.constant 0 : index
    %c0_28 = arith.constant 0 : index
    %24 = vector.load %arg4[%c0_26, %c0_27, %c0_28] : memref<4x24x8xbf16, #tpu.memory_space<vmem>>, vector<1x24x8xbf16>
    %25 = vector.shape_cast %24 : vector<1x24x8xbf16> to vector<24x8xbf16>
    %cst_29 = arith.constant dense<0.000000e+00> : vector<64x8xf32>
    %26 = tpu.matmul %16, %25, %cst_29 {dimension_numbers = #tpu.dot_dimension_numbers<[1], [0], [0], [1], [0, 0, 1, 1], [], []>} : vector<64x24xbf16>, vector<24x8xbf16>, vector<64x8xf32> -> vector<64x8xf32>
    %c0_30 = arith.constant 0 : index
    %c0_31 = arith.constant 0 : index
    %c0_32 = arith.constant 0 : index
    %27 = vector.load %arg5[%c0_30, %c0_31, %c0_32] : memref<4x1x8xf32, #tpu.memory_space<vmem>>, vector<1x1x8xf32>
    %28 = vector.shape_cast %27 : vector<1x1x8xf32> to vector<1x8xf32>
    %29 = vector.broadcast %28 : vector<1x8xf32> to vector<64x8xf32>
    %30 = arith.addf %26, %29 : vector<64x8xf32>
    %31 = math.tanh %23 : vector<64x8xf32>
    %32 = arith.negf %30 : vector<64x8xf32>
    %33 = math.exp %32 : vector<64x8xf32>
    %cst_33 = arith.constant 1.000000e+00 : f32
    %34 = vector.broadcast %cst_33 : f32 to vector<64x8xf32>
    %35 = arith.addf %34, %33 : vector<64x8xf32>
    %36 = arith.divf %34, %35 : vector<64x8xf32>
    %37 = arith.mulf %31, %36 : vector<64x8xf32>
    %38 = arith.truncf %37 : vector<64x8xf32> to vector<64x8xbf16>
    %c0_34 = arith.constant 0 : index
    %c0_35 = arith.constant 0 : index
    %c0_36 = arith.constant 0 : index
    %39 = vector.load %arg6[%c0_34, %c0_35, %c0_36] : memref<4x8x16xbf16, #tpu.memory_space<vmem>>, vector<1x8x16xbf16>
    %40 = vector.shape_cast %39 : vector<1x8x16xbf16> to vector<8x16xbf16>
    %cst_37 = arith.constant dense<0.000000e+00> : vector<64x16xf32>
    %41 = tpu.matmul %38, %40, %cst_37 {dimension_numbers = #tpu.dot_dimension_numbers<[1], [0], [0], [1], [0, 0, 1, 1], [], []>} : vector<64x8xbf16>, vector<8x16xbf16>, vector<64x16xf32> -> vector<64x16xf32>
    %c0_38 = arith.constant 0 : index
    %c0_39 = arith.constant 0 : index
    %c0_40 = arith.constant 0 : index
    %42 = vector.load %arg7[%c0_38, %c0_39, %c0_40] : memref<4x1x16xf32, #tpu.memory_space<vmem>>, vector<1x1x16xf32>
    %43 = vector.shape_cast %42 : vector<1x1x16xf32> to vector<1x16xf32>
    %44 = vector.broadcast %43 : vector<1x16xf32> to vector<64x16xf32>
    %45 = arith.addf %41, %44 : vector<64x16xf32>
    %c0_41 = arith.constant 0 : index
    %c0_42 = arith.constant 0 : index
    %c0_43 = arith.constant 0 : index
    %46 = vector.load %arg8[%c0_41, %c0_42, %c0_43] : memref<1x64x8xf32, #tpu.memory_space<vmem>>, vector<1x64x8xf32>
    %47 = vector.shape_cast %46 : vector<1x64x8xf32> to vector<64x8xf32>
    %48 = vector.extract_strided_slice %45 {offsets = [0, 8], sizes = [64, 8], strides = [1, 1]} : vector<64x16xf32> to vector<64x8xf32>
    %49 = arith.addf %47, %48 : vector<64x8xf32>
    %c0_44 = arith.constant 0 : index
    %c0_45 = arith.constant 0 : index
    %c0_46 = arith.constant 0 : index
    %50 = vector.load %arg8[%c0_44, %c0_45, %c0_46] : memref<1x64x8xf32, #tpu.memory_space<vmem>>, vector<1x64x8xf32>
    %51 = vector.shape_cast %50 : vector<1x64x8xf32> to vector<64x8xf32>
    %52 = vector.shape_cast %49 : vector<64x8xf32> to vector<1x64x8xf32>
    tpu.vector_store %arg8[%c0_44, %c0_45, %c0_46], %52 {strides = array<i32>} : memref<1x64x8xf32, #tpu.memory_space<vmem>>, vector<1x64x8xf32>,
    %53 = vector.extract_strided_slice %45 {offsets = [0, 0], sizes = [64, 8], strides = [1, 1]} : vector<64x16xf32> to vector<64x8xf32>
    %54 = arith.addf %1, %53 : vector<64x8xf32>
    %cst_47 = arith.constant 0.707106769 : f32
    %55 = vector.broadcast %cst_47 : f32 to vector<64x8xf32>
    %56 = arith.mulf %54, %55 : vector<64x8xf32>
    %57 = arith.truncf %56 : vector<64x8xf32> to vector<64x8xbf16>
    %c8_48 = arith.constant 8 : index
    %c0_49 = arith.constant 0 : index
    %58 = vector.load %arg9[%c8_48, %c0_49] : memref<80x8xbf16, #tpu.memory_space<vmem>>, vector<64x8xbf16>
    tpu.vector_store %arg9[%c8_48, %c0_49], %57 {strides = array<i32>} : memref<80x8xbf16, #tpu.memory_space<vmem>>, vector<64x8xbf16>,
    %c0_50 = arith.constant 0 : index
    %c8_51 = arith.constant 8 : index
    %59 = vector.load %arg10[%c0_50, %c8_51] : memref<64x24xbf16, #tpu.memory_space<vmem>>, vector<64x8xbf16>
    tpu.vector_store %arg10[%c0_50, %c8_51], %57 {strides = array<i32>} : memref<64x24xbf16, #tpu.memory_space<vmem>>, vector<64x8xbf16>,
    %c6 = arith.constant 6 : index
    %c0_52 = arith.constant 0 : index
    %60 = vector.load %arg9[%c6, %c0_52] : memref<80x8xbf16, #tpu.memory_space<vmem>>, vector<64x8xbf16>
    %c0_53 = arith.constant 0 : index
    %c0_54 = arith.constant 0 : index
    %61 = vector.load %arg10[%c0_53, %c0_54] : memref<64x24xbf16, #tpu.memory_space<vmem>>, vector<64x8xbf16>
    tpu.vector_store %arg10[%c0_53, %c0_54], %60 {strides = array<i32>} : memref<64x24xbf16, #tpu.memory_space<vmem>>, vector<64x8xbf16>,
    %c10 = arith.constant 10 : index
    %c0_55 = arith.constant 0 : index
    %62 = vector.load %arg9[%c10, %c0_55] : memref<80x8xbf16, #tpu.memory_space<vmem>>, vector<64x8xbf16>
    %c0_56 = arith.constant 0 : index
    %c16_57 = arith.constant 16 : index
    %63 = vector.load %arg10[%c0_56, %c16_57] : memref<64x24xbf16, #tpu.memory_space<vmem>>, vector<64x8xbf16>
    tpu.vector_store %arg10[%c0_56, %c16_57], %62 {strides = array<i32>} : memref<64x24xbf16, #tpu.memory_space<vmem>>, vector<64x8xbf16>,
    %c0_58 = arith.constant 0 : index
    %c0_59 = arith.constant 0 : index
    %64 = vector.load %arg10[%c0_58, %c0_59] : memref<64x24xbf16, #tpu.memory_space<vmem>>, vector<64x24xbf16>
    %c1 = arith.constant 1 : index
    %c0_60 = arith.constant 0 : index
    %c0_61 = arith.constant 0 : index
    %65 = vector.load %arg2[%c1, %c0_60, %c0_61] : memref<4x24x8xbf16, #tpu.memory_space<vmem>>, vector<1x24x8xbf16>
    %66 = vector.shape_cast %65 : vector<1x24x8xbf16> to vector<24x8xbf16>
    %cst_62 = arith.constant dense<0.000000e+00> : vector<64x8xf32>
    %67 = tpu.matmul %64, %66, %cst_62 {dimension_numbers = #tpu.dot_dimension_numbers<[1], [0], [0], [1], [0, 0, 1, 1], [], []>} : vector<64x24xbf16>, vector<24x8xbf16>, vector<64x8xf32> -> vector<64x8xf32>
    %c1_63 = arith.constant 1 : index
    %c0_64 = arith.constant 0 : index
    %c0_65 = arith.constant 0 : index
    %68 = vector.load %arg3[%c1_63, %c0_64, %c0_65] : memref<4x1x8xf32, #tpu.memory_space<vmem>>, vector<1x1x8xf32>
    %69 = vector.shape_cast %68 : vector<1x1x8xf32> to vector<1x8xf32>
    %70 = vector.broadcast %69 : vector<1x8xf32> to vector<64x8xf32>
    %71 = arith.addf %67, %70 : vector<64x8xf32>
    %c1_66 = arith.constant 1 : index
    %c0_67 = arith.constant 0 : index
    %c0_68 = arith.constant 0 : index
    %72 = vector.load %arg4[%c1_66, %c0_67, %c0_68] : memref<4x24x8xbf16, #tpu.memory_space<vmem>>, vector<1x24x8xbf16>
    %73 = vector.shape_cast %72 : vector<1x24x8xbf16> to vector<24x8xbf16>
    %cst_69 = arith.constant dense<0.000000e+00> : vector<64x8xf32>
    %74 = tpu.matmul %64, %73, %cst_69 {dimension_numbers = #tpu.dot_dimension_numbers<[1], [0], [0], [1], [0, 0, 1, 1], [], []>} : vector<64x24xbf16>, vector<24x8xbf16>, vector<64x8xf32> -> vector<64x8xf32>
    %c1_70 = arith.constant 1 : index
    %c0_71 = arith.constant 0 : index
    %c0_72 = arith.constant 0 : index
    %75 = vector.load %arg5[%c1_70, %c0_71, %c0_72] : memref<4x1x8xf32, #tpu.memory_space<vmem>>, vector<1x1x8xf32>
    %76 = vector.shape_cast %75 : vector<1x1x8xf32> to vector<1x8xf32>
    %77 = vector.broadcast %76 : vector<1x8xf32> to vector<64x8xf32>
    %78 = arith.addf %74, %77 : vector<64x8xf32>
    %79 = math.tanh %71 : vector<64x8xf32>
    %80 = arith.negf %78 : vector<64x8xf32>
    %81 = math.exp %80 : vector<64x8xf32>
    %cst_73 = arith.constant 1.000000e+00 : f32
    %82 = vector.broadcast %cst_73 : f32 to vector<64x8xf32>
    %83 = arith.addf %82, %81 : vector<64x8xf32>
    %84 = arith.divf %82, %83 : vector<64x8xf32>
    %85 = arith.mulf %79, %84 : vector<64x8xf32>
    %86 = arith.truncf %85 : vector<64x8xf32> to vector<64x8xbf16>
    %c1_74 = arith.constant 1 : index
    %c0_75 = arith.constant 0 : index
    %c0_76 = arith.constant 0 : index
    %87 = vector.load %arg6[%c1_74, %c0_75, %c0_76] : memref<4x8x16xbf16, #tpu.memory_space<vmem>>, vector<1x8x16xbf16>
    %88 = vector.shape_cast %87 : vector<1x8x16xbf16> to vector<8x16xbf16>
    %cst_77 = arith.constant dense<0.000000e+00> : vector<64x16xf32>
    %89 = tpu.matmul %86, %88, %cst_77 {dimension_numbers = #tpu.dot_dimension_numbers<[1], [0], [0], [1], [0, 0, 1, 1], [], []>} : vector<64x8xbf16>, vector<8x16xbf16>, vector<64x16xf32> -> vector<64x16xf32>
    %c1_78 = arith.constant 1 : index
    %c0_79 = arith.constant 0 : index
    %c0_80 = arith.constant 0 : index
    %90 = vector.load %arg7[%c1_78, %c0_79, %c0_80] : memref<4x1x16xf32, #tpu.memory_space<vmem>>, vector<1x1x16xf32>
    %91 = vector.shape_cast %90 : vector<1x1x16xf32> to vector<1x16xf32>
    %92 = vector.broadcast %91 : vector<1x16xf32> to vector<64x16xf32>
    %93 = arith.addf %89, %92 : vector<64x16xf32>
    %c0_81 = arith.constant 0 : index
    %c0_82 = arith.constant 0 : index
    %c0_83 = arith.constant 0 : index
    %94 = vector.load %arg8[%c0_81, %c0_82, %c0_83] : memref<1x64x8xf32, #tpu.memory_space<vmem>>, vector<1x64x8xf32>
    %95 = vector.shape_cast %94 : vector<1x64x8xf32> to vector<64x8xf32>
    %96 = vector.extract_strided_slice %93 {offsets = [0, 8], sizes = [64, 8], strides = [1, 1]} : vector<64x16xf32> to vector<64x8xf32>
    %97 = arith.addf %95, %96 : vector<64x8xf32>
    %c0_84 = arith.constant 0 : index
    %c0_85 = arith.constant 0 : index
    %c0_86 = arith.constant 0 : index
    %98 = vector.load %arg8[%c0_84, %c0_85, %c0_86] : memref<1x64x8xf32, #tpu.memory_space<vmem>>, vector<1x64x8xf32>
    %99 = vector.shape_cast %98 : vector<1x64x8xf32> to vector<64x8xf32>
    %100 = vector.shape_cast %97 : vector<64x8xf32> to vector<1x64x8xf32>
    tpu.vector_store %arg8[%c0_84, %c0_85, %c0_86], %100 {strides = array<i32>} : memref<1x64x8xf32, #tpu.memory_space<vmem>>, vector<1x64x8xf32>,
    %101 = vector.extract_strided_slice %93 {offsets = [0, 0], sizes = [64, 8], strides = [1, 1]} : vector<64x16xf32> to vector<64x8xf32>
    %102 = arith.addf %56, %101 : vector<64x8xf32>
    %cst_87 = arith.constant 0.707106769 : f32
    %103 = vector.broadcast %cst_87 : f32 to vector<64x8xf32>
    %104 = arith.mulf %102, %103 : vector<64x8xf32>
    %105 = arith.truncf %104 : vector<64x8xf32> to vector<64x8xbf16>
    %c8_88 = arith.constant 8 : index
    %c0_89 = arith.constant 0 : index
    %106 = vector.load %arg9[%c8_88, %c0_89] : memref<80x8xbf16, #tpu.memory_space<vmem>>, vector<64x8xbf16>
    tpu.vector_store %arg9[%c8_88, %c0_89], %105 {strides = array<i32>} : memref<80x8xbf16, #tpu.memory_space<vmem>>, vector<64x8xbf16>,
    %c0_90 = arith.constant 0 : index
    %c8_91 = arith.constant 8 : index
    %107 = vector.load %arg10[%c0_90, %c8_91] : memref<64x24xbf16, #tpu.memory_space<vmem>>, vector<64x8xbf16>
    tpu.vector_store %arg10[%c0_90, %c8_91], %105 {strides = array<i32>} : memref<64x24xbf16, #tpu.memory_space<vmem>>, vector<64x8xbf16>,
    %c7_92 = arith.constant 7 : index
    %c0_93 = arith.constant 0 : index
    %108 = vector.load %arg9[%c7_92, %c0_93] : memref<80x8xbf16, #tpu.memory_space<vmem>>, vector<64x8xbf16>
    %c0_94 = arith.constant 0 : index
    %c0_95 = arith.constant 0 : index
    %109 = vector.load %arg10[%c0_94, %c0_95] : memref<64x24xbf16, #tpu.memory_space<vmem>>, vector<64x8xbf16>
    tpu.vector_store %arg10[%c0_94, %c0_95], %108 {strides = array<i32>} : memref<64x24xbf16, #tpu.memory_space<vmem>>, vector<64x8xbf16>,
    %c9_96 = arith.constant 9 : index
    %c0_97 = arith.constant 0 : index
    %110 = vector.load %arg9[%c9_96, %c0_97] : memref<80x8xbf16, #tpu.memory_space<vmem>>, vector<64x8xbf16>
    %c0_98 = arith.constant 0 : index
    %c16_99 = arith.constant 16 : index
    %111 = vector.load %arg10[%c0_98, %c16_99] : memref<64x24xbf16, #tpu.memory_space<vmem>>, vector<64x8xbf16>
    tpu.vector_store %arg10[%c0_98, %c16_99], %110 {strides = array<i32>} : memref<64x24xbf16, #tpu.memory_space<vmem>>, vector<64x8xbf16>,
    %c0_100 = arith.constant 0 : index
    %c0_101 = arith.constant 0 : index
    %112 = vector.load %arg10[%c0_100, %c0_101] : memref<64x24xbf16, #tpu.memory_space<vmem>>, vector<64x24xbf16>
    %c2 = arith.constant 2 : index
    %c0_102 = arith.constant 0 : index
    %c0_103 = arith.constant 0 : index
    %113 = vector.load %arg2[%c2, %c0_102, %c0_103] : memref<4x24x8xbf16, #tpu.memory_space<vmem>>, vector<1x24x8xbf16>
    %114 = vector.shape_cast %113 : vector<1x24x8xbf16> to vector<24x8xbf16>
    %cst_104 = arith.constant dense<0.000000e+00> : vector<64x8xf32>
    %115 = tpu.matmul %112, %114, %cst_104 {dimension_numbers = #tpu.dot_dimension_numbers<[1], [0], [0], [1], [0, 0, 1, 1], [], []>} : vector<64x24xbf16>, vector<24x8xbf16>, vector<64x8xf32> -> vector<64x8xf32>
    %c2_105 = arith.constant 2 : index
    %c0_106 = arith.constant 0 : index
    %c0_107 = arith.constant 0 : index
    %116 = vector.load %arg3[%c2_105, %c0_106, %c0_107] : memref<4x1x8xf32, #tpu.memory_space<vmem>>, vector<1x1x8xf32>
    %117 = vector.shape_cast %116 : vector<1x1x8xf32> to vector<1x8xf32>
    %118 = vector.broadcast %117 : vector<1x8xf32> to vector<64x8xf32>
    %119 = arith.addf %115, %118 : vector<64x8xf32>
    %c2_108 = arith.constant 2 : index
    %c0_109 = arith.constant 0 : index
    %c0_110 = arith.constant 0 : index
    %120 = vector.load %arg4[%c2_108, %c0_109, %c0_110] : memref<4x24x8xbf16, #tpu.memory_space<vmem>>, vector<1x24x8xbf16>
    %121 = vector.shape_cast %120 : vector<1x24x8xbf16> to vector<24x8xbf16>
    %cst_111 = arith.constant dense<0.000000e+00> : vector<64x8xf32>
    %122 = tpu.matmul %112, %121, %cst_111 {dimension_numbers = #tpu.dot_dimension_numbers<[1], [0], [0], [1], [0, 0, 1, 1], [], []>} : vector<64x24xbf16>, vector<24x8xbf16>, vector<64x8xf32> -> vector<64x8xf32>
    %c2_112 = arith.constant 2 : index
    %c0_113 = arith.constant 0 : index
    %c0_114 = arith.constant 0 : index
    %123 = vector.load %arg5[%c2_112, %c0_113, %c0_114] : memref<4x1x8xf32, #tpu.memory_space<vmem>>, vector<1x1x8xf32>
    %124 = vector.shape_cast %123 : vector<1x1x8xf32> to vector<1x8xf32>
    %125 = vector.broadcast %124 : vector<1x8xf32> to vector<64x8xf32>
    %126 = arith.addf %122, %125 : vector<64x8xf32>
    %127 = math.tanh %119 : vector<64x8xf32>
    %128 = arith.negf %126 : vector<64x8xf32>
    %129 = math.exp %128 : vector<64x8xf32>
    %cst_115 = arith.constant 1.000000e+00 : f32
    %130 = vector.broadcast %cst_115 : f32 to vector<64x8xf32>
    %131 = arith.addf %130, %129 : vector<64x8xf32>
    %132 = arith.divf %130, %131 : vector<64x8xf32>
    %133 = arith.mulf %127, %132 : vector<64x8xf32>
    %134 = arith.truncf %133 : vector<64x8xf32> to vector<64x8xbf16>
    %c2_116 = arith.constant 2 : index
    %c0_117 = arith.constant 0 : index
    %c0_118 = arith.constant 0 : index
    %135 = vector.load %arg6[%c2_116, %c0_117, %c0_118] : memref<4x8x16xbf16, #tpu.memory_space<vmem>>, vector<1x8x16xbf16>
    %136 = vector.shape_cast %135 : vector<1x8x16xbf16> to vector<8x16xbf16>
    %cst_119 = arith.constant dense<0.000000e+00> : vector<64x16xf32>
    %137 = tpu.matmul %134, %136, %cst_119 {dimension_numbers = #tpu.dot_dimension_numbers<[1], [0], [0], [1], [0, 0, 1, 1], [], []>} : vector<64x8xbf16>, vector<8x16xbf16>, vector<64x16xf32> -> vector<64x16xf32>
    %c2_120 = arith.constant 2 : index
    %c0_121 = arith.constant 0 : index
    %c0_122 = arith.constant 0 : index
    %138 = vector.load %arg7[%c2_120, %c0_121, %c0_122] : memref<4x1x16xf32, #tpu.memory_space<vmem>>, vector<1x1x16xf32>
    %139 = vector.shape_cast %138 : vector<1x1x16xf32> to vector<1x16xf32>
    %140 = vector.broadcast %139 : vector<1x16xf32> to vector<64x16xf32>
    %141 = arith.addf %137, %140 : vector<64x16xf32>
    %c0_123 = arith.constant 0 : index
    %c0_124 = arith.constant 0 : index
    %c0_125 = arith.constant 0 : index
    %142 = vector.load %arg8[%c0_123, %c0_124, %c0_125] : memref<1x64x8xf32, #tpu.memory_space<vmem>>, vector<1x64x8xf32>
    %143 = vector.shape_cast %142 : vector<1x64x8xf32> to vector<64x8xf32>
    %144 = vector.extract_strided_slice %141 {offsets = [0, 8], sizes = [64, 8], strides = [1, 1]} : vector<64x16xf32> to vector<64x8xf32>
    %145 = arith.addf %143, %144 : vector<64x8xf32>
    %c0_126 = arith.constant 0 : index
    %c0_127 = arith.constant 0 : index
    %c0_128 = arith.constant 0 : index
    %146 = vector.load %arg8[%c0_126, %c0_127, %c0_128] : memref<1x64x8xf32, #tpu.memory_space<vmem>>, vector<1x64x8xf32>
    %147 = vector.shape_cast %146 : vector<1x64x8xf32> to vector<64x8xf32>
    %148 = vector.shape_cast %145 : vector<64x8xf32> to vector<1x64x8xf32>
    tpu.vector_store %arg8[%c0_126, %c0_127, %c0_128], %148 {strides = array<i32>} : memref<1x64x8xf32, #tpu.memory_space<vmem>>, vector<1x64x8xf32>,
    %149 = vector.extract_strided_slice %141 {offsets = [0, 0], sizes = [64, 8], strides = [1, 1]} : vector<64x16xf32> to vector<64x8xf32>
    %150 = arith.addf %104, %149 : vector<64x8xf32>
    %cst_129 = arith.constant 0.707106769 : f32
    %151 = vector.broadcast %cst_129 : f32 to vector<64x8xf32>
    %152 = arith.mulf %150, %151 : vector<64x8xf32>
    %153 = arith.truncf %152 : vector<64x8xf32> to vector<64x8xbf16>
    %c8_130 = arith.constant 8 : index
    %c0_131 = arith.constant 0 : index
    %154 = vector.load %arg9[%c8_130, %c0_131] : memref<80x8xbf16, #tpu.memory_space<vmem>>, vector<64x8xbf16>
    tpu.vector_store %arg9[%c8_130, %c0_131], %153 {strides = array<i32>} : memref<80x8xbf16, #tpu.memory_space<vmem>>, vector<64x8xbf16>,
    %c0_132 = arith.constant 0 : index
    %c8_133 = arith.constant 8 : index
    %155 = vector.load %arg10[%c0_132, %c8_133] : memref<64x24xbf16, #tpu.memory_space<vmem>>, vector<64x8xbf16>
    tpu.vector_store %arg10[%c0_132, %c8_133], %153 {strides = array<i32>} : memref<64x24xbf16, #tpu.memory_space<vmem>>, vector<64x8xbf16>,
    %c6_134 = arith.constant 6 : index
    %c0_135 = arith.constant 0 : index
    %156 = vector.load %arg9[%c6_134, %c0_135] : memref<80x8xbf16, #tpu.memory_space<vmem>>, vector<64x8xbf16>
    %c0_136 = arith.constant 0 : index
    %c0_137 = arith.constant 0 : index
    %157 = vector.load %arg10[%c0_136, %c0_137] : memref<64x24xbf16, #tpu.memory_space<vmem>>, vector<64x8xbf16>
    tpu.vector_store %arg10[%c0_136, %c0_137], %156 {strides = array<i32>} : memref<64x24xbf16, #tpu.memory_space<vmem>>, vector<64x8xbf16>,
    %c10_138 = arith.constant 10 : index
    %c0_139 = arith.constant 0 : index
    %158 = vector.load %arg9[%c10_138, %c0_139] : memref<80x8xbf16, #tpu.memory_space<vmem>>, vector<64x8xbf16>
    %c0_140 = arith.constant 0 : index
    %c16_141 = arith.constant 16 : index
    %159 = vector.load %arg10[%c0_140, %c16_141] : memref<64x24xbf16, #tpu.memory_space<vmem>>, vector<64x8xbf16>
    tpu.vector_store %arg10[%c0_140, %c16_141], %158 {strides = array<i32>} : memref<64x24xbf16, #tpu.memory_space<vmem>>, vector<64x8xbf16>,
    %c0_142 = arith.constant 0 : index
    %c0_143 = arith.constant 0 : index
    %160 = vector.load %arg10[%c0_142, %c0_143] : memref<64x24xbf16, #tpu.memory_space<vmem>>, vector<64x24xbf16>
    %c3 = arith.constant 3 : index
    %c0_144 = arith.constant 0 : index
    %c0_145 = arith.constant 0 : index
    %161 = vector.load %arg2[%c3, %c0_144, %c0_145] : memref<4x24x8xbf16, #tpu.memory_space<vmem>>, vector<1x24x8xbf16>
    %162 = vector.shape_cast %161 : vector<1x24x8xbf16> to vector<24x8xbf16>
    %cst_146 = arith.constant dense<0.000000e+00> : vector<64x8xf32>
    %163 = tpu.matmul %160, %162, %cst_146 {dimension_numbers = #tpu.dot_dimension_numbers<[1], [0], [0], [1], [0, 0, 1, 1], [], []>} : vector<64x24xbf16>, vector<24x8xbf16>, vector<64x8xf32> -> vector<64x8xf32>
    %c3_147 = arith.constant 3 : index
    %c0_148 = arith.constant 0 : index
    %c0_149 = arith.constant 0 : index
    %164 = vector.load %arg3[%c3_147, %c0_148, %c0_149] : memref<4x1x8xf32, #tpu.memory_space<vmem>>, vector<1x1x8xf32>
    %165 = vector.shape_cast %164 : vector<1x1x8xf32> to vector<1x8xf32>
    %166 = vector.broadcast %165 : vector<1x8xf32> to vector<64x8xf32>
    %167 = arith.addf %163, %166 : vector<64x8xf32>
    %c3_150 = arith.constant 3 : index
    %c0_151 = arith.constant 0 : index
    %c0_152 = arith.constant 0 : index
    %168 = vector.load %arg4[%c3_150, %c0_151, %c0_152] : memref<4x24x8xbf16, #tpu.memory_space<vmem>>, vector<1x24x8xbf16>
    %169 = vector.shape_cast %168 : vector<1x24x8xbf16> to vector<24x8xbf16>
    %cst_153 = arith.constant dense<0.000000e+00> : vector<64x8xf32>
    %170 = tpu.matmul %160, %169, %cst_153 {dimension_numbers = #tpu.dot_dimension_numbers<[1], [0], [0], [1], [0, 0, 1, 1], [], []>} : vector<64x24xbf16>, vector<24x8xbf16>, vector<64x8xf32> -> vector<64x8xf32>
    %c3_154 = arith.constant 3 : index
    %c0_155 = arith.constant 0 : index
    %c0_156 = arith.constant 0 : index
    %171 = vector.load %arg5[%c3_154, %c0_155, %c0_156] : memref<4x1x8xf32, #tpu.memory_space<vmem>>, vector<1x1x8xf32>
    %172 = vector.shape_cast %171 : vector<1x1x8xf32> to vector<1x8xf32>
    %173 = vector.broadcast %172 : vector<1x8xf32> to vector<64x8xf32>
    %174 = arith.addf %170, %173 : vector<64x8xf32>
    %175 = math.tanh %167 : vector<64x8xf32>
    %176 = arith.negf %174 : vector<64x8xf32>
    %177 = math.exp %176 : vector<64x8xf32>
    %cst_157 = arith.constant 1.000000e+00 : f32
    %178 = vector.broadcast %cst_157 : f32 to vector<64x8xf32>
    %179 = arith.addf %178, %177 : vector<64x8xf32>
    %180 = arith.divf %178, %179 : vector<64x8xf32>
    %181 = arith.mulf %175, %180 : vector<64x8xf32>
    %182 = arith.truncf %181 : vector<64x8xf32> to vector<64x8xbf16>
    %c3_158 = arith.constant 3 : index
    %c0_159 = arith.constant 0 : index
    %c0_160 = arith.constant 0 : index
    %183 = vector.load %arg6[%c3_158, %c0_159, %c0_160] : memref<4x8x16xbf16, #tpu.memory_space<vmem>>, vector<1x8x16xbf16>
    %184 = vector.shape_cast %183 : vector<1x8x16xbf16> to vector<8x16xbf16>
    %cst_161 = arith.constant dense<0.000000e+00> : vector<64x16xf32>
    %185 = tpu.matmul %182, %184, %cst_161 {dimension_numbers = #tpu.dot_dimension_numbers<[1], [0], [0], [1], [0, 0, 1, 1], [], []>} : vector<64x8xbf16>, vector<8x16xbf16>, vector<64x16xf32> -> vector<64x16xf32>
    %c3_162 = arith.constant 3 : index
    %c0_163 = arith.constant 0 : index
    %c0_164 = arith.constant 0 : index
    %186 = vector.load %arg7[%c3_162, %c0_163, %c0_164] : memref<4x1x16xf32, #tpu.memory_space<vmem>>, vector<1x1x16xf32>
    %187 = vector.shape_cast %186 : vector<1x1x16xf32> to vector<1x16xf32>
    %188 = vector.broadcast %187 : vector<1x16xf32> to vector<64x16xf32>
    %189 = arith.addf %185, %188 : vector<64x16xf32>
    %c0_165 = arith.constant 0 : index
    %c0_166 = arith.constant 0 : index
    %c0_167 = arith.constant 0 : index
    %190 = vector.load %arg8[%c0_165, %c0_166, %c0_167] : memref<1x64x8xf32, #tpu.memory_space<vmem>>, vector<1x64x8xf32>
    %191 = vector.shape_cast %190 : vector<1x64x8xf32> to vector<64x8xf32>
    %192 = vector.extract_strided_slice %189 {offsets = [0, 8], sizes = [64, 8], strides = [1, 1]} : vector<64x16xf32> to vector<64x8xf32>
    %193 = arith.addf %191, %192 : vector<64x8xf32>
    %c0_168 = arith.constant 0 : index
    %c0_169 = arith.constant 0 : index
    %c0_170 = arith.constant 0 : index
    %194 = vector.load %arg8[%c0_168, %c0_169, %c0_170] : memref<1x64x8xf32, #tpu.memory_space<vmem>>, vector<1x64x8xf32>
    %195 = vector.shape_cast %194 : vector<1x64x8xf32> to vector<64x8xf32>
    %196 = vector.shape_cast %193 : vector<64x8xf32> to vector<1x64x8xf32>
    tpu.vector_store %arg8[%c0_168, %c0_169, %c0_170], %196 {strides = array<i32>} : memref<1x64x8xf32, #tpu.memory_space<vmem>>, vector<1x64x8xf32>,
    %c0_171 = arith.constant 0 : index
    %c0_172 = arith.constant 0 : index
    %c0_173 = arith.constant 0 : index
    %197 = vector.load %arg8[%c0_171, %c0_172, %c0_173] : memref<1x64x8xf32, #tpu.memory_space<vmem>>, vector<1x64x8xf32>
    %198 = vector.shape_cast %197 : vector<1x64x8xf32> to vector<64x8xf32>
    %cst_174 = arith.constant 5.000000e-01 : f32
    %199 = vector.broadcast %cst_174 : f32 to vector<64x8xf32>
    %200 = arith.mulf %198, %199 : vector<64x8xf32>
    %c0_175 = arith.constant 0 : index
    %c0_176 = arith.constant 0 : index
    %c0_177 = arith.constant 0 : index
    %201 = vector.load %arg8[%c0_175, %c0_176, %c0_177] : memref<1x64x8xf32, #tpu.memory_space<vmem>>, vector<1x64x8xf32>
    %202 = vector.shape_cast %201 : vector<1x64x8xf32> to vector<64x8xf32>
    %203 = vector.shape_cast %200 : vector<64x8xf32> to vector<1x64x8xf32>
    tpu.vector_store %arg8[%c0_175, %c0_176, %c0_177], %203 {strides = array<i32>} : memref<1x64x8xf32, #tpu.memory_space<vmem>>, vector<1x64x8xf32>,
    return
  }
  func.func @transform_0(%arg0: i32) -> (i32, i32, i32) {
    %c0_i32 = arith.constant 0 : i32
    %c0_i32_0 = arith.constant 0 : i32
    %c0_i32_1 = arith.constant 0 : i32
    return %arg0, %c0_i32, %c0_i32_0 : i32, i32, i32
  }
  func.func @transform_1(%arg0: i32) -> (i32, i32, i32) {
    %c0_i32 = arith.constant 0 : i32
    %c0_i32_0 = arith.constant 0 : i32
    %c0_i32_1 = arith.constant 0 : i32
    %c0_i32_2 = arith.constant 0 : i32
    return %c0_i32, %c0_i32_0, %c0_i32_1 : i32, i32, i32
  }
  func.func @transform_2(%arg0: i32) -> (i32, i32, i32) {
    %c0_i32 = arith.constant 0 : i32
    %c0_i32_0 = arith.constant 0 : i32
    %c0_i32_1 = arith.constant 0 : i32
    %c0_i32_2 = arith.constant 0 : i32
    return %c0_i32, %c0_i32_0, %c0_i32_1 : i32, i32, i32
  }
  func.func @transform_3(%arg0: i32) -> (i32, i32, i32) {
    %c0_i32 = arith.constant 0 : i32
    %c0_i32_0 = arith.constant 0 : i32
    %c0_i32_1 = arith.constant 0 : i32
    %c0_i32_2 = arith.constant 0 : i32
    return %c0_i32, %c0_i32_0, %c0_i32_1 : i32, i32, i32
  }
  func.func @transform_4(%arg0: i32) -> (i32, i32, i32) {
    %c0_i32 = arith.constant 0 : i32
    %c0_i32_0 = arith.constant 0 : i32
    %c0_i32_1 = arith.constant 0 : i32
    %c0_i32_2 = arith.constant 0 : i32
    return %c0_i32, %c0_i32_0, %c0_i32_1 : i32, i32, i32
  }
  func.func @transform_5(%arg0: i32) -> (i32, i32, i32) {
    %c0_i32 = arith.constant 0 : i32
    %c0_i32_0 = arith.constant 0 : i32
    %c0_i32_1 = arith.constant 0 : i32
    %c0_i32_2 = arith.constant 0 : i32
    return %c0_i32, %c0_i32_0, %c0_i32_1 : i32, i32, i32
  }
  func.func @transform_6(%arg0: i32) -> (i32, i32, i32) {
    %c0_i32 = arith.constant 0 : i32
    %c0_i32_0 = arith.constant 0 : i32
    %c0_i32_1 = arith.constant 0 : i32
    %c0_i32_2 = arith.constant 0 : i32
    return %c0_i32, %c0_i32_0, %c0_i32_1 : i32, i32, i32
  }
  func.func @transform_7(%arg0: i32) -> (i32, i32, i32) {
    %c0_i32 = arith.constant 0 : i32
    %c0_i32_0 = arith.constant 0 : i32
    %c0_i32_1 = arith.constant 0 : i32
    return %arg0, %c0_i32, %c0_i32_0 : i32, i32, i32
  }
}

</mosaic_0001>

<llo_original>
// kernel: tpu_custom_call.1
$region0: #{tpu_custom_call.1}
  #allocation0 [shape = 'u32[]', space=smem, size = 0x4, offset = 0x4, fixed_abs, tag = 'smem constant byte address 0x4 - core index']
  #allocation1 [shape = 'u32[144,128]{1,0:T(1,128)}', space=vmem, size = 0x12000, scoped, tag = 'internal scratch']
  #allocation2 [shape = 'bf16[80,8]{1,0:T(8,128)(2,1)}', space=vmem, size = 0x5000, scoped, tag = 'scratch operand']
  #allocation3 [shape = 'bf16[64,24]{1,0:T(8,128)(2,1)}', space=vmem, size = 0x4000, scoped, tag = 'scratch operand']
  %s0 = inlined_call_operand.vmem [shape: f32[2,64,8], index: 0, kind: input, shape index: {}]
  %s1 = inlined_call_operand.vmem [shape: bf16[4,24,8], index: 1, kind: input, shape index: {}]
  %s2 = inlined_call_operand.vmem [shape: f32[4,1,8], index: 2, kind: input, shape index: {}]
  %s3 = inlined_call_operand.vmem [shape: bf16[4,24,8], index: 3, kind: input, shape index: {}]
  %s4 = inlined_call_operand.vmem [shape: f32[4,1,8], index: 4, kind: input, shape index: {}]
  %s5 = inlined_call_operand.vmem [shape: bf16[4,8,16], index: 5, kind: input, shape index: {}]
  %s6 = inlined_call_operand.vmem [shape: f32[4,1,16], index: 6, kind: input, shape index: {}]
  %s7 = inlined_call_operand.vmem [shape: f32[2,64,8], index: 7, kind: output, shape index: {}]
  %s8 = sld [smem:[#allocation0]]
  $region61: #{tpu_custom_call.1} parent=0
    _
  %s10 = ssub.s32 1, %s8
  %s11 = scalar_select 0, %s10, %s8
  loop: start=0, step=1, limit=4
  $region2: #{tpu_custom_call.1} parent=0 // loop_pre_header
    _
  $region3: #{tpu_custom_call.1} parent=0 // loop_header
    %s13 = sphi 0, %s17
    %p14 = scmp.ge.s32.totalorder %s13, 4
    %s23 = sphi 0, %s25
    %s26 = sphi 0, %s23
    %s27 = sphi 0, %s26
    %s43 = sphi 0, %s27
    %s47 = sphi 0, %s47
    %s49 = sphi 0, %s47
    %s50 = sphi 0, %s49
    %s64 = sphi 0, %s50
    %s68 = sphi 0, %s68
    %s70 = sphi 0, %s68
    %s71 = sphi 0, %s70
    %s85 = sphi 0, %s71
    %s89 = sphi 0, %s89
    %s91 = sphi 0, %s89
    %s92 = sphi 0, %s91
    %s106 = sphi 0, %s92
    %s110 = sphi 0, %s110
    %s112 = sphi 0, %s110
    %s113 = sphi 0, %s112
    %s127 = sphi 0, %s113
    %s131 = sphi 0, %s131
    %s133 = sphi 0, %s131
    %s134 = sphi 0, %s133
    %s148 = sphi 0, %s134
    %s152 = sphi 0, %s152
    %s154 = sphi 0, %s152
    %s155 = sphi 0, %s154
    %s169 = sphi 0, %s155
    %s175 = sphi 0, %s177
    %s178 = sphi 0, %s175
    %s179 = sphi 0, %s178
    %s195 = sphi 0, %s179
  $region4: #{tpu_custom_call.1} parent=0 // loop_header_branch
    %16 = sbr.rel (%p14) target = $region8
  $region5: #{tpu_custom_call.1} parent=0 // loop_body
    %s18 = ssub.s32 %s13, 1
    %s19 = ssub.s32 %s13, 2
    %s20 = sadd.s32 %s13, 1
    %s21 = ssub.s32 %s13, %s20
    %p22 = scmp.eq.s32.totalorder %s21, 0
    %s24 = sadd.s32 %s23, 1
    %s25 = scalar_select %p22, %s23, %s24
    %p28 = pneg %p22
    %p29 = scmp.eq.s32.totalorder %s13, 1
    %p30 = por %p28, %p29
    %p31 = scmp.ne.s32.totalorder %s23, %s26
    %p32 = scmp.eq.s32.totalorder %s13, 0
    %p33 = por %p31, %p32
    %p34 = scmp.ne.s32.totalorder %s23, %s26
    %p35 = scmp.eq.s32.totalorder %s18, 1
    %p36 = por %p34, %p35
    %p37 = scmp.ne.s32.totalorder %s26, %s27
    %p38 = scmp.eq.s32.totalorder %s18, 0
    %p39 = por %p37, %p38
    %p40 = scmp.ne.s32.totalorder %s26, %s27
    %p41 = scmp.eq.s32.totalorder %s19, 1
    %p42 = por %p40, %p41
    %p44 = scmp.ne.s32.totalorder %s27, %s43
    %p45 = scmp.eq.s32.totalorder %s19, 0
    %p46 = por %p44, %p45
    %s48 = sadd.s32 %s47, 1
    %p51 = scmp.eq.s32.totalorder %s13, 1
    %p52 = scmp.ne.s32.totalorder %s47, %s49
    %p53 = scmp.eq.s32.totalorder %s13, 0
    %p54 = por %p52, %p53
    %p55 = scmp.ne.s32.totalorder %s47, %s49
    %p56 = scmp.eq.s32.totalorder %s18, 1
    %p57 = por %p55, %p56
    %p58 = scmp.ne.s32.totalorder %s49, %s50
    %p59 = scmp.eq.s32.totalorder %s18, 0
    %p60 = por %p58, %p59
    %p61 = scmp.ne.s32.totalorder %s49, %s50
    %p62 = scmp.eq.s32.totalorder %s19, 1
    %p63 = por %p61, %p62
    %p65 = scmp.ne.s32.totalorder %s50, %s64
    %p66 = scmp.eq.s32.totalorder %s19, 0
    %p67 = por %p65, %p66
    %s69 = sadd.s32 %s68, 1
    %p72 = scmp.eq.s32.totalorder %s13, 1
    %p73 = scmp.ne.s32.totalorder %s68, %s70
    %p74 = scmp.eq.s32.totalorder %s13, 0
    %p75 = por %p73, %p74
    %p76 = scmp.ne.s32.totalorder %s68, %s70
    %p77 = scmp.eq.s32.totalorder %s18, 1
    %p78 = por %p76, %p77
    %p79 = scmp.ne.s32.totalorder %s70, %s71
    %p80 = scmp.eq.s32.totalorder %s18, 0
    %p81 = por %p79, %p80
    %p82 = scmp.ne.s32.totalorder %s70, %s71
    %p83 = scmp.eq.s32.totalorder %s19, 1
    %p84 = por %p82, %p83
    %p86 = scmp.ne.s32.totalorder %s71, %s85
    %p87 = scmp.eq.s32.totalorder %s19, 0
    %p88 = por %p86, %p87
    %s90 = sadd.s32 %s89, 1
    %p93 = scmp.eq.s32.totalorder %s13, 1
    %p94 = scmp.ne.s32.totalorder %s89, %s91
    %p95 = scmp.eq.s32.totalorder %s13, 0
    %p96 = por %p94, %p95
    %p97 = scmp.ne.s32.totalorder %s89, %s91
    %p98 = scmp.eq.s32.totalorder %s18, 1
    %p99 = por %p97, %p98
    %p100 = scmp.ne.s32.totalorder %s91, %s92
    %p101 = scmp.eq.s32.totalorder %s18, 0
    %p102 = por %p100, %p101
    %p103 = scmp.ne.s32.totalorder %s91, %s92
    %p104 = scmp.eq.s32.totalorder %s19, 1
    %p105 = por %p103, %p104
    %p107 = scmp.ne.s32.totalorder %s92, %s106
    %p108 = scmp.eq.s32.totalorder %s19, 0
    %p109 = por %p107, %p108
    %s111 = sadd.s32 %s110, 1
    %p114 = scmp.eq.s32.totalorder %s13, 1
    %p115 = scmp.ne.s32.totalorder %s110, %s112
    %p116 = scmp.eq.s32.totalorder %s13, 0
    %p117 = por %p115, %p116
    %p118 = scmp.ne.s32.totalorder %s110, %s112
    %p119 = scmp.eq.s32.totalorder %s18, 1
    %p120 = por %p118, %p119
    %p121 = scmp.ne.s32.totalorder %s112, %s113
    %p122 = scmp.eq.s32.totalorder %s18, 0
    %p123 = por %p121, %p122
    %p124 = scmp.ne.s32.totalorder %s112, %s113
    %p125 = scmp.eq.s32.totalorder %s19, 1
    %p126 = por %p124, %p125
    %p128 = scmp.ne.s32.totalorder %s113, %s127
    %p129 = scmp.eq.s32.totalorder %s19, 0
    %p130 = por %p128, %p129
    %s132 = sadd.s32 %s131, 1
    %p135 = scmp.eq.s32.totalorder %s13, 1
    %p136 = scmp.ne.s32.totalorder %s131, %s133
    %p137 = scmp.eq.s32.totalorder %s13, 0
    %p138 = por %p136, %p137
    %p139 = scmp.ne.s32.totalorder %s131, %s133
    %p140 = scmp.eq.s32.totalorder %s18, 1
    %p141 = por %p139, %p140
    %p142 = scmp.ne.s32.totalorder %s133, %s134
    %p143 = scmp.eq.s32.totalorder %s18, 0
    %p144 = por %p142, %p143
    %p145 = scmp.ne.s32.totalorder %s133, %s134
    %p146 = scmp.eq.s32.totalorder %s19, 1
    %p147 = por %p145, %p146
    %p149 = scmp.ne.s32.totalorder %s134, %s148
    %p150 = scmp.eq.s32.totalorder %s19, 0
    %p151 = por %p149, %p150
    %s153 = sadd.s32 %s152, 1
    %p156 = scmp.eq.s32.totalorder %s13, 1
    %p157 = scmp.ne.s32.totalorder %s152, %s154
    %p158 = scmp.eq.s32.totalorder %s13, 0
    %p159 = por %p157, %p158
    %p160 = scmp.ne.s32.totalorder %s152, %s154
    %p161 = scmp.eq.s32.totalorder %s18, 1
    %p162 = por %p160, %p161
    %p163 = scmp.ne.s32.totalorder %s154, %s155
    %p164 = scmp.eq.s32.totalorder %s18, 0
    %p165 = por %p163, %p164
    %p166 = scmp.ne.s32.totalorder %s154, %s155
    %p167 = scmp.eq.s32.totalorder %s19, 1
    %p168 = por %p166, %p167
    %p170 = scmp.ne.s32.totalorder %s155, %s169
    %p171 = scmp.eq.s32.totalorder %s19, 0
    %p172 = por %p170, %p171
    %s173 = ssub.s32 %s13, %s20
    %p174 = scmp.eq.s32.totalorder %s173, 0
    %s176 = sadd.s32 %s175, 1
    %s177 = scalar_select %p174, %s175, %s176
    %p180 = pneg %p174
    %p181 = scmp.eq.s32.totalorder %s13, 1
    %p182 = por %p180, %p181
    %p183 = scmp.ne.s32.totalorder %s175, %s178
    %p184 = scmp.eq.s32.totalorder %s13, 0
    %p185 = por %p183, %p184
    %p186 = scmp.ne.s32.totalorder %s175, %s178
    %p187 = scmp.eq.s32.totalorder %s18, 1
    %p188 = por %p186, %p187
    %p189 = scmp.ne.s32.totalorder %s178, %s179
    %p190 = scmp.eq.s32.totalorder %s18, 0
    %p191 = por %p189, %p190
    %p192 = scmp.ne.s32.totalorder %s178, %s179
    %p193 = scmp.eq.s32.totalorder %s19, 1
    %p194 = por %p192, %p193
    %p196 = scmp.ne.s32.totalorder %s179, %s195
    %p197 = scmp.eq.s32.totalorder %s19, 0
    %p198 = por %p196, %p197
    %p199 = scmp.le.s32.totalorder 1, %s13
    %p200 = scmp.lt.s32.totalorder %s13, 3
    %p201 = pnand %p199, %p200
    %p202 = pneg %p201
    // Predicated region
    $region9: #{tpu_custom_call.1} parent=5 // pred_check
      _
    $region10: #{tpu_custom_call.1} parent=5 // pred_check_branch
      %204 = sbr.rel (%p201) target = $region12
    $region11: #{tpu_custom_call.1} parent=5 // pred_region
      %s205 = ssub.s32 %s13, 1
      // Predicated region
      $region13: #{tpu_custom_call.1} parent=11 // pred_check
        %p206 = pneg %p60
      $region14: #{tpu_custom_call.1} parent=11 // pred_check_branch
        %208 = sbr.rel (%p206) target = $region16
      $region15: #{tpu_custom_call.1} parent=11 // pred_region
        _
      $region16: #{tpu_custom_call.1} parent=11 // pred_fallthru
        _
      // Predicated region
      $region17: #{tpu_custom_call.1} parent=11 // pred_check
        %p209 = pneg %p81
      $region18: #{tpu_custom_call.1} parent=11 // pred_check_branch
        %211 = sbr.rel (%p209) target = $region20
      $region19: #{tpu_custom_call.1} parent=11 // pred_region
        _
      $region20: #{tpu_custom_call.1} parent=11 // pred_fallthru
        _
      // Predicated region
      $region21: #{tpu_custom_call.1} parent=11 // pred_check
        %p212 = pneg %p102
      $region22: #{tpu_custom_call.1} parent=11 // pred_check_branch
        %214 = sbr.rel (%p212) target = $region24
      $region23: #{tpu_custom_call.1} parent=11 // pred_region
        _
      $region24: #{tpu_custom_call.1} parent=11 // pred_fallthru
        _
      // Predicated region
      $region25: #{tpu_custom_call.1} parent=11 // pred_check
        %p215 = pneg %p123
      $region26: #{tpu_custom_call.1} parent=11 // pred_check_branch
        %217 = sbr.rel (%p215) target = $region28
      $region27: #{tpu_custom_call.1} parent=11 // pred_region
        _
      $region28: #{tpu_custom_call.1} parent=11 // pred_fallthru
        _
      // Predicated region
      $region29: #{tpu_custom_call.1} parent=11 // pred_check
        %p218 = pneg %p144
      $region30: #{tpu_custom_call.1} parent=11 // pred_check_branch
        %220 = sbr.rel (%p218) target = $region32
      $region31: #{tpu_custom_call.1} parent=11 // pred_region
        _
      $region32: #{tpu_custom_call.1} parent=11 // pred_fallthru
        _
      // Predicated region
      $region33: #{tpu_custom_call.1} parent=11 // pred_check
        %p221 = pneg %p165
      $region34: #{tpu_custom_call.1} parent=11 // pred_check_branch
        %223 = sbr.rel (%p221) target = $region36
      $region35: #{tpu_custom_call.1} parent=11 // pred_region
        _
      $region36: #{tpu_custom_call.1} parent=11 // pred_fallthru
        _
    $region12: #{tpu_custom_call.1} parent=5 // pred_fallthru
      _
    %p224 = scmp.lt.s32.totalorder %s13, 2
    // Predicated region
    $region37: #{tpu_custom_call.1} parent=5 // pred_check
      %p225 = pneg %p224
    $region38: #{tpu_custom_call.1} parent=5 // pred_check_branch
      %227 = sbr.rel (%p225) target = $region40
    $region39: #{tpu_custom_call.1} parent=5 // pred_region
      // Predicated region
      $region41: #{tpu_custom_call.1} parent=39 // pred_check
        %p228 = pneg %p33
      $region42: #{tpu_custom_call.1} parent=39 // pred_check_branch
        %230 = sbr.rel (%p228) target = $region44
      $region43: #{tpu_custom_call.1} parent=39 // pred_region
        %p231 = scmp.lt.s32.totalorder %s13, 1
        %s232 = scalar_select %p231, %s13, 1
        %s233 = smul.addr %s232, 8
        %s234 = smul.addr %s233, 8
        %s235 = scalar_lea.vmem %s0, %s234
      $region44: #{tpu_custom_call.1} parent=39 // pred_fallthru
        _
    $region40: #{tpu_custom_call.1} parent=5 // pred_fallthru
      _
    %p236 = scmp.le.s32.totalorder 1, %s13
    %p237 = scmp.lt.s32.totalorder %s13, 3
    %p238 = pnand %p236, %p237
    %p239 = pneg %p238
    // Predicated region
    $region45: #{tpu_custom_call.1} parent=5 // pred_check
      _
    $region46: #{tpu_custom_call.1} parent=5 // pred_check_branch
      %241 = sbr.rel (%p238) target = $region48
    $region47: #{tpu_custom_call.1} parent=5 // pred_region
      %s242 = ssub.s32 %s13, 1
      %p243 = scmp.lt.s32.totalorder %s18, 1
      %s244 = scalar_select %p243, %s18, 1
      %s245 = smul.addr %s244, 8
      %s246 = smul.addr %s245, 8
      %s247 = scalar_lea.vmem %s0, %s246
      %p248 = pneg %p39
      %p249 = pneg %p36
      %p250 = pneg %p60
      %p251 = pneg %p57
      %p252 = pneg %p81
      %p253 = pneg %p78
      %p254 = pneg %p102
      %p255 = pneg %p99
      %p256 = pneg %p123
      %p257 = pneg %p120
      %p258 = pneg %p144
      %p259 = pneg %p141
      %p260 = pneg %p165
      %p261 = pneg %p162
      %p262 = pneg %p191
      %p263 = pneg %p188
      %p264 = scmp.lt.s32.totalorder %s18, 1
      %s265 = scalar_select %p264, %s18, 1
      %s266 = smul.addr %s265, 8
      %s267 = smul.addr %s266, 8
      %s268 = scalar_lea.vmem %s7, %s267
      %p269 = scmp.lt.s32.totalorder %s18, 1
      %s270 = scalar_select %p269, %s18, 1
      %s271 = smul.addr %s270, 8
      %s272 = smul.addr %s271, 8
      %s273 = scalar_lea.vmem %s0, %s272
      %p274 = scmp.lt.s32.totalorder %s18, 1
      %s275 = scalar_select %p274, %s18, 1
      %s276 = smul.addr %s275, 8
      %s277 = smul.addr %s276, 8
      %s278 = scalar_lea.vmem %s7, %s277
      %v280 = vld [vmem:[%s273] sm:$0xff]
      %v281 = vld [vmem:[%s273 + $0x8] sm:$0xff]
      %v282 = vld [vmem:[%s273 + $0x10] sm:$0xff]
      %v283 = vld [vmem:[%s273 + $0x18] sm:$0xff]
      %v284 = vld [vmem:[%s273 + $0x20] sm:$0xff]
      %v285 = vld [vmem:[%s273 + $0x28] sm:$0xff]
      %v286 = vld [vmem:[%s273 + $0x30] sm:$0xff]
      %v287 = vld [vmem:[%s273 + $0x38] sm:$0xff]
      %vm288 = vcmask 60416
      %289 = vst.msk [vmem:[#allocation2] sm:$0xf] %vm288, 0
      %290 = vst.msk [vmem:[#allocation2 + $0x24] sm:$0xf] %vm288, 0
      %vm291 = vcmask 64512
      %292 = vst.msk [vmem:[%s278] sm:$0xff] %vm291, 0.0
      %293 = vst.msk [vmem:[%s278 + $0x8] sm:$0xff] %vm291, 0.0
      %294 = vst.msk [vmem:[%s278 + $0x10] sm:$0xff] %vm291, 0.0
      %295 = vst.msk [vmem:[%s278 + $0x18] sm:$0xff] %vm291, 0.0
      %296 = vst.msk [vmem:[%s278 + $0x20] sm:$0xff] %vm291, 0.0
      %297 = vst.msk [vmem:[%s278 + $0x28] sm:$0xff] %vm291, 0.0
      %298 = vst.msk [vmem:[%s278 + $0x30] sm:$0xff] %vm291, 0.0
      %299 = vst.msk [vmem:[%s278 + $0x38] sm:$0xff] %vm291, 0.0
      %v300 = vpack.c.bf16 %v281, %v280
      %v301 = vpack.c.bf16 %v283, %v282
      %v302 = vpack.c.bf16 %v285, %v284
      %v303 = vpack.c.bf16 %v287, %v286
      %v308 = vunpack.c.l.b16 %v300
      %v309 = vunpack.c.h.b16 %v300
      %v310 = vunpack.c.l.b16 %v301
      %v311 = vunpack.c.h.b16 %v301
      %v312 = vunpack.c.l.b16 %v302
      %v313 = vunpack.c.h.b16 %v302
      %v314 = vunpack.c.l.b16 %v303
      %v315 = vunpack.c.h.b16 %v303
      %v316 = vpack.c.b16 %v308, %v308
      %v317 = vpack.c.b16 %v309, %v309
      %v318 = vpack.c.b16 %v310, %v310
      %v319 = vpack.c.b16 %v311, %v311
      %v320 = vpack.c.b16 %v312, %v312
      %v321 = vpack.c.b16 %v313, %v313
      %v322 = vpack.c.b16 %v314, %v314
      %v323 = vpack.c.b16 %v315, %v315
      %332 = vst.msk [vmem:[#allocation2 + $0x4] sm:$0xf] %vm288, %v316
      %333 = vst.msk [vmem:[#allocation2 + $0x8] sm:$0xf] %vm288, %v317
      %334 = vst.msk [vmem:[#allocation2 + $0xc] sm:$0xf] %vm288, %v318
      %335 = vst.msk [vmem:[#allocation2 + $0x10] sm:$0xf] %vm288, %v319
      %336 = vst.msk [vmem:[#allocation2 + $0x14] sm:$0xf] %vm288, %v320
      %337 = vst.msk [vmem:[#allocation2 + $0x18] sm:$0xf] %vm288, %v321
      %338 = vst.msk [vmem:[#allocation2 + $0x1c] sm:$0xf] %vm288, %v322
      %339 = vst.msk [vmem:[#allocation2 + $0x20] sm:$0xf] %vm288, %v323
      %340 = vrot.lane.b32.xlu0 %v316, 8
      %v341 = vpop.permute.xlu0 %340
      %342 = vrot.lane.b32.xlu0 %v317, 8
      %v343 = vpop.permute.xlu0 %342
      %344 = vrot.lane.b32.xlu0 %v318, 8
      %v345 = vpop.permute.xlu0 %344
      %346 = vrot.lane.b32.xlu0 %v319, 8
      %v347 = vpop.permute.xlu0 %346
      %348 = vrot.lane.b32.xlu0 %v320, 8
      %v349 = vpop.permute.xlu0 %348
      %350 = vrot.lane.b32.xlu0 %v321, 8
      %v351 = vpop.permute.xlu0 %350
      %352 = vrot.lane.b32.xlu0 %v322, 8
      %v353 = vpop.permute.xlu0 %352
      %354 = vrot.lane.b32.xlu0 %v323, 8
      %v355 = vpop.permute.xlu0 %354
      %vm364 = vcmask 126016
      %365 = vst.msk [vmem:[#allocation3] sm:$0xf] %vm364, %v341
      %366 = vst.msk [vmem:[#allocation3 + $0x4] sm:$0xf] %vm364, %v343
      %367 = vst.msk [vmem:[#allocation3 + $0x8] sm:$0xf] %vm364, %v345
      %368 = vst.msk [vmem:[#allocation3 + $0xc] sm:$0xf] %vm364, %v347
      %369 = vst.msk [vmem:[#allocation3 + $0x10] sm:$0xf] %vm364, %v349
      %370 = vst.msk [vmem:[#allocation3 + $0x14] sm:$0xf] %vm364, %v351
      %371 = vst.msk [vmem:[#allocation3 + $0x18] sm:$0xf] %vm364, %v353
      %372 = vst.msk [vmem:[#allocation3 + $0x1c] sm:$0xf] %vm364, %v355
      %v373 = vld [vmem:[#allocation2] sm:$0x8]
      %v374 = vld [vmem:[#allocation2 + $0x4] sm:$0xf]
      %v375 = vld [vmem:[#allocation2 + $0x8] sm:$0xf]
      %v376 = vld [vmem:[#allocation2 + $0xc] sm:$0xf]
      %v377 = vld [vmem:[#allocation2 + $0x10] sm:$0xf]
      %v378 = vld [vmem:[#allocation2 + $0x14] sm:$0xf]
      %v379 = vld [vmem:[#allocation2 + $0x18] sm:$0xf]
      %v380 = vld [vmem:[#allocation2 + $0x1c] sm:$0xf]
      %v381 = vld [vmem:[#allocation2 + $0x20] sm:$0xf]
      %vm382 = vsmask.f32 256
      %vm383 = vsmask.f32 4368
      %vm384 = vmor %vm382, %vm383
      %v386 = vshrl.u32 %v373, 16
      %v388 = vrot.slane %v386, 7
      %v389 = vrot.slane %v388, 4
      %v391 = vshrl.u32 %v374, 16
      %v393 = vrot.slane %v391, 7
      %v394 = vshll.u32 %v374, 16
      %v396 = vor.u32 %v393, %v394
      %v397 = vsel %vm384, %v389, %v396
      %v398 = vrot.slane %v393, 4
      %v400 = vshrl.u32 %v375, 16
      %v402 = vrot.slane %v400, 7
      %v403 = vshll.u32 %v375, 16
      %v405 = vor.u32 %v402, %v403
      %v406 = vsel %vm384, %v398, %v405
      %v407 = vrot.slane %v402, 4
      %v409 = vshrl.u32 %v376, 16
      %v411 = vrot.slane %v409, 7
      %v412 = vshll.u32 %v376, 16
      %v414 = vor.u32 %v411, %v412
      %v415 = vsel %vm384, %v407, %v414
      %v416 = vrot.slane %v411, 4
      %v418 = vshrl.u32 %v377, 16
      %v420 = vrot.slane %v418, 7
      %v421 = vshll.u32 %v377, 16
      %v423 = vor.u32 %v420, %v421
      %v424 = vsel %vm384, %v416, %v423
      %v425 = vrot.slane %v420, 4
      %v427 = vshrl.u32 %v378, 16
      %v429 = vrot.slane %v427, 7
      %v430 = vshll.u32 %v378, 16
      %v432 = vor.u32 %v429, %v430
      %v433 = vsel %vm384, %v425, %v432
      %v434 = vrot.slane %v429, 4
      %v436 = vshrl.u32 %v379, 16
      %v438 = vrot.slane %v436, 7
      %v439 = vshll.u32 %v379, 16
      %v441 = vor.u32 %v438, %v439
      %v442 = vsel %vm384, %v434, %v441
      %v443 = vrot.slane %v438, 4
      %v445 = vshrl.u32 %v380, 16
      %v447 = vrot.slane %v445, 7
      %v448 = vshll.u32 %v380, 16
      %v450 = vor.u32 %v447, %v448
      %v451 = vsel %vm384, %v443, %v450
      %v452 = vrot.slane %v447, 4
      %v454 = vshrl.u32 %v381, 16
      %v456 = vrot.slane %v454, 7
      %v457 = vshll.u32 %v381, 16
      %v459 = vor.u32 %v456, %v457
      %v460 = vsel %vm384, %v452, %v459
      %469 = vst.msk [vmem:[#allocation3] sm:$0xf] %vm288, %v397
      %470 = vst.msk [vmem:[#allocation3 + $0x4] sm:$0xf] %vm288, %v406
      %471 = vst.msk [vmem:[#allocation3 + $0x8] sm:$0xf] %vm288, %v415
      %472 = vst.msk [vmem:[#allocation3 + $0xc] sm:$0xf] %vm288, %v424
      %473 = vst.msk [vmem:[#allocation3 + $0x10] sm:$0xf] %vm288, %v433
      %474 = vst.msk [vmem:[#allocation3 + $0x14] sm:$0xf] %vm288, %v442
      %475 = vst.msk [vmem:[#allocation3 + $0x18] sm:$0xf] %vm288, %v451
      %476 = vst.msk [vmem:[#allocation3 + $0x1c] sm:$0xf] %vm288, %v460
      %v477 = vld [vmem:[#allocation2 + $0x4] sm:$0xf]
      %v478 = vld [vmem:[#allocation2 + $0x8] sm:$0xf]
      %v479 = vld [vmem:[#allocation2 + $0xc] sm:$0xf]
      %v480 = vld [vmem:[#allocation2 + $0x10] sm:$0xf]
      %v481 = vld [vmem:[#allocation2 + $0x14] sm:$0xf]
      %v482 = vld [vmem:[#allocation2 + $0x18] sm:$0xf]
      %v483 = vld [vmem:[#allocation2 + $0x1c] sm:$0xf]
      %v484 = vld [vmem:[#allocation2 + $0x20] sm:$0xf]
      %v485 = vld [vmem:[#allocation2 + $0x24] sm:$0x1]
      %vm486 = vsmask.f32 3328
      %vm487 = vsmask.f32 7440
      %vm488 = vmor %vm486, %vm487
      %v490 = vshrl.u32 %v477, 16
      %v492 = vrot.slane %v490, 4
      %v493 = vshll.u32 %v477, 16
      %v495 = vrot.slane %v493, 5
      %v496 = vor.u32 %v492, %v495
      %v497 = vrot.slane %v496, 4
      %v499 = vshll.u32 %v478, 16
      %v501 = vrot.slane %v499, 5
      %v502 = vsel %vm488, %v497, %v501
      %v503 = vshrl.u32 %v478, 16
      %v505 = vrot.slane %v503, 4
      %v506 = vor.u32 %v505, %v501
      %v507 = vrot.slane %v506, 4
      %v509 = vshll.u32 %v479, 16
      %v511 = vrot.slane %v509, 5
      %v512 = vsel %vm488, %v507, %v511
      %v513 = vshrl.u32 %v479, 16
      %v515 = vrot.slane %v513, 4
      %v516 = vor.u32 %v515, %v511
      %v517 = vrot.slane %v516, 4
      %v519 = vshll.u32 %v480, 16
      %v521 = vrot.slane %v519, 5
      %v522 = vsel %vm488, %v517, %v521
      %v523 = vshrl.u32 %v480, 16
      %v525 = vrot.slane %v523, 4
      %v526 = vor.u32 %v525, %v521
      %v527 = vrot.slane %v526, 4
      %v529 = vshll.u32 %v481, 16
      %v531 = vrot.slane %v529, 5
      %v532 = vsel %vm488, %v527, %v531
      %v533 = vshrl.u32 %v481, 16
      %v535 = vrot.slane %v533, 4
      %v536 = vor.u32 %v535, %v531
      %v537 = vrot.slane %v536, 4
      %v539 = vshll.u32 %v482, 16
      %v541 = vrot.slane %v539, 5
      %v542 = vsel %vm488, %v537, %v541
      %v543 = vshrl.u32 %v482, 16
      %v545 = vrot.slane %v543, 4
      %v546 = vor.u32 %v545, %v541
      %v547 = vrot.slane %v546, 4
      %v549 = vshll.u32 %v483, 16
      %v551 = vrot.slane %v549, 5
      %v552 = vsel %vm488, %v547, %v551
      %v553 = vshrl.u32 %v483, 16
      %v555 = vrot.slane %v553, 4
      %v556 = vor.u32 %v555, %v551
      %v557 = vrot.slane %v556, 4
      %v559 = vshll.u32 %v484, 16
      %v561 = vrot.slane %v559, 5
      %v562 = vsel %vm488, %v557, %v561
      %v563 = vshrl.u32 %v484, 16
      %v565 = vrot.slane %v563, 4
      %v566 = vor.u32 %v565, %v561
      %v567 = vrot.slane %v566, 4
      %v569 = vshll.u32 %v485, 16
      %v571 = vrot.slane %v569, 5
      %v572 = vsel %vm488, %v567, %v571
      %573 = vrot.lane.b32.xlu0 %v502, 16
      %v574 = vpop.permute.xlu0 %573
      %575 = vrot.lane.b32.xlu0 %v512, 16
      %v576 = vpop.permute.xlu0 %575
      %577 = vrot.lane.b32.xlu0 %v522, 16
      %v578 = vpop.permute.xlu0 %577
      %579 = vrot.lane.b32.xlu0 %v532, 16
      %v580 = vpop.permute.xlu0 %579
      %581 = vrot.lane.b32.xlu0 %v542, 16
      %v582 = vpop.permute.xlu0 %581
      %583 = vrot.lane.b32.xlu0 %v552, 16
      %v584 = vpop.permute.xlu0 %583
      %585 = vrot.lane.b32.xlu0 %v562, 16
      %v586 = vpop.permute.xlu0 %585
      %587 = vrot.lane.b32.xlu0 %v572, 16
      %v588 = vpop.permute.xlu0 %587
      %vm597 = vcmask 191616
      %598 = vst.msk [vmem:[#allocation3] sm:$0xf] %vm597, %v574
      %599 = vst.msk [vmem:[#allocation3 + $0x4] sm:$0xf] %vm597, %v576
      %600 = vst.msk [vmem:[#allocation3 + $0x8] sm:$0xf] %vm597, %v578
      %601 = vst.msk [vmem:[#allocation3 + $0xc] sm:$0xf] %vm597, %v580
      %602 = vst.msk [vmem:[#allocation3 + $0x10] sm:$0xf] %vm597, %v582
      %603 = vst.msk [vmem:[#allocation3 + $0x14] sm:$0xf] %vm597, %v584
      %604 = vst.msk [vmem:[#allocation3 + $0x18] sm:$0xf] %vm597, %v586
      %605 = vst.msk [vmem:[#allocation3 + $0x1c] sm:$0xf] %vm597, %v588
      %v606 = vld [vmem:[#allocation3] sm:$0xf]
      %v607 = vld [vmem:[#allocation3 + $0x4] sm:$0xf]
      %v608 = vld [vmem:[#allocation3 + $0x8] sm:$0xf]
      %v609 = vld [vmem:[#allocation3 + $0xc] sm:$0xf]
      %v610 = vld [vmem:[#allocation3 + $0x10] sm:$0xf]
      %v611 = vld [vmem:[#allocation3 + $0x14] sm:$0xf]
      %v612 = vld [vmem:[#allocation3 + $0x18] sm:$0xf]
      %v613 = vld [vmem:[#allocation3 + $0x1c] sm:$0xf]
      %v614 = vld [vmem:[%s1] sm:$0xf]
      %v615 = vld [vmem:[%s1 + $0x4] sm:$0xf]
      %v616 = vld [vmem:[%s1 + $0x8] sm:$0xf]
      %v617 = vld [vmem:[%s2] sm:$0x1]
      %v619 = vlaneseq
      %v620 = vshrl.u32 %v619, 7
      %v621 = vsub.s32 0, %v620
      %v622 = vrot.slane %v617, %v621
      %v632 = vunpack.c.l.b16 %v606
      %v633 = vunpack.c.l.b16 %v607
      %v634 = vunpack.c.l.b16 %v608
      %v635 = vunpack.c.l.b16 %v609
      %v636 = vunpack.c.l.b16 %v610
      %v637 = vunpack.c.l.b16 %v611
      %v638 = vunpack.c.l.b16 %v612
      %v639 = vunpack.c.l.b16 %v613
      %v640 = vpack.c.b16 %v633, %v632
      %v641 = vpack.c.b16 %v635, %v634
      %v642 = vpack.c.b16 %v637, %v636
      %v643 = vpack.c.b16 %v639, %v638
      %v647 = vunpack.c.l.b16 %v614
      %v648 = vunpack.c.l.b16 %v615
      %v649 = vunpack.c.l.b16 %v616
      %v650 = vpack.c.b16 %v648, %v647
      %v651 = vpack.c.b16 %v649, %v649
      %vm653 = vcmask 195584
      %v655 = vsel %vm653, %v640, 0
      %v658 = vsel %vm653, %v641, 0
      %v661 = vsel %vm653, %v642, 0
      %v664 = vsel %vm653, %v643, 0
      %vm666 = vcmask 1043456
      %v668 = vsel %vm666, %v651, 0
      %670 = vmatprep.subr.bf16.mxu0 0
      %671 = vmatpush1.bf16.msra.mxu0 0
      %672 = vmatprep.subr.bf16.mxu0 0
      %673 = vmatpush1.bf16.msra.mxu0 0
      %674 = vmatprep.subr.bf16.mxu0 0
      %675 = vmatpush1.bf16.msra.mxu0 0
      %676 = vmatprep.subr.bf16.mxu0 0
      %677 = vmatpush1.bf16.msra.mxu0 0
      %678 = vmatprep.subr.bf16.mxu0 0
      %679 = vmatpush1.bf16.msra.mxu0 0
      %680 = vmatprep.subr.bf16.mxu0 0
      %681 = vmatpush1.bf16.msra.mxu0 0
      %682 = vmatprep.subr.bf16.mxu0 0
      %683 = vmatpush1.bf16.msra.mxu0 %v668
      %684 = vmatprep.subr.bf16.mxu0 0
      %685 = vmatpush1.bf16.msra.mxu0 %v650
      %686 = vmatprep.subr.bf16.mxu0 0
      %687 = vmatpush2.bf16.msra.mxu0 0
      %688 = vmatprep.subr.bf16.mxu0 0
      %689 = vmatpush2.bf16.msra.mxu0 0
      %690 = vmatprep.subr.bf16.mxu0 0
      %691 = vmatpush2.bf16.msra.mxu0 0
      %692 = vmatprep.subr.bf16.mxu0 0
      %693 = vmatpush2.bf16.msra.mxu0 0
      %694 = vmatprep.subr.bf16.mxu0 0
      %695 = vmatpush2.bf16.msra.mxu0 0
      %696 = vmatprep.subr.bf16.mxu0 0
      %697 = vmatpush2.bf16.msra.mxu0 0
      %698 = vmatprep.subr.bf16.mxu0 0
      %699 = vmatpush2.bf16.msra.mxu0 0
      %700 = vmatprep.subr.bf16.mxu0 0
      %701 = vmatpush2.bf16.msra.mxu0 0
      %702 = vmatprep.mubr.bf16.mxu0 0
      %703 = vmatmul.mubr.bf16.gmra.mxu0 %v655
      %v704 = vpop.f32.mrf.mxu0
      %v705 = vadd.f32 %v622, %v704
      %v706 = vpop.f32.mrf.mxu0
      %v707 = vpop.f32.mrf.mxu0
      %v708 = vadd.f32 %v622, %v707
      %v709 = vpop.f32.mrf.mxu0
      %710 = vmatprep.mubr.bf16.mxu0 0
      %711 = vmatmul.mubr.bf16.gmra.mxu0 %v658
      %v712 = vpop.f32.mrf.mxu0
      %v713 = vadd.f32 %v622, %v712
      %v714 = vpop.f32.mrf.mxu0
      %v715 = vpop.f32.mrf.mxu0
      %v716 = vadd.f32 %v622, %v715
      %v717 = vpop.f32.mrf.mxu0
      %718 = vmatprep.mubr.bf16.mxu0 0
      %719 = vmatmul.mubr.bf16.gmra.mxu0 %v661
      %v720 = vpop.f32.mrf.mxu0
      %v721 = vadd.f32 %v622, %v720
      %v722 = vpop.f32.mrf.mxu0
      %v723 = vpop.f32.mrf.mxu0
      %v724 = vadd.f32 %v622, %v723
      %v725 = vpop.f32.mrf.mxu0
      %726 = vmatprep.mubr.bf16.mxu0 0
      %727 = vmatmul.mubr.bf16.gmra.mxu0 %v664
      %v728 = vpop.f32.mrf.mxu0
      %v729 = vadd.f32 %v622, %v728
      %v730 = vpop.f32.mrf.mxu0
      %v731 = vpop.f32.mrf.mxu0
      %v732 = vadd.f32 %v622, %v731
      %v733 = vpop.f32.mrf.mxu0
      %734 = vdwg.mxu0
      %v735 = vld [vmem:[%s3] sm:$0xf]
      %v736 = vld [vmem:[%s3 + $0x4] sm:$0xf]
      %v737 = vld [vmem:[%s3 + $0x8] sm:$0xf]
      %v738 = vld [vmem:[%s4] sm:$0x1]
      %v740 = vlaneseq
      %v741 = vshrl.u32 %v740, 7
      %v742 = vsub.s32 0, %v741
      %v743 = vrot.slane %v738, %v742
      %v748 = vunpack.c.l.b16 %v735
      %v749 = vunpack.c.l.b16 %v736
      %v750 = vunpack.c.l.b16 %v737
      %v751 = vpack.c.b16 %v749, %v748
      %v752 = vpack.c.b16 %v750, %v750
      %v755 = vsel %vm666, %v752, 0
      %757 = vmatprep.subr.bf16.mxu0 0
      %758 = vmatpush1.bf16.msra.mxu0 0
      %759 = vmatprep.subr.bf16.mxu0 0
      %760 = vmatpush1.bf16.msra.mxu0 0
      %761 = vmatprep.subr.bf16.mxu0 0
      %762 = vmatpush1.bf16.msra.mxu0 0
      %763 = vmatprep.subr.bf16.mxu0 0
      %764 = vmatpush1.bf16.msra.mxu0 0
      %765 = vmatprep.subr.bf16.mxu0 0
      %766 = vmatpush1.bf16.msra.mxu0 0
      %767 = vmatprep.subr.bf16.mxu0 0
      %768 = vmatpush1.bf16.msra.mxu0 0
      %769 = vmatprep.subr.bf16.mxu0 0
      %770 = vmatpush1.bf16.msra.mxu0 %v755
      %771 = vmatprep.subr.bf16.mxu0 0
      %772 = vmatpush1.bf16.msra.mxu0 %v751
      %773 = vmatprep.subr.bf16.mxu0 0
      %774 = vmatpush2.bf16.msra.mxu0 0
      %775 = vmatprep.subr.bf16.mxu0 0
      %776 = vmatpush2.bf16.msra.mxu0 0
      %777 = vmatprep.subr.bf16.mxu0 0
      %778 = vmatpush2.bf16.msra.mxu0 0
      %779 = vmatprep.subr.bf16.mxu0 0
      %780 = vmatpush2.bf16.msra.mxu0 0
      %781 = vmatprep.subr.bf16.mxu0 0
      %782 = vmatpush2.bf16.msra.mxu0 0
      %783 = vmatprep.subr.bf16.mxu0 0
      %784 = vmatpush2.bf16.msra.mxu0 0
      %785 = vmatprep.subr.bf16.mxu0 0
      %786 = vmatpush2.bf16.msra.mxu0 0
      %787 = vmatprep.subr.bf16.mxu0 0
      %788 = vmatpush2.bf16.msra.mxu0 0
      %789 = vmatprep.mubr.bf16.mxu0 0
      %790 = vmatmul.mubr.bf16.gmra.mxu0 %v655
      %v791 = vpop.f32.mrf.mxu0
      %v792 = vadd.f32 %v743, %v791
      %v793 = vpop.f32.mrf.mxu0
      %v794 = vpop.f32.mrf.mxu0
      %v795 = vadd.f32 %v743, %v794
      %v796 = vpop.f32.mrf.mxu0
      %797 = vmatprep.mubr.bf16.mxu0 0
      %798 = vmatmul.mubr.bf16.gmra.mxu0 %v658
      %v799 = vpop.f32.mrf.mxu0
      %v800 = vadd.f32 %v743, %v799
      %v801 = vpop.f32.mrf.mxu0
      %v802 = vpop.f32.mrf.mxu0
      %v803 = vadd.f32 %v743, %v802
      %v804 = vpop.f32.mrf.mxu0
      %805 = vmatprep.mubr.bf16.mxu0 0
      %806 = vmatmul.mubr.bf16.gmra.mxu0 %v661
      %v807 = vpop.f32.mrf.mxu0
      %v808 = vadd.f32 %v743, %v807
      %v809 = vpop.f32.mrf.mxu0
      %v810 = vpop.f32.mrf.mxu0
      %v811 = vadd.f32 %v743, %v810
      %v812 = vpop.f32.mrf.mxu0
      %813 = vmatprep.mubr.bf16.mxu0 0
      %814 = vmatmul.mubr.bf16.gmra.mxu0 %v664
      %v815 = vpop.f32.mrf.mxu0
      %v816 = vadd.f32 %v743, %v815
      %v817 = vpop.f32.mrf.mxu0
      %v818 = vpop.f32.mrf.mxu0
      %v819 = vadd.f32 %v743, %v818
      %v820 = vpop.f32.mrf.mxu0
      %821 = vdwg.mxu0
      %v822 = vtanh.pop %v705
      %v823 = vtanh.pop %v708
      %v824 = vtanh.pop %v713
      %v825 = vtanh.pop %v716
      %v826 = vtanh.pop %v721
      %v827 = vtanh.pop %v724
      %v828 = vtanh.pop %v729
      %v829 = vtanh.pop %v732
      %v830 = vxor.u32 %v792, 2147483648
      %v831 = vxor.u32 %v795, 2147483648
      %v832 = vxor.u32 %v800, 2147483648
      %v833 = vxor.u32 %v803, 2147483648
      %v834 = vxor.u32 %v808, 2147483648
      %v835 = vxor.u32 %v811, 2147483648
      %v836 = vxor.u32 %v816, 2147483648
      %v837 = vxor.u32 %v819, 2147483648
      %v838 = vmul.f32 %v830, 1.442695
      %v839 = vpow.pop %v838
      %v840 = vmul.f32 %v831, 1.442695
      %v841 = vpow.pop %v840
      %v842 = vmul.f32 %v832, 1.442695
      %v843 = vpow.pop %v842
      %v844 = vmul.f32 %v833, 1.442695
      %v845 = vpow.pop %v844
      %v846 = vmul.f32 %v834, 1.442695
      %v847 = vpow.pop %v846
      %v848 = vmul.f32 %v835, 1.442695
      %v849 = vpow.pop %v848
      %v850 = vmul.f32 %v836, 1.442695
      %v851 = vpow.pop %v850
      %v852 = vmul.f32 %v837, 1.442695
      %v853 = vpow.pop %v852
      %v854 = vadd.f32 %v839, 1.0
      %v855 = vadd.f32 %v841, 1.0
      %v856 = vadd.f32 %v843, 1.0
      %v857 = vadd.f32 %v845, 1.0
      %v858 = vadd.f32 %v847, 1.0
      %v859 = vadd.f32 %v849, 1.0
      %v860 = vadd.f32 %v851, 1.0
      %v861 = vadd.f32 %v853, 1.0
      %v862 = vrcp.pop %v854
      %v863 = vmul.f32 1.0, %v862
      %v864 = vrcp.pop %v855
      %v865 = vmul.f32 1.0, %v864
      %v866 = vrcp.pop %v856
      %v867 = vmul.f32 1.0, %v866
      %v868 = vrcp.pop %v857
      %v869 = vmul.f32 1.0, %v868
      %v870 = vrcp.pop %v858
      %v871 = vmul.f32 1.0, %v870
      %v872 = vrcp.pop %v859
      %v873 = vmul.f32 1.0, %v872
      %v874 = vrcp.pop %v860
      %v875 = vmul.f32 1.0, %v874
      %v876 = vrcp.pop %v861
      %v877 = vmul.f32 1.0, %v876
      %v878 = vmul.f32 %v822, %v863
      %v879 = vmul.f32 %v823, %v865
      %v880 = vmul.f32 %v824, %v867
      %v881 = vmul.f32 %v825, %v869
      %v882 = vmul.f32 %v826, %v871
      %v883 = vmul.f32 %v827, %v873
      %v884 = vmul.f32 %v828, %v875
      %v885 = vmul.f32 %v829, %v877
      %v886 = vpack.c.bf16 %v879, %v878
      %v887 = vpack.c.bf16 %v881, %v880
      %v888 = vpack.c.bf16 %v883, %v882
      %v889 = vpack.c.bf16 %v885, %v884
      %v890 = vld [vmem:[%s5] sm:$0xf]
      %v891 = vld [vmem:[%s6] sm:$0x1]
      %v893 = vlaneseq
      %v894 = vshrl.u32 %v893, 7
      %v895 = vsub.s32 0, %v894
      %v896 = vrot.slane %v891, %v895
      %v899 = vsel %vm291, %v886, 0
      %v902 = vsel %vm291, %v887, 0
      %v905 = vsel %vm291, %v888, 0
      %v908 = vsel %vm291, %v889, 0
      %v911 = vsel %vm666, %v890, 0
      %913 = vmatprep.subr.bf16.mxu0 0
      %914 = vmatpush1.bf16.msra.mxu0 0
      %915 = vmatprep.subr.bf16.mxu0 0
      %916 = vmatpush1.bf16.msra.mxu0 0
      %917 = vmatprep.subr.bf16.mxu0 0
      %918 = vmatpush1.bf16.msra.mxu0 0
      %919 = vmatprep.subr.bf16.mxu0 0
      %920 = vmatpush1.bf16.msra.mxu0 0
      %921 = vmatprep.subr.bf16.mxu0 0
      %922 = vmatpush1.bf16.msra.mxu0 0
      %923 = vmatprep.subr.bf16.mxu0 0
      %924 = vmatpush1.bf16.msra.mxu0 0
      %925 = vmatprep.subr.bf16.mxu0 0
      %926 = vmatpush1.bf16.msra.mxu0 0
      %927 = vmatprep.subr.bf16.mxu0 0
      %928 = vmatpush1.bf16.msra.mxu0 %v911
      %929 = vmatprep.subr.bf16.mxu0 0
      %930 = vmatpush2.bf16.msra.mxu0 0
      %931 = vmatprep.subr.bf16.mxu0 0
      %932 = vmatpush2.bf16.msra.mxu0 0
      %933 = vmatprep.subr.bf16.mxu0 0
      %934 = vmatpush2.bf16.msra.mxu0 0
      %935 = vmatprep.subr.bf16.mxu0 0
      %936 = vmatpush2.bf16.msra.mxu0 0
      %937 = vmatprep.subr.bf16.mxu0 0
      %938 = vmatpush2.bf16.msra.mxu0 0
      %939 = vmatprep.subr.bf16.mxu0 0
      %940 = vmatpush2.bf16.msra.mxu0 0
      %941 = vmatprep.subr.bf16.mxu0 0
      %942 = vmatpush2.bf16.msra.mxu0 0
      %943 = vmatprep.subr.bf16.mxu0 0
      %944 = vmatpush2.bf16.msra.mxu0 0
      %945 = vmatprep.mubr.bf16.mxu0 0
      %946 = vmatmul.mubr.bf16.gmra.mxu0 %v899
      %v947 = vpop.f32.mrf.mxu0
      %v948 = vadd.f32 %v896, %v947
      %v949 = vpop.f32.mrf.mxu0
      %v950 = vpop.f32.mrf.mxu0
      %v951 = vadd.f32 %v896, %v950
      %v952 = vpop.f32.mrf.mxu0
      %953 = vmatprep.mubr.bf16.mxu0 0
      %954 = vmatmul.mubr.bf16.gmra.mxu0 %v902
      %v955 = vpop.f32.mrf.mxu0
      %v956 = vadd.f32 %v896, %v955
      %v957 = vpop.f32.mrf.mxu0
      %v958 = vpop.f32.mrf.mxu0
      %v959 = vadd.f32 %v896, %v958
      %v960 = vpop.f32.mrf.mxu0
      %961 = vmatprep.mubr.bf16.mxu0 0
      %962 = vmatmul.mubr.bf16.gmra.mxu0 %v905
      %v963 = vpop.f32.mrf.mxu0
      %v964 = vadd.f32 %v896, %v963
      %v965 = vpop.f32.mrf.mxu0
      %v966 = vpop.f32.mrf.mxu0
      %v967 = vadd.f32 %v896, %v966
      %v968 = vpop.f32.mrf.mxu0
      %969 = vmatprep.mubr.bf16.mxu0 0
      %970 = vmatmul.mubr.bf16.gmra.mxu0 %v908
      %v971 = vpop.f32.mrf.mxu0
      %v972 = vadd.f32 %v896, %v971
      %v973 = vpop.f32.mrf.mxu0
      %v974 = vpop.f32.mrf.mxu0
      %v975 = vadd.f32 %v896, %v974
      %v976 = vpop.f32.mrf.mxu0
      %977 = vdwg.mxu0
      %v978 = vld [vmem:[%s278] sm:$0xff]
      %v979 = vld [vmem:[%s278 + $0x8] sm:$0xff]
      %v980 = vld [vmem:[%s278 + $0x10] sm:$0xff]
      %v981 = vld [vmem:[%s278 + $0x18] sm:$0xff]
      %v982 = vld [vmem:[%s278 + $0x20] sm:$0xff]
      %v983 = vld [vmem:[%s278 + $0x28] sm:$0xff]
      %v984 = vld [vmem:[%s278 + $0x30] sm:$0xff]
      %v985 = vld [vmem:[%s278 + $0x38] sm:$0xff]
      %994 = vrot.lane.b32.xlu0 %v948, 120
      %v995 = vpop.permute.xlu0 %994
      %996 = vrot.lane.b32.xlu0 %v951, 120
      %v997 = vpop.permute.xlu0 %996
      %998 = vrot.lane.b32.xlu0 %v956, 120
      %v999 = vpop.permute.xlu0 %998
      %1000 = vrot.lane.b32.xlu0 %v959, 120
      %v1001 = vpop.permute.xlu0 %1000
      %1002 = vrot.lane.b32.xlu0 %v964, 120
      %v1003 = vpop.permute.xlu0 %1002
      %1004 = vrot.lane.b32.xlu0 %v967, 120
      %v1005 = vpop.permute.xlu0 %1004
      %1006 = vrot.lane.b32.xlu0 %v972, 120
      %v1007 = vpop.permute.xlu0 %1006
      %1008 = vrot.lane.b32.xlu0 %v975, 120
      %v1009 = vpop.permute.xlu0 %1008
      %v1018 = vadd.f32 %v978, %v995
      %v1019 = vadd.f32 %v979, %v997
      %v1020 = vadd.f32 %v980, %v999
      %v1021 = vadd.f32 %v981, %v1001
      %v1022 = vadd.f32 %v982, %v1003
      %v1023 = vadd.f32 %v983, %v1005
      %v1024 = vadd.f32 %v984, %v1007
      %v1025 = vadd.f32 %v985, %v1009
      %1026 = vst.msk [vmem:[%s278] sm:$0xff] %vm291, %v1018
      %1027 = vst.msk [vmem:[%s278 + $0x8] sm:$0xff] %vm291, %v1019
      %1028 = vst.msk [vmem:[%s278 + $0x10] sm:$0xff] %vm291, %v1020
      %1029 = vst.msk [vmem:[%s278 + $0x18] sm:$0xff] %vm291, %v1021
      %1030 = vst.msk [vmem:[%s278 + $0x20] sm:$0xff] %vm291, %v1022
      %1031 = vst.msk [vmem:[%s278 + $0x28] sm:$0xff] %vm291, %v1023
      %1032 = vst.msk [vmem:[%s278 + $0x30] sm:$0xff] %vm291, %v1024
      %1033 = vst.msk [vmem:[%s278 + $0x38] sm:$0xff] %vm291, %v1025
      %v1034 = vadd.f32 %v280, %v948
      %v1035 = vadd.f32 %v281, %v951
      %v1036 = vadd.f32 %v282, %v956
      %v1037 = vadd.f32 %v283, %v959
      %v1038 = vadd.f32 %v284, %v964
      %v1039 = vadd.f32 %v285, %v967
      %v1040 = vadd.f32 %v286, %v972
      %v1041 = vadd.f32 %v287, %v975
      %v1042 = vmul.f32 %v1034, 0.70710677
      %v1043 = vmul.f32 %v1035, 0.70710677
      %v1044 = vmul.f32 %v1036, 0.70710677
      %v1045 = vmul.f32 %v1037, 0.70710677
      %v1046 = vmul.f32 %v1038, 0.70710677
      %v1047 = vmul.f32 %v1039, 0.70710677
      %v1048 = vmul.f32 %v1040, 0.70710677
      %v1049 = vmul.f32 %v1041, 0.70710677
      %v1050 = vpack.c.bf16 %v1043, %v1042
      %v1051 = vpack.c.bf16 %v1045, %v1044
      %v1052 = vpack.c.bf16 %v1047, %v1046
      %v1053 = vpack.c.bf16 %v1049, %v1048
      %v1058 = vunpack.c.l.b16 %v1050
      %v1059 = vunpack.c.h.b16 %v1050
      %v1060 = vunpack.c.l.b16 %v1051
      %v1061 = vunpack.c.h.b16 %v1051
      %v1062 = vunpack.c.l.b16 %v1052
      %v1063 = vunpack.c.h.b16 %v1052
      %v1064 = vunpack.c.l.b16 %v1053
      %v1065 = vunpack.c.h.b16 %v1053
      %v1066 = vpack.c.b16 %v1058, %v1058
      %v1067 = vpack.c.b16 %v1059, %v1059
      %v1068 = vpack.c.b16 %v1060, %v1060
      %v1069 = vpack.c.b16 %v1061, %v1061
      %v1070 = vpack.c.b16 %v1062, %v1062
      %v1071 = vpack.c.b16 %v1063, %v1063
      %v1072 = vpack.c.b16 %v1064, %v1064
      %v1073 = vpack.c.b16 %v1065, %v1065
      %1082 = vst.msk [vmem:[#allocation2 + $0x4] sm:$0xf] %vm288, %v1066
      %1083 = vst.msk [vmem:[#allocation2 + $0x8] sm:$0xf] %vm288, %v1067
      %1084 = vst.msk [vmem:[#allocation2 + $0xc] sm:$0xf] %vm288, %v1068
      %1085 = vst.msk [vmem:[#allocation2 + $0x10] sm:$0xf] %vm288, %v1069
      %1086 = vst.msk [vmem:[#allocation2 + $0x14] sm:$0xf] %vm288, %v1070
      %1087 = vst.msk [vmem:[#allocation2 + $0x18] sm:$0xf] %vm288, %v1071
      %1088 = vst.msk [vmem:[#allocation2 + $0x1c] sm:$0xf] %vm288, %v1072
      %1089 = vst.msk [vmem:[#allocation2 + $0x20] sm:$0xf] %vm288, %v1073
      %1090 = vrot.lane.b32.xlu0 %v1066, 8
      %v1091 = vpop.permute.xlu0 %1090
      %1092 = vrot.lane.b32.xlu0 %v1067, 8
      %v1093 = vpop.permute.xlu0 %1092
      %1094 = vrot.lane.b32.xlu0 %v1068, 8
      %v1095 = vpop.permute.xlu0 %1094
      %1096 = vrot.lane.b32.xlu0 %v1069, 8
      %v1097 = vpop.permute.xlu0 %1096
      %1098 = vrot.lane.b32.xlu0 %v1070, 8
      %v1099 = vpop.permute.xlu0 %1098
      %1100 = vrot.lane.b32.xlu0 %v1071, 8
      %v1101 = vpop.permute.xlu0 %1100
      %1102 = vrot.lane.b32.xlu0 %v1072, 8
      %v1103 = vpop.permute.xlu0 %1102
      %1104 = vrot.lane.b32.xlu0 %v1073, 8
      %v1105 = vpop.permute.xlu0 %1104
      %1114 = vst.msk [vmem:[#allocation3] sm:$0xf] %vm364, %v1091
      %1115 = vst.msk [vmem:[#allocation3 + $0x4] sm:$0xf] %vm364, %v1093
      %1116 = vst.msk [vmem:[#allocation3 + $0x8] sm:$0xf] %vm364, %v1095
      %1117 = vst.msk [vmem:[#allocation3 + $0xc] sm:$0xf] %vm364, %v1097
      %1118 = vst.msk [vmem:[#allocation3 + $0x10] sm:$0xf] %vm364, %v1099
      %1119 = vst.msk [vmem:[#allocation3 + $0x14] sm:$0xf] %vm364, %v1101
      %1120 = vst.msk [vmem:[#allocation3 + $0x18] sm:$0xf] %vm364, %v1103
      %1121 = vst.msk [vmem:[#allocation3 + $0x1c] sm:$0xf] %vm364, %v1105
      %v1122 = vld [vmem:[#allocation2] sm:$0x8]
      %v1123 = vld [vmem:[#allocation2 + $0x4] sm:$0xf]
      %v1124 = vld [vmem:[#allocation2 + $0x8] sm:$0xf]
      %v1125 = vld [vmem:[#allocation2 + $0xc] sm:$0xf]
      %v1126 = vld [vmem:[#allocation2 + $0x10] sm:$0xf]
      %v1127 = vld [vmem:[#allocation2 + $0x14] sm:$0xf]
      %v1128 = vld [vmem:[#allocation2 + $0x18] sm:$0xf]
      %v1129 = vld [vmem:[#allocation2 + $0x1c] sm:$0xf]
      %v1130 = vld [vmem:[#allocation2 + $0x20] sm:$0x7]
      %vm1140 = vcmask 1040384
      %vm1141 = vcmask 1044484
      %vm1142 = vmor %vm1140, %vm1141
      %v1143 = vrot.slane %v1122, 7
      %v1144 = vrot.slane %v1143, 4
      %v1145 = vrot.slane %v1123, 7
      %v1146 = vsel %vm1142, %v1144, %v1145
      %v1147 = vrot.slane %v1145, 4
      %v1148 = vrot.slane %v1124, 7
      %v1149 = vsel %vm1142, %v1147, %v1148
      %v1150 = vrot.slane %v1148, 4
      %v1151 = vrot.slane %v1125, 7
      %v1152 = vsel %vm1142, %v1150, %v1151
      %v1153 = vrot.slane %v1151, 4
      %v1154 = vrot.slane %v1126, 7
      %v1155 = vsel %vm1142, %v1153, %v1154
      %v1156 = vrot.slane %v1154, 4
      %v1157 = vrot.slane %v1127, 7
      %v1158 = vsel %vm1142, %v1156, %v1157
      %v1159 = vrot.slane %v1157, 4
      %v1160 = vrot.slane %v1128, 7
      %v1161 = vsel %vm1142, %v1159, %v1160
      %v1162 = vrot.slane %v1160, 4
      %v1163 = vrot.slane %v1129, 7
      %v1164 = vsel %vm1142, %v1162, %v1163
      %v1165 = vrot.slane %v1163, 4
      %v1166 = vrot.slane %v1130, 7
      %v1167 = vsel %vm1142, %v1165, %v1166
      %1176 = vst.msk [vmem:[#allocation3] sm:$0xf] %vm288, %v1146
      %1177 = vst.msk [vmem:[#allocation3 + $0x4] sm:$0xf] %vm288, %v1149
      %1178 = vst.msk [vmem:[#allocation3 + $0x8] sm:$0xf] %vm288, %v1152
      %1179 = vst.msk [vmem:[#allocation3 + $0xc] sm:$0xf] %vm288, %v1155
      %1180 = vst.msk [vmem:[#allocation3 + $0x10] sm:$0xf] %vm288, %v1158
      %1181 = vst.msk [vmem:[#allocation3 + $0x14] sm:$0xf] %vm288, %v1161
      %1182 = vst.msk [vmem:[#allocation3 + $0x18] sm:$0xf] %vm288, %v1164
      %1183 = vst.msk [vmem:[#allocation3 + $0x1c] sm:$0xf] %vm288, %v1167
      %v1184 = vld [vmem:[#allocation2 + $0x4] sm:$0xe]
      %v1185 = vld [vmem:[#allocation2 + $0x8] sm:$0xf]
      %v1186 = vld [vmem:[#allocation2 + $0xc] sm:$0xf]
      %v1187 = vld [vmem:[#allocation2 + $0x10] sm:$0xf]
      %v1188 = vld [vmem:[#allocation2 + $0x14] sm:$0xf]
      %v1189 = vld [vmem:[#allocation2 + $0x18] sm:$0xf]
      %v1190 = vld [vmem:[#allocation2 + $0x1c] sm:$0xf]
      %v1191 = vld [vmem:[#allocation2 + $0x20] sm:$0xf]
      %v1192 = vld [vmem:[#allocation2 + $0x24] sm:$0x1]
      %vm1202 = vcmask 1042432
      %vm1203 = vcmask 1046532
      %vm1204 = vmor %vm1202, %vm1203
      %v1205 = vrot.slane %v1184, 5
      %v1206 = vrot.slane %v1205, 4
      %v1207 = vrot.slane %v1185, 5
      %v1208 = vsel %vm1204, %v1206, %v1207
      %v1209 = vrot.slane %v1207, 4
      %v1210 = vrot.slane %v1186, 5
      %v1211 = vsel %vm1204, %v1209, %v1210
      %v1212 = vrot.slane %v1210, 4
      %v1213 = vrot.slane %v1187, 5
      %v1214 = vsel %vm1204, %v1212, %v1213
      %v1215 = vrot.slane %v1213, 4
      %v1216 = vrot.slane %v1188, 5
      %v1217 = vsel %vm1204, %v1215, %v1216
      %v1218 = vrot.slane %v1216, 4
      %v1219 = vrot.slane %v1189, 5
      %v1220 = vsel %vm1204, %v1218, %v1219
      %v1221 = vrot.slane %v1219, 4
      %v1222 = vrot.slane %v1190, 5
      %v1223 = vsel %vm1204, %v1221, %v1222
      %v1224 = vrot.slane %v1222, 4
      %v1225 = vrot.slane %v1191, 5
      %v1226 = vsel %vm1204, %v1224, %v1225
      %v1227 = vrot.slane %v1225, 4
      %v1228 = vrot.slane %v1192, 5
      %v1229 = vsel %vm1204, %v1227, %v1228
      %1230 = vrot.lane.b32.xlu0 %v1208, 16
      %v1231 = vpop.permute.xlu0 %1230
      %1232 = vrot.lane.b32.xlu0 %v1211, 16
      %v1233 = vpop.permute.xlu0 %1232
      %1234 = vrot.lane.b32.xlu0 %v1214, 16
      %v1235 = vpop.permute.xlu0 %1234
      %1236 = vrot.lane.b32.xlu0 %v1217, 16
      %v1237 = vpop.permute.xlu0 %1236
      %1238 = vrot.lane.b32.xlu0 %v1220, 16
      %v1239 = vpop.permute.xlu0 %1238
      %1240 = vrot.lane.b32.xlu0 %v1223, 16
      %v1241 = vpop.permute.xlu0 %1240
      %1242 = vrot.lane.b32.xlu0 %v1226, 16
      %v1243 = vpop.permute.xlu0 %1242
      %1244 = vrot.lane.b32.xlu0 %v1229, 16
      %v1245 = vpop.permute.xlu0 %1244
      %1254 = vst.msk [vmem:[#allocation3] sm:$0xf] %vm597, %v1231
      %1255 = vst.msk [vmem:[#allocation3 + $0x4] sm:$0xf] %vm597, %v1233
      %1256 = vst.msk [vmem:[#allocation3 + $0x8] sm:$0xf] %vm597, %v1235
      %1257 = vst.msk [vmem:[#allocation3 + $0xc] sm:$0xf] %vm597, %v1237
      %1258 = vst.msk [vmem:[#allocation3 + $0x10] sm:$0xf] %vm597, %v1239
      %1259 = vst.msk [vmem:[#allocation3 + $0x14] sm:$0xf] %vm597, %v1241
      %1260 = vst.msk [vmem:[#allocation3 + $0x18] sm:$0xf] %vm597, %v1243
      %1261 = vst.msk [vmem:[#allocation3 + $0x1c] sm:$0xf] %vm597, %v1245
      %v1262 = vld [vmem:[#allocation3] sm:$0xf]
      %v1263 = vld [vmem:[#allocation3 + $0x4] sm:$0xf]
      %v1264 = vld [vmem:[#allocation3 + $0x8] sm:$0xf]
      %v1265 = vld [vmem:[#allocation3 + $0xc] sm:$0xf]
      %v1266 = vld [vmem:[#allocation3 + $0x10] sm:$0xf]
      %v1267 = vld [vmem:[#allocation3 + $0x14] sm:$0xf]
      %v1268 = vld [vmem:[#allocation3 + $0x18] sm:$0xf]
      %v1269 = vld [vmem:[#allocation3 + $0x1c] sm:$0xf]
      %s1270 = scalar_lea.vmem %s1, 12
      %v1271 = vld [vmem:[%s1270] sm:$0xf]
      %v1272 = vld [vmem:[%s1270 + $0x4] sm:$0xf]
      %v1273 = vld [vmem:[%s1270 + $0x8] sm:$0xf]
      %s1274 = scalar_lea.vmem %s2, 1
      %v1275 = vld [vmem:[%s1274] sm:$0x1]
      %v1277 = vlaneseq
      %v1278 = vshrl.u32 %v1277, 7
      %v1279 = vsub.s32 0, %v1278
      %v1280 = vrot.slane %v1275, %v1279
      %v1290 = vunpack.c.l.b16 %v1262
      %v1291 = vunpack.c.l.b16 %v1263
      %v1292 = vunpack.c.l.b16 %v1264
      %v1293 = vunpack.c.l.b16 %v1265
      %v1294 = vunpack.c.l.b16 %v1266
      %v1295 = vunpack.c.l.b16 %v1267
      %v1296 = vunpack.c.l.b16 %v1268
      %v1297 = vunpack.c.l.b16 %v1269
      %v1298 = vpack.c.b16 %v1291, %v1290
      %v1299 = vpack.c.b16 %v1293, %v1292
      %v1300 = vpack.c.b16 %v1295, %v1294
      %v1301 = vpack.c.b16 %v1297, %v1296
      %v1305 = vunpack.c.l.b16 %v1271
      %v1306 = vunpack.c.l.b16 %v1272
      %v1307 = vunpack.c.l.b16 %v1273
      %v1308 = vpack.c.b16 %v1306, %v1305
      %v1309 = vpack.c.b16 %v1307, %v1307
      %v1312 = vsel %vm653, %v1298, 0
      %v1315 = vsel %vm653, %v1299, 0
      %v1318 = vsel %vm653, %v1300, 0
      %v1321 = vsel %vm653, %v1301, 0
      %v1324 = vsel %vm666, %v1309, 0
      %1326 = vmatprep.subr.bf16.mxu0 0
      %1327 = vmatpush1.bf16.msra.mxu0 0
      %1328 = vmatprep.subr.bf16.mxu0 0
      %1329 = vmatpush1.bf16.msra.mxu0 0
      %1330 = vmatprep.subr.bf16.mxu0 0
      %1331 = vmatpush1.bf16.msra.mxu0 0
      %1332 = vmatprep.subr.bf16.mxu0 0
      %1333 = vmatpush1.bf16.msra.mxu0 0
      %1334 = vmatprep.subr.bf16.mxu0 0
      %1335 = vmatpush1.bf16.msra.mxu0 0
      %1336 = vmatprep.subr.bf16.mxu0 0
      %1337 = vmatpush1.bf16.msra.mxu0 0
      %1338 = vmatprep.subr.bf16.mxu0 0
      %1339 = vmatpush1.bf16.msra.mxu0 %v1324
      %1340 = vmatprep.subr.bf16.mxu0 0
      %1341 = vmatpush1.bf16.msra.mxu0 %v1308
      %1342 = vmatprep.subr.bf16.mxu0 0
      %1343 = vmatpush2.bf16.msra.mxu0 0
      %1344 = vmatprep.subr.bf16.mxu0 0
      %1345 = vmatpush2.bf16.msra.mxu0 0
      %1346 = vmatprep.subr.bf16.mxu0 0
      %1347 = vmatpush2.bf16.msra.mxu0 0
      %1348 = vmatprep.subr.bf16.mxu0 0
      %1349 = vmatpush2.bf16.msra.mxu0 0
      %1350 = vmatprep.subr.bf16.mxu0 0
      %1351 = vmatpush2.bf16.msra.mxu0 0
      %1352 = vmatprep.subr.bf16.mxu0 0
      %1353 = vmatpush2.bf16.msra.mxu0 0
      %1354 = vmatprep.subr.bf16.mxu0 0
      %1355 = vmatpush2.bf16.msra.mxu0 0
      %1356 = vmatprep.subr.bf16.mxu0 0
      %1357 = vmatpush2.bf16.msra.mxu0 0
      %1358 = vmatprep.mubr.bf16.mxu0 0
      %1359 = vmatmul.mubr.bf16.gmra.mxu0 %v1312
      %v1360 = vpop.f32.mrf.mxu0
      %v1361 = vadd.f32 %v1280, %v1360
      %v1362 = vpop.f32.mrf.mxu0
      %v1363 = vpop.f32.mrf.mxu0
      %v1364 = vadd.f32 %v1280, %v1363
      %v1365 = vpop.f32.mrf.mxu0
      %1366 = vmatprep.mubr.bf16.mxu0 0
      %1367 = vmatmul.mubr.bf16.gmra.mxu0 %v1315
      %v1368 = vpop.f32.mrf.mxu0
      %v1369 = vadd.f32 %v1280, %v1368
      %v1370 = vpop.f32.mrf.mxu0
      %v1371 = vpop.f32.mrf.mxu0
      %v1372 = vadd.f32 %v1280, %v1371
      %v1373 = vpop.f32.mrf.mxu0
      %1374 = vmatprep.mubr.bf16.mxu0 0
      %1375 = vmatmul.mubr.bf16.gmra.mxu0 %v1318
      %v1376 = vpop.f32.mrf.mxu0
      %v1377 = vadd.f32 %v1280, %v1376
      %v1378 = vpop.f32.mrf.mxu0
      %v1379 = vpop.f32.mrf.mxu0
      %v1380 = vadd.f32 %v1280, %v1379
      %v1381 = vpop.f32.mrf.mxu0
      %1382 = vmatprep.mubr.bf16.mxu0 0
      %1383 = vmatmul.mubr.bf16.gmra.mxu0 %v1321
      %v1384 = vpop.f32.mrf.mxu0
      %v1385 = vadd.f32 %v1280, %v1384
      %v1386 = vpop.f32.mrf.mxu0
      %v1387 = vpop.f32.mrf.mxu0
      %v1388 = vadd.f32 %v1280, %v1387
      %v1389 = vpop.f32.mrf.mxu0
      %1390 = vdwg.mxu0
      %s1391 = scalar_lea.vmem %s3, 12
      %v1392 = vld [vmem:[%s1391] sm:$0xf]
      %v1393 = vld [vmem:[%s1391 + $0x4] sm:$0xf]
      %v1394 = vld [vmem:[%s1391 + $0x8] sm:$0xf]
      %s1395 = scalar_lea.vmem %s4, 1
      %v1396 = vld [vmem:[%s1395] sm:$0x1]
      %v1398 = vlaneseq
      %v1399 = vshrl.u32 %v1398, 7
      %v1400 = vsub.s32 0, %v1399
      %v1401 = vrot.slane %v1396, %v1400
      %v1406 = vunpack.c.l.b16 %v1392
      %v1407 = vunpack.c.l.b16 %v1393
      %v1408 = vunpack.c.l.b16 %v1394
      %v1409 = vpack.c.b16 %v1407, %v1406
      %v1410 = vpack.c.b16 %v1408, %v1408
      %v1413 = vsel %vm666, %v1410, 0
      %1415 = vmatprep.subr.bf16.mxu0 0
      %1416 = vmatpush1.bf16.msra.mxu0 0
      %1417 = vmatprep.subr.bf16.mxu0 0
      %1418 = vmatpush1.bf16.msra.mxu0 0
      %1419 = vmatprep.subr.bf16.mxu0 0
      %1420 = vmatpush1.bf16.msra.mxu0 0
      %1421 = vmatprep.subr.bf16.mxu0 0
      %1422 = vmatpush1.bf16.msra.mxu0 0
      %1423 = vmatprep.subr.bf16.mxu0 0
      %1424 = vmatpush1.bf16.msra.mxu0 0
      %1425 = vmatprep.subr.bf16.mxu0 0
      %1426 = vmatpush1.bf16.msra.mxu0 0
      %1427 = vmatprep.subr.bf16.mxu0 0
      %1428 = vmatpush1.bf16.msra.mxu0 %v1413
      %1429 = vmatprep.subr.bf16.mxu0 0
      %1430 = vmatpush1.bf16.msra.mxu0 %v1409
      %1431 = vmatprep.subr.bf16.mxu0 0
      %1432 = vmatpush2.bf16.msra.mxu0 0
      %1433 = vmatprep.subr.bf16.mxu0 0
      %1434 = vmatpush2.bf16.msra.mxu0 0
      %1435 = vmatprep.subr.bf16.mxu0 0
      %1436 = vmatpush2.bf16.msra.mxu0 0
      %1437 = vmatprep.subr.bf16.mxu0 0
      %1438 = vmatpush2.bf16.msra.mxu0 0
      %1439 = vmatprep.subr.bf16.mxu0 0
      %1440 = vmatpush2.bf16.msra.mxu0 0
      %1441 = vmatprep.subr.bf16.mxu0 0
      %1442 = vmatpush2.bf16.msra.mxu0 0
      %1443 = vmatprep.subr.bf16.mxu0 0
      %1444 = vmatpush2.bf16.msra.mxu0 0
      %1445 = vmatprep.subr.bf16.mxu0 0
      %1446 = vmatpush2.bf16.msra.mxu0 0
      %1447 = vmatprep.mubr.bf16.mxu0 0
      %1448 = vmatmul.mubr.bf16.gmra.mxu0 %v1312
      %v1449 = vpop.f32.mrf.mxu0
      %v1450 = vadd.f32 %v1401, %v1449
      %v1451 = vpop.f32.mrf.mxu0
      %v1452 = vpop.f32.mrf.mxu0
      %v1453 = vadd.f32 %v1401, %v1452
      %v1454 = vpop.f32.mrf.mxu0
      %1455 = vmatprep.mubr.bf16.mxu0 0
      %1456 = vmatmul.mubr.bf16.gmra.mxu0 %v1315
      %v1457 = vpop.f32.mrf.mxu0
      %v1458 = vadd.f32 %v1401, %v1457
      %v1459 = vpop.f32.mrf.mxu0
      %v1460 = vpop.f32.mrf.mxu0
      %v1461 = vadd.f32 %v1401, %v1460
      %v1462 = vpop.f32.mrf.mxu0
      %1463 = vmatprep.mubr.bf16.mxu0 0
      %1464 = vmatmul.mubr.bf16.gmra.mxu0 %v1318
      %v1465 = vpop.f32.mrf.mxu0
      %v1466 = vadd.f32 %v1401, %v1465
      %v1467 = vpop.f32.mrf.mxu0
      %v1468 = vpop.f32.mrf.mxu0
      %v1469 = vadd.f32 %v1401, %v1468
      %v1470 = vpop.f32.mrf.mxu0
      %1471 = vmatprep.mubr.bf16.mxu0 0
      %1472 = vmatmul.mubr.bf16.gmra.mxu0 %v1321
      %v1473 = vpop.f32.mrf.mxu0
      %v1474 = vadd.f32 %v1401, %v1473
      %v1475 = vpop.f32.mrf.mxu0
      %v1476 = vpop.f32.mrf.mxu0
      %v1477 = vadd.f32 %v1401, %v1476
      %v1478 = vpop.f32.mrf.mxu0
      %1479 = vdwg.mxu0
      %v1480 = vtanh.pop %v1361
      %v1481 = vtanh.pop %v1364
      %v1482 = vtanh.pop %v1369
      %v1483 = vtanh.pop %v1372
      %v1484 = vtanh.pop %v1377
      %v1485 = vtanh.pop %v1380
      %v1486 = vtanh.pop %v1385
      %v1487 = vtanh.pop %v1388
      %v1488 = vxor.u32 %v1450, 2147483648
      %v1489 = vxor.u32 %v1453, 2147483648
      %v1490 = vxor.u32 %v1458, 2147483648
      %v1491 = vxor.u32 %v1461, 2147483648
      %v1492 = vxor.u32 %v1466, 2147483648
      %v1493 = vxor.u32 %v1469, 2147483648
      %v1494 = vxor.u32 %v1474, 2147483648
      %v1495 = vxor.u32 %v1477, 2147483648
      %v1496 = vmul.f32 %v1488, 1.442695
      %v1497 = vpow.pop %v1496
      %v1498 = vmul.f32 %v1489, 1.442695
      %v1499 = vpow.pop %v1498
      %v1500 = vmul.f32 %v1490, 1.442695
      %v1501 = vpow.pop %v1500
      %v1502 = vmul.f32 %v1491, 1.442695
      %v1503 = vpow.pop %v1502
      %v1504 = vmul.f32 %v1492, 1.442695
      %v1505 = vpow.pop %v1504
      %v1506 = vmul.f32 %v1493, 1.442695
      %v1507 = vpow.pop %v1506
      %v1508 = vmul.f32 %v1494, 1.442695
      %v1509 = vpow.pop %v1508
      %v1510 = vmul.f32 %v1495, 1.442695
      %v1511 = vpow.pop %v1510
      %v1512 = vadd.f32 %v1497, 1.0
      %v1513 = vadd.f32 %v1499, 1.0
      %v1514 = vadd.f32 %v1501, 1.0
      %v1515 = vadd.f32 %v1503, 1.0
      %v1516 = vadd.f32 %v1505, 1.0
      %v1517 = vadd.f32 %v1507, 1.0
      %v1518 = vadd.f32 %v1509, 1.0
      %v1519 = vadd.f32 %v1511, 1.0
      %v1520 = vrcp.pop %v1512
      %v1521 = vmul.f32 1.0, %v1520
      %v1522 = vrcp.pop %v1513
      %v1523 = vmul.f32 1.0, %v1522
      %v1524 = vrcp.pop %v1514
      %v1525 = vmul.f32 1.0, %v1524
      %v1526 = vrcp.pop %v1515
      %v1527 = vmul.f32 1.0, %v1526
      %v1528 = vrcp.pop %v1516
      %v1529 = vmul.f32 1.0, %v1528
      %v1530 = vrcp.pop %v1517
      %v1531 = vmul.f32 1.0, %v1530
      %v1532 = vrcp.pop %v1518
      %v1533 = vmul.f32 1.0, %v1532
      %v1534 = vrcp.pop %v1519
      %v1535 = vmul.f32 1.0, %v1534
      %v1536 = vmul.f32 %v1480, %v1521
      %v1537 = vmul.f32 %v1481, %v1523
      %v1538 = vmul.f32 %v1482, %v1525
      %v1539 = vmul.f32 %v1483, %v1527
      %v1540 = vmul.f32 %v1484, %v1529
      %v1541 = vmul.f32 %v1485, %v1531
      %v1542 = vmul.f32 %v1486, %v1533
      %v1543 = vmul.f32 %v1487, %v1535
      %v1544 = vpack.c.bf16 %v1537, %v1536
      %v1545 = vpack.c.bf16 %v1539, %v1538
      %v1546 = vpack.c.bf16 %v1541, %v1540
      %v1547 = vpack.c.bf16 %v1543, %v1542
      %s1548 = scalar_lea.vmem %s5, 4
      %v1549 = vld [vmem:[%s1548] sm:$0xf]
      %s1550 = scalar_lea.vmem %s6, 1
      %v1551 = vld [vmem:[%s1550] sm:$0x1]
      %v1553 = vlaneseq
      %v1554 = vshrl.u32 %v1553, 7
      %v1555 = vsub.s32 0, %v1554
      %v1556 = vrot.slane %v1551, %v1555
      %v1559 = vsel %vm291, %v1544, 0
      %v1562 = vsel %vm291, %v1545, 0
      %v1565 = vsel %vm291, %v1546, 0
      %v1568 = vsel %vm291, %v1547, 0
      %v1571 = vsel %vm666, %v1549, 0
      %1573 = vmatprep.subr.bf16.mxu0 0
      %1574 = vmatpush1.bf16.msra.mxu0 0
      %1575 = vmatprep.subr.bf16.mxu0 0
      %1576 = vmatpush1.bf16.msra.mxu0 0
      %1577 = vmatprep.subr.bf16.mxu0 0
      %1578 = vmatpush1.bf16.msra.mxu0 0
      %1579 = vmatprep.subr.bf16.mxu0 0
      %1580 = vmatpush1.bf16.msra.mxu0 0
      %1581 = vmatprep.subr.bf16.mxu0 0
      %1582 = vmatpush1.bf16.msra.mxu0 0
      %1583 = vmatprep.subr.bf16.mxu0 0
      %1584 = vmatpush1.bf16.msra.mxu0 0
      %1585 = vmatprep.subr.bf16.mxu0 0
      %1586 = vmatpush1.bf16.msra.mxu0 0
      %1587 = vmatprep.subr.bf16.mxu0 0
      %1588 = vmatpush1.bf16.msra.mxu0 %v1571
      %1589 = vmatprep.subr.bf16.mxu0 0
      %1590 = vmatpush2.bf16.msra.mxu0 0
      %1591 = vmatprep.subr.bf16.mxu0 0
      %1592 = vmatpush2.bf16.msra.mxu0 0
      %1593 = vmatprep.subr.bf16.mxu0 0
      %1594 = vmatpush2.bf16.msra.mxu0 0
      %1595 = vmatprep.subr.bf16.mxu0 0
      %1596 = vmatpush2.bf16.msra.mxu0 0
      %1597 = vmatprep.subr.bf16.mxu0 0
      %1598 = vmatpush2.bf16.msra.mxu0 0
      %1599 = vmatprep.subr.bf16.mxu0 0
      %1600 = vmatpush2.bf16.msra.mxu0 0
      %1601 = vmatprep.subr.bf16.mxu0 0
      %1602 = vmatpush2.bf16.msra.mxu0 0
      %1603 = vmatprep.subr.bf16.mxu0 0
      %1604 = vmatpush2.bf16.msra.mxu0 0
      %1605 = vmatprep.mubr.bf16.mxu0 0
      %1606 = vmatmul.mubr.bf16.gmra.mxu0 %v1559
      %v1607 = vpop.f32.mrf.mxu0
      %v1608 = vadd.f32 %v1556, %v1607
      %v1609 = vpop.f32.mrf.mxu0
      %v1610 = vpop.f32.mrf.mxu0
      %v1611 = vadd.f32 %v1556, %v1610
      %v1612 = vpop.f32.mrf.mxu0
      %1613 = vmatprep.mubr.bf16.mxu0 0
      %1614 = vmatmul.mubr.bf16.gmra.mxu0 %v1562
      %v1615 = vpop.f32.mrf.mxu0
      %v1616 = vadd.f32 %v1556, %v1615
      %v1617 = vpop.f32.mrf.mxu0
      %v1618 = vpop.f32.mrf.mxu0
      %v1619 = vadd.f32 %v1556, %v1618
      %v1620 = vpop.f32.mrf.mxu0
      %1621 = vmatprep.mubr.bf16.mxu0 0
      %1622 = vmatmul.mubr.bf16.gmra.mxu0 %v1565
      %v1623 = vpop.f32.mrf.mxu0
      %v1624 = vadd.f32 %v1556, %v1623
      %v1625 = vpop.f32.mrf.mxu0
      %v1626 = vpop.f32.mrf.mxu0
      %v1627 = vadd.f32 %v1556, %v1626
      %v1628 = vpop.f32.mrf.mxu0
      %1629 = vmatprep.mubr.bf16.mxu0 0
      %1630 = vmatmul.mubr.bf16.gmra.mxu0 %v1568
      %v1631 = vpop.f32.mrf.mxu0
      %v1632 = vadd.f32 %v1556, %v1631
      %v1633 = vpop.f32.mrf.mxu0
      %v1634 = vpop.f32.mrf.mxu0
      %v1635 = vadd.f32 %v1556, %v1634
      %v1636 = vpop.f32.mrf.mxu0
      %1637 = vdwg.mxu0
      %v1638 = vld [vmem:[%s278] sm:$0xff]
      %v1639 = vld [vmem:[%s278 + $0x8] sm:$0xff]
      %v1640 = vld [vmem:[%s278 + $0x10] sm:$0xff]
      %v1641 = vld [vmem:[%s278 + $0x18] sm:$0xff]
      %v1642 = vld [vmem:[%s278 + $0x20] sm:$0xff]
      %v1643 = vld [vmem:[%s278 + $0x28] sm:$0xff]
      %v1644 = vld [vmem:[%s278 + $0x30] sm:$0xff]
      %v1645 = vld [vmem:[%s278 + $0x38] sm:$0xff]
      %1654 = vrot.lane.b32.xlu0 %v1608, 120
      %v1655 = vpop.permute.xlu0 %1654
      %1656 = vrot.lane.b32.xlu0 %v1611, 120
      %v1657 = vpop.permute.xlu0 %1656
      %1658 = vrot.lane.b32.xlu0 %v1616, 120
      %v1659 = vpop.permute.xlu0 %1658
      %1660 = vrot.lane.b32.xlu0 %v1619, 120
      %v1661 = vpop.permute.xlu0 %1660
      %1662 = vrot.lane.b32.xlu0 %v1624, 120
      %v1663 = vpop.permute.xlu0 %1662
      %1664 = vrot.lane.b32.xlu0 %v1627, 120
      %v1665 = vpop.permute.xlu0 %1664
      %1666 = vrot.lane.b32.xlu0 %v1632, 120
      %v1667 = vpop.permute.xlu0 %1666
      %1668 = vrot.lane.b32.xlu0 %v1635, 120
      %v1669 = vpop.permute.xlu0 %1668
      %v1678 = vadd.f32 %v1638, %v1655
      %v1679 = vadd.f32 %v1639, %v1657
      %v1680 = vadd.f32 %v1640, %v1659
      %v1681 = vadd.f32 %v1641, %v1661
      %v1682 = vadd.f32 %v1642, %v1663
      %v1683 = vadd.f32 %v1643, %v1665
      %v1684 = vadd.f32 %v1644, %v1667
      %v1685 = vadd.f32 %v1645, %v1669
      %1686 = vst.msk [vmem:[%s278] sm:$0xff] %vm291, %v1678
      %1687 = vst.msk [vmem:[%s278 + $0x8] sm:$0xff] %vm291, %v1679
      %1688 = vst.msk [vmem:[%s278 + $0x10] sm:$0xff] %vm291, %v1680
      %1689 = vst.msk [vmem:[%s278 + $0x18] sm:$0xff] %vm291, %v1681
      %1690 = vst.msk [vmem:[%s278 + $0x20] sm:$0xff] %vm291, %v1682
      %1691 = vst.msk [vmem:[%s278 + $0x28] sm:$0xff] %vm291, %v1683
      %1692 = vst.msk [vmem:[%s278 + $0x30] sm:$0xff] %vm291, %v1684
      %1693 = vst.msk [vmem:[%s278 + $0x38] sm:$0xff] %vm291, %v1685
      %v1694 = vadd.f32 %v1042, %v1608
      %v1695 = vadd.f32 %v1043, %v1611
      %v1696 = vadd.f32 %v1044, %v1616
      %v1697 = vadd.f32 %v1045, %v1619
      %v1698 = vadd.f32 %v1046, %v1624
      %v1699 = vadd.f32 %v1047, %v1627
      %v1700 = vadd.f32 %v1048, %v1632
      %v1701 = vadd.f32 %v1049, %v1635
      %v1702 = vmul.f32 %v1694, 0.70710677
      %v1703 = vmul.f32 %v1695, 0.70710677
      %v1704 = vmul.f32 %v1696, 0.70710677
      %v1705 = vmul.f32 %v1697, 0.70710677
      %v1706 = vmul.f32 %v1698, 0.70710677
      %v1707 = vmul.f32 %v1699, 0.70710677
      %v1708 = vmul.f32 %v1700, 0.70710677
      %v1709 = vmul.f32 %v1701, 0.70710677
      %v1710 = vpack.c.bf16 %v1703, %v1702
      %v1711 = vpack.c.bf16 %v1705, %v1704
      %v1712 = vpack.c.bf16 %v1707, %v1706
      %v1713 = vpack.c.bf16 %v1709, %v1708
      %v1718 = vunpack.c.l.b16 %v1710
      %v1719 = vunpack.c.h.b16 %v1710
      %v1720 = vunpack.c.l.b16 %v1711
      %v1721 = vunpack.c.h.b16 %v1711
      %v1722 = vunpack.c.l.b16 %v1712
      %v1723 = vunpack.c.h.b16 %v1712
      %v1724 = vunpack.c.l.b16 %v1713
      %v1725 = vunpack.c.h.b16 %v1713
      %v1726 = vpack.c.b16 %v1718, %v1718
      %v1727 = vpack.c.b16 %v1719, %v1719
      %v1728 = vpack.c.b16 %v1720, %v1720
      %v1729 = vpack.c.b16 %v1721, %v1721
      %v1730 = vpack.c.b16 %v1722, %v1722
      %v1731 = vpack.c.b16 %v1723, %v1723
      %v1732 = vpack.c.b16 %v1724, %v1724
      %v1733 = vpack.c.b16 %v1725, %v1725
      %1742 = vst.msk [vmem:[#allocation2 + $0x4] sm:$0xf] %vm288, %v1726
      %1743 = vst.msk [vmem:[#allocation2 + $0x8] sm:$0xf] %vm288, %v1727
      %1744 = vst.msk [vmem:[#allocation2 + $0xc] sm:$0xf] %vm288, %v1728
      %1745 = vst.msk [vmem:[#allocation2 + $0x10] sm:$0xf] %vm288, %v1729
      %1746 = vst.msk [vmem:[#allocation2 + $0x14] sm:$0xf] %vm288, %v1730
      %1747 = vst.msk [vmem:[#allocation2 + $0x18] sm:$0xf] %vm288, %v1731
      %1748 = vst.msk [vmem:[#allocation2 + $0x1c] sm:$0xf] %vm288, %v1732
      %1749 = vst.msk [vmem:[#allocation2 + $0x20] sm:$0xf] %vm288, %v1733
      %1750 = vrot.lane.b32.xlu0 %v1726, 8
      %v1751 = vpop.permute.xlu0 %1750
      %1752 = vrot.lane.b32.xlu0 %v1727, 8
      %v1753 = vpop.permute.xlu0 %1752
      %1754 = vrot.lane.b32.xlu0 %v1728, 8
      %v1755 = vpop.permute.xlu0 %1754
      %1756 = vrot.lane.b32.xlu0 %v1729, 8
      %v1757 = vpop.permute.xlu0 %1756
      %1758 = vrot.lane.b32.xlu0 %v1730, 8
      %v1759 = vpop.permute.xlu0 %1758
      %1760 = vrot.lane.b32.xlu0 %v1731, 8
      %v1761 = vpop.permute.xlu0 %1760
      %1762 = vrot.lane.b32.xlu0 %v1732, 8
      %v1763 = vpop.permute.xlu0 %1762
      %1764 = vrot.lane.b32.xlu0 %v1733, 8
      %v1765 = vpop.permute.xlu0 %1764
      %1774 = vst.msk [vmem:[#allocation3] sm:$0xf] %vm364, %v1751
      %1775 = vst.msk [vmem:[#allocation3 + $0x4] sm:$0xf] %vm364, %v1753
      %1776 = vst.msk [vmem:[#allocation3 + $0x8] sm:$0xf] %vm364, %v1755
      %1777 = vst.msk [vmem:[#allocation3 + $0xc] sm:$0xf] %vm364, %v1757
      %1778 = vst.msk [vmem:[#allocation3 + $0x10] sm:$0xf] %vm364, %v1759
      %1779 = vst.msk [vmem:[#allocation3 + $0x14] sm:$0xf] %vm364, %v1761
      %1780 = vst.msk [vmem:[#allocation3 + $0x18] sm:$0xf] %vm364, %v1763
      %1781 = vst.msk [vmem:[#allocation3 + $0x1c] sm:$0xf] %vm364, %v1765
      %v1782 = vld [vmem:[#allocation2] sm:$0x8]
      %v1783 = vld [vmem:[#allocation2 + $0x4] sm:$0xf]
      %v1784 = vld [vmem:[#allocation2 + $0x8] sm:$0xf]
      %v1785 = vld [vmem:[#allocation2 + $0xc] sm:$0xf]
      %v1786 = vld [vmem:[#allocation2 + $0x10] sm:$0xf]
      %v1787 = vld [vmem:[#allocation2 + $0x14] sm:$0xf]
      %v1788 = vld [vmem:[#allocation2 + $0x18] sm:$0xf]
      %v1789 = vld [vmem:[#allocation2 + $0x1c] sm:$0xf]
      %v1790 = vld [vmem:[#allocation2 + $0x20] sm:$0xf]
      %v1792 = vshrl.u32 %v1782, 16
      %v1794 = vrot.slane %v1792, 7
      %v1795 = vrot.slane %v1794, 4
      %v1797 = vshrl.u32 %v1783, 16
      %v1799 = vrot.slane %v1797, 7
      %v1800 = vshll.u32 %v1783, 16
      %v1802 = vor.u32 %v1799, %v1800
      %v1803 = vsel %vm384, %v1795, %v1802
      %v1804 = vrot.slane %v1799, 4
      %v1806 = vshrl.u32 %v1784, 16
      %v1808 = vrot.slane %v1806, 7
      %v1809 = vshll.u32 %v1784, 16
      %v1811 = vor.u32 %v1808, %v1809
      %v1812 = vsel %vm384, %v1804, %v1811
      %v1813 = vrot.slane %v1808, 4
      %v1815 = vshrl.u32 %v1785, 16
      %v1817 = vrot.slane %v1815, 7
      %v1818 = vshll.u32 %v1785, 16
      %v1820 = vor.u32 %v1817, %v1818
      %v1821 = vsel %vm384, %v1813, %v1820
      %v1822 = vrot.slane %v1817, 4
      %v1824 = vshrl.u32 %v1786, 16
      %v1826 = vrot.slane %v1824, 7
      %v1827 = vshll.u32 %v1786, 16
      %v1829 = vor.u32 %v1826, %v1827
      %v1830 = vsel %vm384, %v1822, %v1829
      %v1831 = vrot.slane %v1826, 4
      %v1833 = vshrl.u32 %v1787, 16
      %v1835 = vrot.slane %v1833, 7
      %v1836 = vshll.u32 %v1787, 16
      %v1838 = vor.u32 %v1835, %v1836
      %v1839 = vsel %vm384, %v1831, %v1838
      %v1840 = vrot.slane %v1835, 4
      %v1842 = vshrl.u32 %v1788, 16
      %v1844 = vrot.slane %v1842, 7
      %v1845 = vshll.u32 %v1788, 16
      %v1847 = vor.u32 %v1844, %v1845
      %v1848 = vsel %vm384, %v1840, %v1847
      %v1849 = vrot.slane %v1844, 4
      %v1851 = vshrl.u32 %v1789, 16
      %v1853 = vrot.slane %v1851, 7
      %v1854 = vshll.u32 %v1789, 16
      %v1856 = vor.u32 %v1853, %v1854
      %v1857 = vsel %vm384, %v1849, %v1856
      %v1858 = vrot.slane %v1853, 4
      %v1860 = vshrl.u32 %v1790, 16
      %v1862 = vrot.slane %v1860, 7
      %v1863 = vshll.u32 %v1790, 16
      %v1865 = vor.u32 %v1862, %v1863
      %v1866 = vsel %vm384, %v1858, %v1865
      %1875 = vst.msk [vmem:[#allocation3] sm:$0xf] %vm288, %v1803
      %1876 = vst.msk [vmem:[#allocation3 + $0x4] sm:$0xf] %vm288, %v1812
      %1877 = vst.msk [vmem:[#allocation3 + $0x8] sm:$0xf] %vm288, %v1821
      %1878 = vst.msk [vmem:[#allocation3 + $0xc] sm:$0xf] %vm288, %v1830
      %1879 = vst.msk [vmem:[#allocation3 + $0x10] sm:$0xf] %vm288, %v1839
      %1880 = vst.msk [vmem:[#allocation3 + $0x14] sm:$0xf] %vm288, %v1848
      %1881 = vst.msk [vmem:[#allocation3 + $0x18] sm:$0xf] %vm288, %v1857
      %1882 = vst.msk [vmem:[#allocation3 + $0x1c] sm:$0xf] %vm288, %v1866
      %v1883 = vld [vmem:[#allocation2 + $0x4] sm:$0xf]
      %v1884 = vld [vmem:[#allocation2 + $0x8] sm:$0xf]
      %v1885 = vld [vmem:[#allocation2 + $0xc] sm:$0xf]
      %v1886 = vld [vmem:[#allocation2 + $0x10] sm:$0xf]
      %v1887 = vld [vmem:[#allocation2 + $0x14] sm:$0xf]
      %v1888 = vld [vmem:[#allocation2 + $0x18] sm:$0xf]
      %v1889 = vld [vmem:[#allocation2 + $0x1c] sm:$0xf]
      %v1890 = vld [vmem:[#allocation2 + $0x20] sm:$0xf]
      %v1891 = vld [vmem:[#allocation2 + $0x24] sm:$0x1]
      %v1893 = vshrl.u32 %v1883, 16
      %v1895 = vrot.slane %v1893, 4
      %v1896 = vshll.u32 %v1883, 16
      %v1898 = vrot.slane %v1896, 5
      %v1899 = vor.u32 %v1895, %v1898
      %v1900 = vrot.slane %v1899, 4
      %v1902 = vshll.u32 %v1884, 16
      %v1904 = vrot.slane %v1902, 5
      %v1905 = vsel %vm488, %v1900, %v1904
      %v1906 = vshrl.u32 %v1884, 16
      %v1908 = vrot.slane %v1906, 4
      %v1909 = vor.u32 %v1908, %v1904
      %v1910 = vrot.slane %v1909, 4
      %v1912 = vshll.u32 %v1885, 16
      %v1914 = vrot.slane %v1912, 5
      %v1915 = vsel %vm488, %v1910, %v1914
      %v1916 = vshrl.u32 %v1885, 16
      %v1918 = vrot.slane %v1916, 4
      %v1919 = vor.u32 %v1918, %v1914
      %v1920 = vrot.slane %v1919, 4
      %v1922 = vshll.u32 %v1886, 16
      %v1924 = vrot.slane %v1922, 5
      %v1925 = vsel %vm488, %v1920, %v1924
      %v1926 = vshrl.u32 %v1886, 16
      %v1928 = vrot.slane %v1926, 4
      %v1929 = vor.u32 %v1928, %v1924
      %v1930 = vrot.slane %v1929, 4
      %v1932 = vshll.u32 %v1887, 16
      %v1934 = vrot.slane %v1932, 5
      %v1935 = vsel %vm488, %v1930, %v1934
      %v1936 = vshrl.u32 %v1887, 16
      %v1938 = vrot.slane %v1936, 4
      %v1939 = vor.u32 %v1938, %v1934
      %v1940 = vrot.slane %v1939, 4
      %v1942 = vshll.u32 %v1888, 16
      %v1944 = vrot.slane %v1942, 5
      %v1945 = vsel %vm488, %v1940, %v1944
      %v1946 = vshrl.u32 %v1888, 16
      %v1948 = vrot.slane %v1946, 4
      %v1949 = vor.u32 %v1948, %v1944
      %v1950 = vrot.slane %v1949, 4
      %v1952 = vshll.u32 %v1889, 16
      %v1954 = vrot.slane %v1952, 5
      %v1955 = vsel %vm488, %v1950, %v1954
      %v1956 = vshrl.u32 %v1889, 16
      %v1958 = vrot.slane %v1956, 4
      %v1959 = vor.u32 %v1958, %v1954
      %v1960 = vrot.slane %v1959, 4
      %v1962 = vshll.u32 %v1890, 16
      %v1964 = vrot.slane %v1962, 5
      %v1965 = vsel %vm488, %v1960, %v1964
      %v1966 = vshrl.u32 %v1890, 16
      %v1968 = vrot.slane %v1966, 4
      %v1969 = vor.u32 %v1968, %v1964
      %v1970 = vrot.slane %v1969, 4
      %v1972 = vshll.u32 %v1891, 16
      %v1974 = vrot.slane %v1972, 5
      %v1975 = vsel %vm488, %v1970, %v1974
      %1976 = vrot.lane.b32.xlu0 %v1905, 16
      %v1977 = vpop.permute.xlu0 %1976
      %1978 = vrot.lane.b32.xlu0 %v1915, 16
      %v1979 = vpop.permute.xlu0 %1978
      %1980 = vrot.lane.b32.xlu0 %v1925, 16
      %v1981 = vpop.permute.xlu0 %1980
      %1982 = vrot.lane.b32.xlu0 %v1935, 16
      %v1983 = vpop.permute.xlu0 %1982
      %1984 = vrot.lane.b32.xlu0 %v1945, 16
      %v1985 = vpop.permute.xlu0 %1984
      %1986 = vrot.lane.b32.xlu0 %v1955, 16
      %v1987 = vpop.permute.xlu0 %1986
      %1988 = vrot.lane.b32.xlu0 %v1965, 16
      %v1989 = vpop.permute.xlu0 %1988
      %1990 = vrot.lane.b32.xlu0 %v1975, 16
      %v1991 = vpop.permute.xlu0 %1990
      %2000 = vst.msk [vmem:[#allocation3] sm:$0xf] %vm597, %v1977
      %2001 = vst.msk [vmem:[#allocation3 + $0x4] sm:$0xf] %vm597, %v1979
      %2002 = vst.msk [vmem:[#allocation3 + $0x8] sm:$0xf] %vm597, %v1981
      %2003 = vst.msk [vmem:[#allocation3 + $0xc] sm:$0xf] %vm597, %v1983
      %2004 = vst.msk [vmem:[#allocation3 + $0x10] sm:$0xf] %vm597, %v1985
      %2005 = vst.msk [vmem:[#allocation3 + $0x14] sm:$0xf] %vm597, %v1987
      %2006 = vst.msk [vmem:[#allocation3 + $0x18] sm:$0xf] %vm597, %v1989
      %2007 = vst.msk [vmem:[#allocation3 + $0x1c] sm:$0xf] %vm597, %v1991
      %v2008 = vld [vmem:[#allocation3] sm:$0xf]
      %v2009 = vld [vmem:[#allocation3 + $0x4] sm:$0xf]
      %v2010 = vld [vmem:[#allocation3 + $0x8] sm:$0xf]
      %v2011 = vld [vmem:[#allocation3 + $0xc] sm:$0xf]
      %v2012 = vld [vmem:[#allocation3 + $0x10] sm:$0xf]
      %v2013 = vld [vmem:[#allocation3 + $0x14] sm:$0xf]
      %v2014 = vld [vmem:[#allocation3 + $0x18] sm:$0xf]
      %v2015 = vld [vmem:[#allocation3 + $0x1c] sm:$0xf]
      %s2016 = scalar_lea.vmem %s1, 24
      %v2017 = vld [vmem:[%s2016] sm:$0xf]
      %v2018 = vld [vmem:[%s2016 + $0x4] sm:$0xf]
      %v2019 = vld [vmem:[%s2016 + $0x8] sm:$0xf]
      %s2020 = scalar_lea.vmem %s2, 2
      %v2021 = vld [vmem:[%s2020] sm:$0x1]
      %v2023 = vlaneseq
      %v2024 = vshrl.u32 %v2023, 7
      %v2025 = vsub.s32 0, %v2024
      %v2026 = vrot.slane %v2021, %v2025
      %v2036 = vunpack.c.l.b16 %v2008
      %v2037 = vunpack.c.l.b16 %v2009
      %v2038 = vunpack.c.l.b16 %v2010
      %v2039 = vunpack.c.l.b16 %v2011
      %v2040 = vunpack.c.l.b16 %v2012
      %v2041 = vunpack.c.l.b16 %v2013
      %v2042 = vunpack.c.l.b16 %v2014
      %v2043 = vunpack.c.l.b16 %v2015
      %v2044 = vpack.c.b16 %v2037, %v2036
      %v2045 = vpack.c.b16 %v2039, %v2038
      %v2046 = vpack.c.b16 %v2041, %v2040
      %v2047 = vpack.c.b16 %v2043, %v2042
      %v2051 = vunpack.c.l.b16 %v2017
      %v2052 = vunpack.c.l.b16 %v2018
      %v2053 = vunpack.c.l.b16 %v2019
      %v2054 = vpack.c.b16 %v2052, %v2051
      %v2055 = vpack.c.b16 %v2053, %v2053
      %v2058 = vsel %vm653, %v2044, 0
      %v2061 = vsel %vm653, %v2045, 0
      %v2064 = vsel %vm653, %v2046, 0
      %v2067 = vsel %vm653, %v2047, 0
      %v2070 = vsel %vm666, %v2055, 0
      %2072 = vmatprep.subr.bf16.mxu0 0
      %2073 = vmatpush1.bf16.msra.mxu0 0
      %2074 = vmatprep.subr.bf16.mxu0 0
      %2075 = vmatpush1.bf16.msra.mxu0 0
      %2076 = vmatprep.subr.bf16.mxu0 0
      %2077 = vmatpush1.bf16.msra.mxu0 0
      %2078 = vmatprep.subr.bf16.mxu0 0
      %2079 = vmatpush1.bf16.msra.mxu0 0
      %2080 = vmatprep.subr.bf16.mxu0 0
      %2081 = vmatpush1.bf16.msra.mxu0 0
      %2082 = vmatprep.subr.bf16.mxu0 0
      %2083 = vmatpush1.bf16.msra.mxu0 0
      %2084 = vmatprep.subr.bf16.mxu0 0
      %2085 = vmatpush1.bf16.msra.mxu0 %v2070
      %2086 = vmatprep.subr.bf16.mxu0 0
      %2087 = vmatpush1.bf16.msra.mxu0 %v2054
      %2088 = vmatprep.subr.bf16.mxu0 0
      %2089 = vmatpush2.bf16.msra.mxu0 0
      %2090 = vmatprep.subr.bf16.mxu0 0
      %2091 = vmatpush2.bf16.msra.mxu0 0
      %2092 = vmatprep.subr.bf16.mxu0 0
      %2093 = vmatpush2.bf16.msra.mxu0 0
      %2094 = vmatprep.subr.bf16.mxu0 0
      %2095 = vmatpush2.bf16.msra.mxu0 0
      %2096 = vmatprep.subr.bf16.mxu0 0
      %2097 = vmatpush2.bf16.msra.mxu0 0
      %2098 = vmatprep.subr.bf16.mxu0 0
      %2099 = vmatpush2.bf16.msra.mxu0 0
      %2100 = vmatprep.subr.bf16.mxu0 0
      %2101 = vmatpush2.bf16.msra.mxu0 0
      %2102 = vmatprep.subr.bf16.mxu0 0
      %2103 = vmatpush2.bf16.msra.mxu0 0
      %2104 = vmatprep.mubr.bf16.mxu0 0
      %2105 = vmatmul.mubr.bf16.gmra.mxu0 %v2058
      %v2106 = vpop.f32.mrf.mxu0
      %v2107 = vadd.f32 %v2026, %v2106
      %v2108 = vpop.f32.mrf.mxu0
      %v2109 = vpop.f32.mrf.mxu0
      %v2110 = vadd.f32 %v2026, %v2109
      %v2111 = vpop.f32.mrf.mxu0
      %2112 = vmatprep.mubr.bf16.mxu0 0
      %2113 = vmatmul.mubr.bf16.gmra.mxu0 %v2061
      %v2114 = vpop.f32.mrf.mxu0
      %v2115 = vadd.f32 %v2026, %v2114
      %v2116 = vpop.f32.mrf.mxu0
      %v2117 = vpop.f32.mrf.mxu0
      %v2118 = vadd.f32 %v2026, %v2117
      %v2119 = vpop.f32.mrf.mxu0
      %2120 = vmatprep.mubr.bf16.mxu0 0
      %2121 = vmatmul.mubr.bf16.gmra.mxu0 %v2064
      %v2122 = vpop.f32.mrf.mxu0
      %v2123 = vadd.f32 %v2026, %v2122
      %v2124 = vpop.f32.mrf.mxu0
      %v2125 = vpop.f32.mrf.mxu0
      %v2126 = vadd.f32 %v2026, %v2125
      %v2127 = vpop.f32.mrf.mxu0
      %2128 = vmatprep.mubr.bf16.mxu0 0
      %2129 = vmatmul.mubr.bf16.gmra.mxu0 %v2067
      %v2130 = vpop.f32.mrf.mxu0
      %v2131 = vadd.f32 %v2026, %v2130
      %v2132 = vpop.f32.mrf.mxu0
      %v2133 = vpop.f32.mrf.mxu0
      %v2134 = vadd.f32 %v2026, %v2133
      %v2135 = vpop.f32.mrf.mxu0
      %2136 = vdwg.mxu0
      %s2137 = scalar_lea.vmem %s3, 24
      %v2138 = vld [vmem:[%s2137] sm:$0xf]
      %v2139 = vld [vmem:[%s2137 + $0x4] sm:$0xf]
      %v2140 = vld [vmem:[%s2137 + $0x8] sm:$0xf]
      %s2141 = scalar_lea.vmem %s4, 2
      %v2142 = vld [vmem:[%s2141] sm:$0x1]
      %v2144 = vlaneseq
      %v2145 = vshrl.u32 %v2144, 7
      %v2146 = vsub.s32 0, %v2145
      %v2147 = vrot.slane %v2142, %v2146
      %v2152 = vunpack.c.l.b16 %v2138
      %v2153 = vunpack.c.l.b16 %v2139
      %v2154 = vunpack.c.l.b16 %v2140
      %v2155 = vpack.c.b16 %v2153, %v2152
      %v2156 = vpack.c.b16 %v2154, %v2154
      %v2159 = vsel %vm666, %v2156, 0
      %2161 = vmatprep.subr.bf16.mxu0 0
      %2162 = vmatpush1.bf16.msra.mxu0 0
      %2163 = vmatprep.subr.bf16.mxu0 0
      %2164 = vmatpush1.bf16.msra.mxu0 0
      %2165 = vmatprep.subr.bf16.mxu0 0
      %2166 = vmatpush1.bf16.msra.mxu0 0
      %2167 = vmatprep.subr.bf16.mxu0 0
      %2168 = vmatpush1.bf16.msra.mxu0 0
      %2169 = vmatprep.subr.bf16.mxu0 0
      %2170 = vmatpush1.bf16.msra.mxu0 0
      %2171 = vmatprep.subr.bf16.mxu0 0
      %2172 = vmatpush1.bf16.msra.mxu0 0
      %2173 = vmatprep.subr.bf16.mxu0 0
      %2174 = vmatpush1.bf16.msra.mxu0 %v2159
      %2175 = vmatprep.subr.bf16.mxu0 0
      %2176 = vmatpush1.bf16.msra.mxu0 %v2155
      %2177 = vmatprep.subr.bf16.mxu0 0
      %2178 = vmatpush2.bf16.msra.mxu0 0
      %2179 = vmatprep.subr.bf16.mxu0 0
      %2180 = vmatpush2.bf16.msra.mxu0 0
      %2181 = vmatprep.subr.bf16.mxu0 0
      %2182 = vmatpush2.bf16.msra.mxu0 0
      %2183 = vmatprep.subr.bf16.mxu0 0
      %2184 = vmatpush2.bf16.msra.mxu0 0
      %2185 = vmatprep.subr.bf16.mxu0 0
      %2186 = vmatpush2.bf16.msra.mxu0 0
      %2187 = vmatprep.subr.bf16.mxu0 0
      %2188 = vmatpush2.bf16.msra.mxu0 0
      %2189 = vmatprep.subr.bf16.mxu0 0
      %2190 = vmatpush2.bf16.msra.mxu0 0
      %2191 = vmatprep.subr.bf16.mxu0 0
      %2192 = vmatpush2.bf16.msra.mxu0 0
      %2193 = vmatprep.mubr.bf16.mxu0 0
      %2194 = vmatmul.mubr.bf16.gmra.mxu0 %v2058
      %v2195 = vpop.f32.mrf.mxu0
      %v2196 = vadd.f32 %v2147, %v2195
      %v2197 = vpop.f32.mrf.mxu0
      %v2198 = vpop.f32.mrf.mxu0
      %v2199 = vadd.f32 %v2147, %v2198
      %v2200 = vpop.f32.mrf.mxu0
      %2201 = vmatprep.mubr.bf16.mxu0 0
      %2202 = vmatmul.mubr.bf16.gmra.mxu0 %v2061
      %v2203 = vpop.f32.mrf.mxu0
      %v2204 = vadd.f32 %v2147, %v2203
      %v2205 = vpop.f32.mrf.mxu0
      %v2206 = vpop.f32.mrf.mxu0
      %v2207 = vadd.f32 %v2147, %v2206
      %v2208 = vpop.f32.mrf.mxu0
      %2209 = vmatprep.mubr.bf16.mxu0 0
      %2210 = vmatmul.mubr.bf16.gmra.mxu0 %v2064
      %v2211 = vpop.f32.mrf.mxu0
      %v2212 = vadd.f32 %v2147, %v2211
      %v2213 = vpop.f32.mrf.mxu0
      %v2214 = vpop.f32.mrf.mxu0
      %v2215 = vadd.f32 %v2147, %v2214
      %v2216 = vpop.f32.mrf.mxu0
      %2217 = vmatprep.mubr.bf16.mxu0 0
      %2218 = vmatmul.mubr.bf16.gmra.mxu0 %v2067
      %v2219 = vpop.f32.mrf.mxu0
      %v2220 = vadd.f32 %v2147, %v2219
      %v2221 = vpop.f32.mrf.mxu0
      %v2222 = vpop.f32.mrf.mxu0
      %v2223 = vadd.f32 %v2147, %v2222
      %v2224 = vpop.f32.mrf.mxu0
      %2225 = vdwg.mxu0
      %v2226 = vtanh.pop %v2107
      %v2227 = vtanh.pop %v2110
      %v2228 = vtanh.pop %v2115
      %v2229 = vtanh.pop %v2118
      %v2230 = vtanh.pop %v2123
      %v2231 = vtanh.pop %v2126
      %v2232 = vtanh.pop %v2131
      %v2233 = vtanh.pop %v2134
      %v2234 = vxor.u32 %v2196, 2147483648
      %v2235 = vxor.u32 %v2199, 2147483648
      %v2236 = vxor.u32 %v2204, 2147483648
      %v2237 = vxor.u32 %v2207, 2147483648
      %v2238 = vxor.u32 %v2212, 2147483648
      %v2239 = vxor.u32 %v2215, 2147483648
      %v2240 = vxor.u32 %v2220, 2147483648
      %v2241 = vxor.u32 %v2223, 2147483648
      %v2242 = vmul.f32 %v2234, 1.442695
      %v2243 = vpow.pop %v2242
      %v2244 = vmul.f32 %v2235, 1.442695
      %v2245 = vpow.pop %v2244
      %v2246 = vmul.f32 %v2236, 1.442695
      %v2247 = vpow.pop %v2246
      %v2248 = vmul.f32 %v2237, 1.442695
      %v2249 = vpow.pop %v2248
      %v2250 = vmul.f32 %v2238, 1.442695
      %v2251 = vpow.pop %v2250
      %v2252 = vmul.f32 %v2239, 1.442695
      %v2253 = vpow.pop %v2252
      %v2254 = vmul.f32 %v2240, 1.442695
      %v2255 = vpow.pop %v2254
      %v2256 = vmul.f32 %v2241, 1.442695
      %v2257 = vpow.pop %v2256
      %v2258 = vadd.f32 %v2243, 1.0
      %v2259 = vadd.f32 %v2245, 1.0
      %v2260 = vadd.f32 %v2247, 1.0
      %v2261 = vadd.f32 %v2249, 1.0
      %v2262 = vadd.f32 %v2251, 1.0
      %v2263 = vadd.f32 %v2253, 1.0
      %v2264 = vadd.f32 %v2255, 1.0
      %v2265 = vadd.f32 %v2257, 1.0
      %v2266 = vrcp.pop %v2258
      %v2267 = vmul.f32 1.0, %v2266
      %v2268 = vrcp.pop %v2259
      %v2269 = vmul.f32 1.0, %v2268
      %v2270 = vrcp.pop %v2260
      %v2271 = vmul.f32 1.0, %v2270
      %v2272 = vrcp.pop %v2261
      %v2273 = vmul.f32 1.0, %v2272
      %v2274 = vrcp.pop %v2262
      %v2275 = vmul.f32 1.0, %v2274
      %v2276 = vrcp.pop %v2263
      %v2277 = vmul.f32 1.0, %v2276
      %v2278 = vrcp.pop %v2264
      %v2279 = vmul.f32 1.0, %v2278
      %v2280 = vrcp.pop %v2265
      %v2281 = vmul.f32 1.0, %v2280
      %v2282 = vmul.f32 %v2226, %v2267
      %v2283 = vmul.f32 %v2227, %v2269
      %v2284 = vmul.f32 %v2228, %v2271
      %v2285 = vmul.f32 %v2229, %v2273
      %v2286 = vmul.f32 %v2230, %v2275
      %v2287 = vmul.f32 %v2231, %v2277
      %v2288 = vmul.f32 %v2232, %v2279
      %v2289 = vmul.f32 %v2233, %v2281
      %v2290 = vpack.c.bf16 %v2283, %v2282
      %v2291 = vpack.c.bf16 %v2285, %v2284
      %v2292 = vpack.c.bf16 %v2287, %v2286
      %v2293 = vpack.c.bf16 %v2289, %v2288
      %s2294 = scalar_lea.vmem %s5, 8
      %v2295 = vld [vmem:[%s2294] sm:$0xf]
      %s2296 = scalar_lea.vmem %s6, 2
      %v2297 = vld [vmem:[%s2296] sm:$0x1]
      %v2299 = vlaneseq
      %v2300 = vshrl.u32 %v2299, 7
      %v2301 = vsub.s32 0, %v2300
      %v2302 = vrot.slane %v2297, %v2301
      %v2305 = vsel %vm291, %v2290, 0
      %v2308 = vsel %vm291, %v2291, 0
      %v2311 = vsel %vm291, %v2292, 0
      %v2314 = vsel %vm291, %v2293, 0
      %v2317 = vsel %vm666, %v2295, 0
      %2319 = vmatprep.subr.bf16.mxu0 0
      %2320 = vmatpush1.bf16.msra.mxu0 0
      %2321 = vmatprep.subr.bf16.mxu0 0
      %2322 = vmatpush1.bf16.msra.mxu0 0
      %2323 = vmatprep.subr.bf16.mxu0 0
      %2324 = vmatpush1.bf16.msra.mxu0 0
      %2325 = vmatprep.subr.bf16.mxu0 0
      %2326 = vmatpush1.bf16.msra.mxu0 0
      %2327 = vmatprep.subr.bf16.mxu0 0
      %2328 = vmatpush1.bf16.msra.mxu0 0
      %2329 = vmatprep.subr.bf16.mxu0 0
      %2330 = vmatpush1.bf16.msra.mxu0 0
      %2331 = vmatprep.subr.bf16.mxu0 0
      %2332 = vmatpush1.bf16.msra.mxu0 0
      %2333 = vmatprep.subr.bf16.mxu0 0
      %2334 = vmatpush1.bf16.msra.mxu0 %v2317
      %2335 = vmatprep.subr.bf16.mxu0 0
      %2336 = vmatpush2.bf16.msra.mxu0 0
      %2337 = vmatprep.subr.bf16.mxu0 0
      %2338 = vmatpush2.bf16.msra.mxu0 0
      %2339 = vmatprep.subr.bf16.mxu0 0
      %2340 = vmatpush2.bf16.msra.mxu0 0
      %2341 = vmatprep.subr.bf16.mxu0 0
      %2342 = vmatpush2.bf16.msra.mxu0 0
      %2343 = vmatprep.subr.bf16.mxu0 0
      %2344 = vmatpush2.bf16.msra.mxu0 0
      %2345 = vmatprep.subr.bf16.mxu0 0
      %2346 = vmatpush2.bf16.msra.mxu0 0
      %2347 = vmatprep.subr.bf16.mxu0 0
      %2348 = vmatpush2.bf16.msra.mxu0 0
      %2349 = vmatprep.subr.bf16.mxu0 0
      %2350 = vmatpush2.bf16.msra.mxu0 0
      %2351 = vmatprep.mubr.bf16.mxu0 0
      %2352 = vmatmul.mubr.bf16.gmra.mxu0 %v2305
      %v2353 = vpop.f32.mrf.mxu0
      %v2354 = vadd.f32 %v2302, %v2353
      %v2355 = vpop.f32.mrf.mxu0
      %v2356 = vpop.f32.mrf.mxu0
      %v2357 = vadd.f32 %v2302, %v2356
      %v2358 = vpop.f32.mrf.mxu0
      %2359 = vmatprep.mubr.bf16.mxu0 0
      %2360 = vmatmul.mubr.bf16.gmra.mxu0 %v2308
      %v2361 = vpop.f32.mrf.mxu0
      %v2362 = vadd.f32 %v2302, %v2361
      %v2363 = vpop.f32.mrf.mxu0
      %v2364 = vpop.f32.mrf.mxu0
      %v2365 = vadd.f32 %v2302, %v2364
      %v2366 = vpop.f32.mrf.mxu0
      %2367 = vmatprep.mubr.bf16.mxu0 0
      %2368 = vmatmul.mubr.bf16.gmra.mxu0 %v2311
      %v2369 = vpop.f32.mrf.mxu0
      %v2370 = vadd.f32 %v2302, %v2369
      %v2371 = vpop.f32.mrf.mxu0
      %v2372 = vpop.f32.mrf.mxu0
      %v2373 = vadd.f32 %v2302, %v2372
      %v2374 = vpop.f32.mrf.mxu0
      %2375 = vmatprep.mubr.bf16.mxu0 0
      %2376 = vmatmul.mubr.bf16.gmra.mxu0 %v2314
      %v2377 = vpop.f32.mrf.mxu0
      %v2378 = vadd.f32 %v2302, %v2377
      %v2379 = vpop.f32.mrf.mxu0
      %v2380 = vpop.f32.mrf.mxu0
      %v2381 = vadd.f32 %v2302, %v2380
      %v2382 = vpop.f32.mrf.mxu0
      %2383 = vdwg.mxu0
      %v2384 = vld [vmem:[%s278] sm:$0xff]
      %v2385 = vld [vmem:[%s278 + $0x8] sm:$0xff]
      %v2386 = vld [vmem:[%s278 + $0x10] sm:$0xff]
      %v2387 = vld [vmem:[%s278 + $0x18] sm:$0xff]
      %v2388 = vld [vmem:[%s278 + $0x20] sm:$0xff]
      %v2389 = vld [vmem:[%s278 + $0x28] sm:$0xff]
      %v2390 = vld [vmem:[%s278 + $0x30] sm:$0xff]
      %v2391 = vld [vmem:[%s278 + $0x38] sm:$0xff]
      %2400 = vrot.lane.b32.xlu0 %v2354, 120
      %v2401 = vpop.permute.xlu0 %2400
      %2402 = vrot.lane.b32.xlu0 %v2357, 120
      %v2403 = vpop.permute.xlu0 %2402
      %2404 = vrot.lane.b32.xlu0 %v2362, 120
      %v2405 = vpop.permute.xlu0 %2404
      %2406 = vrot.lane.b32.xlu0 %v2365, 120
      %v2407 = vpop.permute.xlu0 %2406
      %2408 = vrot.lane.b32.xlu0 %v2370, 120
      %v2409 = vpop.permute.xlu0 %2408
      %2410 = vrot.lane.b32.xlu0 %v2373, 120
      %v2411 = vpop.permute.xlu0 %2410
      %2412 = vrot.lane.b32.xlu0 %v2378, 120
      %v2413 = vpop.permute.xlu0 %2412
      %2414 = vrot.lane.b32.xlu0 %v2381, 120
      %v2415 = vpop.permute.xlu0 %2414
      %v2424 = vadd.f32 %v2384, %v2401
      %v2425 = vadd.f32 %v2385, %v2403
      %v2426 = vadd.f32 %v2386, %v2405
      %v2427 = vadd.f32 %v2387, %v2407
      %v2428 = vadd.f32 %v2388, %v2409
      %v2429 = vadd.f32 %v2389, %v2411
      %v2430 = vadd.f32 %v2390, %v2413
      %v2431 = vadd.f32 %v2391, %v2415
      %2432 = vst.msk [vmem:[%s278] sm:$0xff] %vm291, %v2424
      %2433 = vst.msk [vmem:[%s278 + $0x8] sm:$0xff] %vm291, %v2425
      %2434 = vst.msk [vmem:[%s278 + $0x10] sm:$0xff] %vm291, %v2426
      %2435 = vst.msk [vmem:[%s278 + $0x18] sm:$0xff] %vm291, %v2427
      %2436 = vst.msk [vmem:[%s278 + $0x20] sm:$0xff] %vm291, %v2428
      %2437 = vst.msk [vmem:[%s278 + $0x28] sm:$0xff] %vm291, %v2429
      %2438 = vst.msk [vmem:[%s278 + $0x30] sm:$0xff] %vm291, %v2430
      %2439 = vst.msk [vmem:[%s278 + $0x38] sm:$0xff] %vm291, %v2431
      %v2440 = vadd.f32 %v1702, %v2354
      %v2441 = vadd.f32 %v1703, %v2357
      %v2442 = vadd.f32 %v1704, %v2362
      %v2443 = vadd.f32 %v1705, %v2365
      %v2444 = vadd.f32 %v1706, %v2370
      %v2445 = vadd.f32 %v1707, %v2373
      %v2446 = vadd.f32 %v1708, %v2378
      %v2447 = vadd.f32 %v1709, %v2381
      %v2448 = vmul.f32 %v2440, 0.70710677
      %v2449 = vmul.f32 %v2441, 0.70710677
      %v2450 = vmul.f32 %v2442, 0.70710677
      %v2451 = vmul.f32 %v2443, 0.70710677
      %v2452 = vmul.f32 %v2444, 0.70710677
      %v2453 = vmul.f32 %v2445, 0.70710677
      %v2454 = vmul.f32 %v2446, 0.70710677
      %v2455 = vmul.f32 %v2447, 0.70710677
      %v2456 = vpack.c.bf16 %v2449, %v2448
      %v2457 = vpack.c.bf16 %v2451, %v2450
      %v2458 = vpack.c.bf16 %v2453, %v2452
      %v2459 = vpack.c.bf16 %v2455, %v2454
      %v2464 = vunpack.c.l.b16 %v2456
      %v2465 = vunpack.c.h.b16 %v2456
      %v2466 = vunpack.c.l.b16 %v2457
      %v2467 = vunpack.c.h.b16 %v2457
      %v2468 = vunpack.c.l.b16 %v2458
      %v2469 = vunpack.c.h.b16 %v2458
      %v2470 = vunpack.c.l.b16 %v2459
      %v2471 = vunpack.c.h.b16 %v2459
      %v2472 = vpack.c.b16 %v2464, %v2464
      %v2473 = vpack.c.b16 %v2465, %v2465
      %v2474 = vpack.c.b16 %v2466, %v2466
      %v2475 = vpack.c.b16 %v2467, %v2467
      %v2476 = vpack.c.b16 %v2468, %v2468
      %v2477 = vpack.c.b16 %v2469, %v2469
      %v2478 = vpack.c.b16 %v2470, %v2470
      %v2479 = vpack.c.b16 %v2471, %v2471
      %2488 = vst.msk [vmem:[#allocation2 + $0x4] sm:$0xf] %vm288, %v2472
      %2489 = vst.msk [vmem:[#allocation2 + $0x8] sm:$0xf] %vm288, %v2473
      %2490 = vst.msk [vmem:[#allocation2 + $0xc] sm:$0xf] %vm288, %v2474
      %2491 = vst.msk [vmem:[#allocation2 + $0x10] sm:$0xf] %vm288, %v2475
      %2492 = vst.msk [vmem:[#allocation2 + $0x14] sm:$0xf] %vm288, %v2476
      %2493 = vst.msk [vmem:[#allocation2 + $0x18] sm:$0xf] %vm288, %v2477
      %2494 = vst.msk [vmem:[#allocation2 + $0x1c] sm:$0xf] %vm288, %v2478
      %2495 = vst.msk [vmem:[#allocation2 + $0x20] sm:$0xf] %vm288, %v2479
      %2496 = vrot.lane.b32.xlu0 %v2472, 8
      %v2497 = vpop.permute.xlu0 %2496
      %2498 = vrot.lane.b32.xlu0 %v2473, 8
      %v2499 = vpop.permute.xlu0 %2498
      %2500 = vrot.lane.b32.xlu0 %v2474, 8
      %v2501 = vpop.permute.xlu0 %2500
      %2502 = vrot.lane.b32.xlu0 %v2475, 8
      %v2503 = vpop.permute.xlu0 %2502
      %2504 = vrot.lane.b32.xlu0 %v2476, 8
      %v2505 = vpop.permute.xlu0 %2504
      %2506 = vrot.lane.b32.xlu0 %v2477, 8
      %v2507 = vpop.permute.xlu0 %2506
      %2508 = vrot.lane.b32.xlu0 %v2478, 8
      %v2509 = vpop.permute.xlu0 %2508
      %2510 = vrot.lane.b32.xlu0 %v2479, 8
      %v2511 = vpop.permute.xlu0 %2510
      %2520 = vst.msk [vmem:[#allocation3] sm:$0xf] %vm364, %v2497
      %2521 = vst.msk [vmem:[#allocation3 + $0x4] sm:$0xf] %vm364, %v2499
      %2522 = vst.msk [vmem:[#allocation3 + $0x8] sm:$0xf] %vm364, %v2501
      %2523 = vst.msk [vmem:[#allocation3 + $0xc] sm:$0xf] %vm364, %v2503
      %2524 = vst.msk [vmem:[#allocation3 + $0x10] sm:$0xf] %vm364, %v2505
      %2525 = vst.msk [vmem:[#allocation3 + $0x14] sm:$0xf] %vm364, %v2507
      %2526 = vst.msk [vmem:[#allocation3 + $0x18] sm:$0xf] %vm364, %v2509
      %2527 = vst.msk [vmem:[#allocation3 + $0x1c] sm:$0xf] %vm364, %v2511
      %v2528 = vld [vmem:[#allocation2] sm:$0x8]
      %v2529 = vld [vmem:[#allocation2 + $0x4] sm:$0xf]
      %v2530 = vld [vmem:[#allocation2 + $0x8] sm:$0xf]
      %v2531 = vld [vmem:[#allocation2 + $0xc] sm:$0xf]
      %v2532 = vld [vmem:[#allocation2 + $0x10] sm:$0xf]
      %v2533 = vld [vmem:[#allocation2 + $0x14] sm:$0xf]
      %v2534 = vld [vmem:[#allocation2 + $0x18] sm:$0xf]
      %v2535 = vld [vmem:[#allocation2 + $0x1c] sm:$0xf]
      %v2536 = vld [vmem:[#allocation2 + $0x20] sm:$0x7]
      %v2546 = vrot.slane %v2528, 7
      %v2547 = vrot.slane %v2546, 4
      %v2548 = vrot.slane %v2529, 7
      %v2549 = vsel %vm1142, %v2547, %v2548
      %v2550 = vrot.slane %v2548, 4
      %v2551 = vrot.slane %v2530, 7
      %v2552 = vsel %vm1142, %v2550, %v2551
      %v2553 = vrot.slane %v2551, 4
      %v2554 = vrot.slane %v2531, 7
      %v2555 = vsel %vm1142, %v2553, %v2554
      %v2556 = vrot.slane %v2554, 4
      %v2557 = vrot.slane %v2532, 7
      %v2558 = vsel %vm1142, %v2556, %v2557
      %v2559 = vrot.slane %v2557, 4
      %v2560 = vrot.slane %v2533, 7
      %v2561 = vsel %vm1142, %v2559, %v2560
      %v2562 = vrot.slane %v2560, 4
      %v2563 = vrot.slane %v2534, 7
      %v2564 = vsel %vm1142, %v2562, %v2563
      %v2565 = vrot.slane %v2563, 4
      %v2566 = vrot.slane %v2535, 7
      %v2567 = vsel %vm1142, %v2565, %v2566
      %v2568 = vrot.slane %v2566, 4
      %v2569 = vrot.slane %v2536, 7
      %v2570 = vsel %vm1142, %v2568, %v2569
      %2579 = vst.msk [vmem:[#allocation3] sm:$0xf] %vm288, %v2549
      %2580 = vst.msk [vmem:[#allocation3 + $0x4] sm:$0xf] %vm288, %v2552
      %2581 = vst.msk [vmem:[#allocation3 + $0x8] sm:$0xf] %vm288, %v2555
      %2582 = vst.msk [vmem:[#allocation3 + $0xc] sm:$0xf] %vm288, %v2558
      %2583 = vst.msk [vmem:[#allocation3 + $0x10] sm:$0xf] %vm288, %v2561
      %2584 = vst.msk [vmem:[#allocation3 + $0x14] sm:$0xf] %vm288, %v2564
      %2585 = vst.msk [vmem:[#allocation3 + $0x18] sm:$0xf] %vm288, %v2567
      %2586 = vst.msk [vmem:[#allocation3 + $0x1c] sm:$0xf] %vm288, %v2570
      %v2587 = vld [vmem:[#allocation2 + $0x4] sm:$0xe]
      %v2588 = vld [vmem:[#allocation2 + $0x8] sm:$0xf]
      %v2589 = vld [vmem:[#allocation2 + $0xc] sm:$0xf]
      %v2590 = vld [vmem:[#allocation2 + $0x10] sm:$0xf]
      %v2591 = vld [vmem:[#allocation2 + $0x14] sm:$0xf]
      %v2592 = vld [vmem:[#allocation2 + $0x18] sm:$0xf]
      %v2593 = vld [vmem:[#allocation2 + $0x1c] sm:$0xf]
      %v2594 = vld [vmem:[#allocation2 + $0x20] sm:$0xf]
      %v2595 = vld [vmem:[#allocation2 + $0x24] sm:$0x1]
      %v2605 = vrot.slane %v2587, 5
      %v2606 = vrot.slane %v2605, 4
      %v2607 = vrot.slane %v2588, 5
      %v2608 = vsel %vm1204, %v2606, %v2607
      %v2609 = vrot.slane %v2607, 4
      %v2610 = vrot.slane %v2589, 5
      %v2611 = vsel %vm1204, %v2609, %v2610
      %v2612 = vrot.slane %v2610, 4
      %v2613 = vrot.slane %v2590, 5
      %v2614 = vsel %vm1204, %v2612, %v2613
      %v2615 = vrot.slane %v2613, 4
      %v2616 = vrot.slane %v2591, 5
      %v2617 = vsel %vm1204, %v2615, %v2616
      %v2618 = vrot.slane %v2616, 4
      %v2619 = vrot.slane %v2592, 5
      %v2620 = vsel %vm1204, %v2618, %v2619
      %v2621 = vrot.slane %v2619, 4
      %v2622 = vrot.slane %v2593, 5
      %v2623 = vsel %vm1204, %v2621, %v2622
      %v2624 = vrot.slane %v2622, 4
      %v2625 = vrot.slane %v2594, 5
      %v2626 = vsel %vm1204, %v2624, %v2625
      %v2627 = vrot.slane %v2625, 4
      %v2628 = vrot.slane %v2595, 5
      %v2629 = vsel %vm1204, %v2627, %v2628
      %2630 = vrot.lane.b32.xlu0 %v2608, 16
      %v2631 = vpop.permute.xlu0 %2630
      %2632 = vrot.lane.b32.xlu0 %v2611, 16
      %v2633 = vpop.permute.xlu0 %2632
      %2634 = vrot.lane.b32.xlu0 %v2614, 16
      %v2635 = vpop.permute.xlu0 %2634
      %2636 = vrot.lane.b32.xlu0 %v2617, 16
      %v2637 = vpop.permute.xlu0 %2636
      %2638 = vrot.lane.b32.xlu0 %v2620, 16
      %v2639 = vpop.permute.xlu0 %2638
      %2640 = vrot.lane.b32.xlu0 %v2623, 16
      %v2641 = vpop.permute.xlu0 %2640
      %2642 = vrot.lane.b32.xlu0 %v2626, 16
      %v2643 = vpop.permute.xlu0 %2642
      %2644 = vrot.lane.b32.xlu0 %v2629, 16
      %v2645 = vpop.permute.xlu0 %2644
      %2654 = vst.msk [vmem:[#allocation3] sm:$0xf] %vm597, %v2631
      %2655 = vst.msk [vmem:[#allocation3 + $0x4] sm:$0xf] %vm597, %v2633
      %2656 = vst.msk [vmem:[#allocation3 + $0x8] sm:$0xf] %vm597, %v2635
      %2657 = vst.msk [vmem:[#allocation3 + $0xc] sm:$0xf] %vm597, %v2637
      %2658 = vst.msk [vmem:[#allocation3 + $0x10] sm:$0xf] %vm597, %v2639
      %2659 = vst.msk [vmem:[#allocation3 + $0x14] sm:$0xf] %vm597, %v2641
      %2660 = vst.msk [vmem:[#allocation3 + $0x18] sm:$0xf] %vm597, %v2643
      %2661 = vst.msk [vmem:[#allocation3 + $0x1c] sm:$0xf] %vm597, %v2645
      %v2662 = vld [vmem:[#allocation3] sm:$0xf]
      %v2663 = vld [vmem:[#allocation3 + $0x4] sm:$0xf]
      %v2664 = vld [vmem:[#allocation3 + $0x8] sm:$0xf]
      %v2665 = vld [vmem:[#allocation3 + $0xc] sm:$0xf]
      %v2666 = vld [vmem:[#allocation3 + $0x10] sm:$0xf]
      %v2667 = vld [vmem:[#allocation3 + $0x14] sm:$0xf]
      %v2668 = vld [vmem:[#allocation3 + $0x18] sm:$0xf]
      %v2669 = vld [vmem:[#allocation3 + $0x1c] sm:$0xf]
      %s2670 = scalar_lea.vmem %s1, 36
      %v2671 = vld [vmem:[%s2670] sm:$0xf]
      %v2672 = vld [vmem:[%s2670 + $0x4] sm:$0xf]
      %v2673 = vld [vmem:[%s2670 + $0x8] sm:$0xf]
      %s2674 = scalar_lea.vmem %s2, 3
      %v2675 = vld [vmem:[%s2674] sm:$0x1]
      %v2677 = vlaneseq
      %v2678 = vshrl.u32 %v2677, 7
      %v2679 = vsub.s32 0, %v2678
      %v2680 = vrot.slane %v2675, %v2679
      %v2690 = vunpack.c.l.b16 %v2662
      %v2691 = vunpack.c.l.b16 %v2663
      %v2692 = vunpack.c.l.b16 %v2664
      %v2693 = vunpack.c.l.b16 %v2665
      %v2694 = vunpack.c.l.b16 %v2666
      %v2695 = vunpack.c.l.b16 %v2667
      %v2696 = vunpack.c.l.b16 %v2668
      %v2697 = vunpack.c.l.b16 %v2669
      %v2698 = vpack.c.b16 %v2691, %v2690
      %v2699 = vpack.c.b16 %v2693, %v2692
      %v2700 = vpack.c.b16 %v2695, %v2694
      %v2701 = vpack.c.b16 %v2697, %v2696
      %v2705 = vunpack.c.l.b16 %v2671
      %v2706 = vunpack.c.l.b16 %v2672
      %v2707 = vunpack.c.l.b16 %v2673
      %v2708 = vpack.c.b16 %v2706, %v2705
      %v2709 = vpack.c.b16 %v2707, %v2707
      %v2712 = vsel %vm653, %v2698, 0
      %v2715 = vsel %vm653, %v2699, 0
      %v2718 = vsel %vm653, %v2700, 0
      %v2721 = vsel %vm653, %v2701, 0
      %v2724 = vsel %vm666, %v2709, 0
      %2726 = vmatprep.subr.bf16.mxu0 0
      %2727 = vmatpush1.bf16.msra.mxu0 0
      %2728 = vmatprep.subr.bf16.mxu0 0
      %2729 = vmatpush1.bf16.msra.mxu0 0
      %2730 = vmatprep.subr.bf16.mxu0 0
      %2731 = vmatpush1.bf16.msra.mxu0 0
      %2732 = vmatprep.subr.bf16.mxu0 0
      %2733 = vmatpush1.bf16.msra.mxu0 0
      %2734 = vmatprep.subr.bf16.mxu0 0
      %2735 = vmatpush1.bf16.msra.mxu0 0
      %2736 = vmatprep.subr.bf16.mxu0 0
      %2737 = vmatpush1.bf16.msra.mxu0 0
      %2738 = vmatprep.subr.bf16.mxu0 0
      %2739 = vmatpush1.bf16.msra.mxu0 %v2724
      %2740 = vmatprep.subr.bf16.mxu0 0
      %2741 = vmatpush1.bf16.msra.mxu0 %v2708
      %2742 = vmatprep.subr.bf16.mxu0 0
      %2743 = vmatpush2.bf16.msra.mxu0 0
      %2744 = vmatprep.subr.bf16.mxu0 0
      %2745 = vmatpush2.bf16.msra.mxu0 0
      %2746 = vmatprep.subr.bf16.mxu0 0
      %2747 = vmatpush2.bf16.msra.mxu0 0
      %2748 = vmatprep.subr.bf16.mxu0 0
      %2749 = vmatpush2.bf16.msra.mxu0 0
      %2750 = vmatprep.subr.bf16.mxu0 0
      %2751 = vmatpush2.bf16.msra.mxu0 0
      %2752 = vmatprep.subr.bf16.mxu0 0
      %2753 = vmatpush2.bf16.msra.mxu0 0
      %2754 = vmatprep.subr.bf16.mxu0 0
      %2755 = vmatpush2.bf16.msra.mxu0 0
      %2756 = vmatprep.subr.bf16.mxu0 0
      %2757 = vmatpush2.bf16.msra.mxu0 0
      %2758 = vmatprep.mubr.bf16.mxu0 0
      %2759 = vmatmul.mubr.bf16.gmra.mxu0 %v2712
      %v2760 = vpop.f32.mrf.mxu0
      %v2761 = vadd.f32 %v2680, %v2760
      %v2762 = vpop.f32.mrf.mxu0
      %v2763 = vpop.f32.mrf.mxu0
      %v2764 = vadd.f32 %v2680, %v2763
      %v2765 = vpop.f32.mrf.mxu0
      %2766 = vmatprep.mubr.bf16.mxu0 0
      %2767 = vmatmul.mubr.bf16.gmra.mxu0 %v2715
      %v2768 = vpop.f32.mrf.mxu0
      %v2769 = vadd.f32 %v2680, %v2768
      %v2770 = vpop.f32.mrf.mxu0
      %v2771 = vpop.f32.mrf.mxu0
      %v2772 = vadd.f32 %v2680, %v2771
      %v2773 = vpop.f32.mrf.mxu0
      %2774 = vmatprep.mubr.bf16.mxu0 0
      %2775 = vmatmul.mubr.bf16.gmra.mxu0 %v2718
      %v2776 = vpop.f32.mrf.mxu0
      %v2777 = vadd.f32 %v2680, %v2776
      %v2778 = vpop.f32.mrf.mxu0
      %v2779 = vpop.f32.mrf.mxu0
      %v2780 = vadd.f32 %v2680, %v2779
      %v2781 = vpop.f32.mrf.mxu0
      %2782 = vmatprep.mubr.bf16.mxu0 0
      %2783 = vmatmul.mubr.bf16.gmra.mxu0 %v2721
      %v2784 = vpop.f32.mrf.mxu0
      %v2785 = vadd.f32 %v2680, %v2784
      %v2786 = vpop.f32.mrf.mxu0
      %v2787 = vpop.f32.mrf.mxu0
      %v2788 = vadd.f32 %v2680, %v2787
      %v2789 = vpop.f32.mrf.mxu0
      %2790 = vdwg.mxu0
      %s2791 = scalar_lea.vmem %s3, 36
      %v2792 = vld [vmem:[%s2791] sm:$0xf]
      %v2793 = vld [vmem:[%s2791 + $0x4] sm:$0xf]
      %v2794 = vld [vmem:[%s2791 + $0x8] sm:$0xf]
      %s2795 = scalar_lea.vmem %s4, 3
      %v2796 = vld [vmem:[%s2795] sm:$0x1]
      %v2798 = vlaneseq
      %v2799 = vshrl.u32 %v2798, 7
      %v2800 = vsub.s32 0, %v2799
      %v2801 = vrot.slane %v2796, %v2800
      %v2806 = vunpack.c.l.b16 %v2792
      %v2807 = vunpack.c.l.b16 %v2793
      %v2808 = vunpack.c.l.b16 %v2794
      %v2809 = vpack.c.b16 %v2807, %v2806
      %v2810 = vpack.c.b16 %v2808, %v2808
      %v2813 = vsel %vm666, %v2810, 0
      %2815 = vmatprep.subr.bf16.mxu0 0
      %2816 = vmatpush1.bf16.msra.mxu0 0
      %2817 = vmatprep.subr.bf16.mxu0 0
      %2818 = vmatpush1.bf16.msra.mxu0 0
      %2819 = vmatprep.subr.bf16.mxu0 0
      %2820 = vmatpush1.bf16.msra.mxu0 0
      %2821 = vmatprep.subr.bf16.mxu0 0
      %2822 = vmatpush1.bf16.msra.mxu0 0
      %2823 = vmatprep.subr.bf16.mxu0 0
      %2824 = vmatpush1.bf16.msra.mxu0 0
      %2825 = vmatprep.subr.bf16.mxu0 0
      %2826 = vmatpush1.bf16.msra.mxu0 0
      %2827 = vmatprep.subr.bf16.mxu0 0
      %2828 = vmatpush1.bf16.msra.mxu0 %v2813
      %2829 = vmatprep.subr.bf16.mxu0 0
      %2830 = vmatpush1.bf16.msra.mxu0 %v2809
      %2831 = vmatprep.subr.bf16.mxu0 0
      %2832 = vmatpush2.bf16.msra.mxu0 0
      %2833 = vmatprep.subr.bf16.mxu0 0
      %2834 = vmatpush2.bf16.msra.mxu0 0
      %2835 = vmatprep.subr.bf16.mxu0 0
      %2836 = vmatpush2.bf16.msra.mxu0 0
      %2837 = vmatprep.subr.bf16.mxu0 0
      %2838 = vmatpush2.bf16.msra.mxu0 0
      %2839 = vmatprep.subr.bf16.mxu0 0
      %2840 = vmatpush2.bf16.msra.mxu0 0
      %2841 = vmatprep.subr.bf16.mxu0 0
      %2842 = vmatpush2.bf16.msra.mxu0 0
      %2843 = vmatprep.subr.bf16.mxu0 0
      %2844 = vmatpush2.bf16.msra.mxu0 0
      %2845 = vmatprep.subr.bf16.mxu0 0
      %2846 = vmatpush2.bf16.msra.mxu0 0
      %2847 = vmatprep.mubr.bf16.mxu0 0
      %2848 = vmatmul.mubr.bf16.gmra.mxu0 %v2712
      %v2849 = vpop.f32.mrf.mxu0
      %v2850 = vadd.f32 %v2801, %v2849
      %v2851 = vpop.f32.mrf.mxu0
      %v2852 = vpop.f32.mrf.mxu0
      %v2853 = vadd.f32 %v2801, %v2852
      %v2854 = vpop.f32.mrf.mxu0
      %2855 = vmatprep.mubr.bf16.mxu0 0
      %2856 = vmatmul.mubr.bf16.gmra.mxu0 %v2715
      %v2857 = vpop.f32.mrf.mxu0
      %v2858 = vadd.f32 %v2801, %v2857
      %v2859 = vpop.f32.mrf.mxu0
      %v2860 = vpop.f32.mrf.mxu0
      %v2861 = vadd.f32 %v2801, %v2860
      %v2862 = vpop.f32.mrf.mxu0
      %2863 = vmatprep.mubr.bf16.mxu0 0
      %2864 = vmatmul.mubr.bf16.gmra.mxu0 %v2718
      %v2865 = vpop.f32.mrf.mxu0
      %v2866 = vadd.f32 %v2801, %v2865
      %v2867 = vpop.f32.mrf.mxu0
      %v2868 = vpop.f32.mrf.mxu0
      %v2869 = vadd.f32 %v2801, %v2868
      %v2870 = vpop.f32.mrf.mxu0
      %2871 = vmatprep.mubr.bf16.mxu0 0
      %2872 = vmatmul.mubr.bf16.gmra.mxu0 %v2721
      %v2873 = vpop.f32.mrf.mxu0
      %v2874 = vadd.f32 %v2801, %v2873
      %v2875 = vpop.f32.mrf.mxu0
      %v2876 = vpop.f32.mrf.mxu0
      %v2877 = vadd.f32 %v2801, %v2876
      %v2878 = vpop.f32.mrf.mxu0
      %2879 = vdwg.mxu0
      %v2880 = vtanh.pop %v2761
      %v2881 = vtanh.pop %v2764
      %v2882 = vtanh.pop %v2769
      %v2883 = vtanh.pop %v2772
      %v2884 = vtanh.pop %v2777
      %v2885 = vtanh.pop %v2780
      %v2886 = vtanh.pop %v2785
      %v2887 = vtanh.pop %v2788
      %v2888 = vxor.u32 %v2850, 2147483648
      %v2889 = vxor.u32 %v2853, 2147483648
      %v2890 = vxor.u32 %v2858, 2147483648
      %v2891 = vxor.u32 %v2861, 2147483648
      %v2892 = vxor.u32 %v2866, 2147483648
      %v2893 = vxor.u32 %v2869, 2147483648
      %v2894 = vxor.u32 %v2874, 2147483648
      %v2895 = vxor.u32 %v2877, 2147483648
      %v2896 = vmul.f32 %v2888, 1.442695
      %v2897 = vpow.pop %v2896
      %v2898 = vmul.f32 %v2889, 1.442695
      %v2899 = vpow.pop %v2898
      %v2900 = vmul.f32 %v2890, 1.442695
      %v2901 = vpow.pop %v2900
      %v2902 = vmul.f32 %v2891, 1.442695
      %v2903 = vpow.pop %v2902
      %v2904 = vmul.f32 %v2892, 1.442695
      %v2905 = vpow.pop %v2904
      %v2906 = vmul.f32 %v2893, 1.442695
      %v2907 = vpow.pop %v2906
      %v2908 = vmul.f32 %v2894, 1.442695
      %v2909 = vpow.pop %v2908
      %v2910 = vmul.f32 %v2895, 1.442695
      %v2911 = vpow.pop %v2910
      %v2912 = vadd.f32 %v2897, 1.0
      %v2913 = vadd.f32 %v2899, 1.0
      %v2914 = vadd.f32 %v2901, 1.0
      %v2915 = vadd.f32 %v2903, 1.0
      %v2916 = vadd.f32 %v2905, 1.0
      %v2917 = vadd.f32 %v2907, 1.0
      %v2918 = vadd.f32 %v2909, 1.0
      %v2919 = vadd.f32 %v2911, 1.0
      %v2920 = vrcp.pop %v2912
      %v2921 = vmul.f32 1.0, %v2920
      %v2922 = vrcp.pop %v2913
      %v2923 = vmul.f32 1.0, %v2922
      %v2924 = vrcp.pop %v2914
      %v2925 = vmul.f32 1.0, %v2924
      %v2926 = vrcp.pop %v2915
      %v2927 = vmul.f32 1.0, %v2926
      %v2928 = vrcp.pop %v2916
      %v2929 = vmul.f32 1.0, %v2928
      %v2930 = vrcp.pop %v2917
      %v2931 = vmul.f32 1.0, %v2930
      %v2932 = vrcp.pop %v2918
      %v2933 = vmul.f32 1.0, %v2932
      %v2934 = vrcp.pop %v2919
      %v2935 = vmul.f32 1.0, %v2934
      %v2936 = vmul.f32 %v2880, %v2921
      %v2937 = vmul.f32 %v2881, %v2923
      %v2938 = vmul.f32 %v2882, %v2925
      %v2939 = vmul.f32 %v2883, %v2927
      %v2940 = vmul.f32 %v2884, %v2929
      %v2941 = vmul.f32 %v2885, %v2931
      %v2942 = vmul.f32 %v2886, %v2933
      %v2943 = vmul.f32 %v2887, %v2935
      %v2944 = vpack.c.bf16 %v2937, %v2936
      %v2945 = vpack.c.bf16 %v2939, %v2938
      %v2946 = vpack.c.bf16 %v2941, %v2940
      %v2947 = vpack.c.bf16 %v2943, %v2942
      %s2948 = scalar_lea.vmem %s5, 12
      %v2949 = vld [vmem:[%s2948] sm:$0xf]
      %s2950 = scalar_lea.vmem %s6, 3
      %v2951 = vld [vmem:[%s2950] sm:$0x1]
      %v2953 = vlaneseq
      %v2954 = vshrl.u32 %v2953, 7
      %v2955 = vsub.s32 0, %v2954
      %v2956 = vrot.slane %v2951, %v2955
      %v2959 = vsel %vm291, %v2944, 0
      %v2962 = vsel %vm291, %v2945, 0
      %v2965 = vsel %vm291, %v2946, 0
      %v2968 = vsel %vm291, %v2947, 0
      %v2971 = vsel %vm666, %v2949, 0
      %2973 = vmatprep.subr.bf16.mxu0 0
      %2974 = vmatpush1.bf16.msra.mxu0 0
      %2975 = vmatprep.subr.bf16.mxu0 0
      %2976 = vmatpush1.bf16.msra.mxu0 0
      %2977 = vmatprep.subr.bf16.mxu0 0
      %2978 = vmatpush1.bf16.msra.mxu0 0
      %2979 = vmatprep.subr.bf16.mxu0 0
      %2980 = vmatpush1.bf16.msra.mxu0 0
      %2981 = vmatprep.subr.bf16.mxu0 0
      %2982 = vmatpush1.bf16.msra.mxu0 0
      %2983 = vmatprep.subr.bf16.mxu0 0
      %2984 = vmatpush1.bf16.msra.mxu0 0
      %2985 = vmatprep.subr.bf16.mxu0 0
      %2986 = vmatpush1.bf16.msra.mxu0 0
      %2987 = vmatprep.subr.bf16.mxu0 0
      %2988 = vmatpush1.bf16.msra.mxu0 %v2971
      %2989 = vmatprep.subr.bf16.mxu0 0
      %2990 = vmatpush2.bf16.msra.mxu0 0
      %2991 = vmatprep.subr.bf16.mxu0 0
      %2992 = vmatpush2.bf16.msra.mxu0 0
      %2993 = vmatprep.subr.bf16.mxu0 0
      %2994 = vmatpush2.bf16.msra.mxu0 0
      %2995 = vmatprep.subr.bf16.mxu0 0
      %2996 = vmatpush2.bf16.msra.mxu0 0
      %2997 = vmatprep.subr.bf16.mxu0 0
      %2998 = vmatpush2.bf16.msra.mxu0 0
      %2999 = vmatprep.subr.bf16.mxu0 0
      %3000 = vmatpush2.bf16.msra.mxu0 0
      %3001 = vmatprep.subr.bf16.mxu0 0
      %3002 = vmatpush2.bf16.msra.mxu0 0
      %3003 = vmatprep.subr.bf16.mxu0 0
      %3004 = vmatpush2.bf16.msra.mxu0 0
      %3005 = vmatprep.mubr.bf16.mxu0 0
      %3006 = vmatmul.mubr.bf16.gmra.mxu0 %v2959
      %v3007 = vpop.f32.mrf.mxu0
      %v3008 = vadd.f32 %v2956, %v3007
      %v3009 = vpop.f32.mrf.mxu0
      %v3010 = vpop.f32.mrf.mxu0
      %v3011 = vadd.f32 %v2956, %v3010
      %v3012 = vpop.f32.mrf.mxu0
      %3013 = vmatprep.mubr.bf16.mxu0 0
      %3014 = vmatmul.mubr.bf16.gmra.mxu0 %v2962
      %v3015 = vpop.f32.mrf.mxu0
      %v3016 = vadd.f32 %v2956, %v3015
      %v3017 = vpop.f32.mrf.mxu0
      %v3018 = vpop.f32.mrf.mxu0
      %v3019 = vadd.f32 %v2956, %v3018
      %v3020 = vpop.f32.mrf.mxu0
      %3021 = vmatprep.mubr.bf16.mxu0 0
      %3022 = vmatmul.mubr.bf16.gmra.mxu0 %v2965
      %v3023 = vpop.f32.mrf.mxu0
      %v3024 = vadd.f32 %v2956, %v3023
      %v3025 = vpop.f32.mrf.mxu0
      %v3026 = vpop.f32.mrf.mxu0
      %v3027 = vadd.f32 %v2956, %v3026
      %v3028 = vpop.f32.mrf.mxu0
      %3029 = vmatprep.mubr.bf16.mxu0 0
      %3030 = vmatmul.mubr.bf16.gmra.mxu0 %v2968
      %v3031 = vpop.f32.mrf.mxu0
      %v3032 = vadd.f32 %v2956, %v3031
      %v3033 = vpop.f32.mrf.mxu0
      %v3034 = vpop.f32.mrf.mxu0
      %v3035 = vadd.f32 %v2956, %v3034
      %v3036 = vpop.f32.mrf.mxu0
      %3037 = vdwg.mxu0
      %v3038 = vld [vmem:[%s278] sm:$0xff]
      %v3039 = vld [vmem:[%s278 + $0x8] sm:$0xff]
      %v3040 = vld [vmem:[%s278 + $0x10] sm:$0xff]
      %v3041 = vld [vmem:[%s278 + $0x18] sm:$0xff]
      %v3042 = vld [vmem:[%s278 + $0x20] sm:$0xff]
      %v3043 = vld [vmem:[%s278 + $0x28] sm:$0xff]
      %v3044 = vld [vmem:[%s278 + $0x30] sm:$0xff]
      %v3045 = vld [vmem:[%s278 + $0x38] sm:$0xff]
      %3054 = vrot.lane.b32.xlu0 %v3008, 120
      %v3055 = vpop.permute.xlu0 %3054
      %3056 = vrot.lane.b32.xlu0 %v3011, 120
      %v3057 = vpop.permute.xlu0 %3056
      %3058 = vrot.lane.b32.xlu0 %v3016, 120
      %v3059 = vpop.permute.xlu0 %3058
      %3060 = vrot.lane.b32.xlu0 %v3019, 120
      %v3061 = vpop.permute.xlu0 %3060
      %3062 = vrot.lane.b32.xlu0 %v3024, 120
      %v3063 = vpop.permute.xlu0 %3062
      %3064 = vrot.lane.b32.xlu0 %v3027, 120
      %v3065 = vpop.permute.xlu0 %3064
      %3066 = vrot.lane.b32.xlu0 %v3032, 120
      %v3067 = vpop.permute.xlu0 %3066
      %3068 = vrot.lane.b32.xlu0 %v3035, 120
      %v3069 = vpop.permute.xlu0 %3068
      %v3078 = vadd.f32 %v3038, %v3055
      %v3079 = vadd.f32 %v3039, %v3057
      %v3080 = vadd.f32 %v3040, %v3059
      %v3081 = vadd.f32 %v3041, %v3061
      %v3082 = vadd.f32 %v3042, %v3063
      %v3083 = vadd.f32 %v3043, %v3065
      %v3084 = vadd.f32 %v3044, %v3067
      %v3085 = vadd.f32 %v3045, %v3069
      %3086 = vst.msk [vmem:[%s278] sm:$0xff] %vm291, %v3078
      %3087 = vst.msk [vmem:[%s278 + $0x8] sm:$0xff] %vm291, %v3079
      %3088 = vst.msk [vmem:[%s278 + $0x10] sm:$0xff] %vm291, %v3080
      %3089 = vst.msk [vmem:[%s278 + $0x18] sm:$0xff] %vm291, %v3081
      %3090 = vst.msk [vmem:[%s278 + $0x20] sm:$0xff] %vm291, %v3082
      %3091 = vst.msk [vmem:[%s278 + $0x28] sm:$0xff] %vm291, %v3083
      %3092 = vst.msk [vmem:[%s278 + $0x30] sm:$0xff] %vm291, %v3084
      %3093 = vst.msk [vmem:[%s278 + $0x38] sm:$0xff] %vm291, %v3085
      %v3094 = vld [vmem:[%s278] sm:$0xff]
      %v3095 = vld [vmem:[%s278 + $0x8] sm:$0xff]
      %v3096 = vld [vmem:[%s278 + $0x10] sm:$0xff]
      %v3097 = vld [vmem:[%s278 + $0x18] sm:$0xff]
      %v3098 = vld [vmem:[%s278 + $0x20] sm:$0xff]
      %v3099 = vld [vmem:[%s278 + $0x28] sm:$0xff]
      %v3100 = vld [vmem:[%s278 + $0x30] sm:$0xff]
      %v3101 = vld [vmem:[%s278 + $0x38] sm:$0xff]
      %v3102 = vmul.f32 %v3094, 0.5
      %v3103 = vmul.f32 %v3095, 0.5
      %v3104 = vmul.f32 %v3096, 0.5
      %v3105 = vmul.f32 %v3097, 0.5
      %v3106 = vmul.f32 %v3098, 0.5
      %v3107 = vmul.f32 %v3099, 0.5
      %v3108 = vmul.f32 %v3100, 0.5
      %v3109 = vmul.f32 %v3101, 0.5
      %3110 = vst.msk [vmem:[%s278] sm:$0xff] %vm291, %v3102
      %3111 = vst.msk [vmem:[%s278 + $0x8] sm:$0xff] %vm291, %v3103
      %3112 = vst.msk [vmem:[%s278 + $0x10] sm:$0xff] %vm291, %v3104
      %3113 = vst.msk [vmem:[%s278 + $0x18] sm:$0xff] %vm291, %v3105
      %3114 = vst.msk [vmem:[%s278 + $0x20] sm:$0xff] %vm291, %v3106
      %3115 = vst.msk [vmem:[%s278 + $0x28] sm:$0xff] %vm291, %v3107
      %3116 = vst.msk [vmem:[%s278 + $0x30] sm:$0xff] %vm291, %v3108
      %3117 = vst.msk [vmem:[%s278 + $0x38] sm:$0xff] %vm291, %v3109
      %p3118 = scmp.lt.s32.totalorder %s18, 1
      %s3119 = scalar_select %p3118, %s18, 1
      %s3120 = smul.addr %s3119, 8
      %s3121 = smul.addr %s3120, 8
      %s3122 = scalar_lea.vmem %s7, %s3121
      // Predicated region
      $region49: #{tpu_custom_call.1} parent=47 // pred_check
        %p3123 = pneg %p188
      $region50: #{tpu_custom_call.1} parent=47 // pred_check_branch
        %3125 = sbr.rel (%p3123) target = $region52
      $region51: #{tpu_custom_call.1} parent=47 // pred_region
        _
      $region52: #{tpu_custom_call.1} parent=47 // pred_fallthru
        _
    $region48: #{tpu_custom_call.1} parent=5 // pred_fallthru
      _
    %p3126 = scmp.le.s32.totalorder 2, %s13
    // Predicated region
    $region53: #{tpu_custom_call.1} parent=5 // pred_check
      %p3127 = pneg %p3126
    $region54: #{tpu_custom_call.1} parent=5 // pred_check_branch
      %3129 = sbr.rel (%p3127) target = $region56
    $region55: #{tpu_custom_call.1} parent=5 // pred_region
      %s3130 = ssub.s32 %s13, 2
      // Predicated region
      $region57: #{tpu_custom_call.1} parent=55 // pred_check
        %p3131 = pneg %p194
      $region58: #{tpu_custom_call.1} parent=55 // pred_check_branch
        %3133 = sbr.rel (%p3131) target = $region60
      $region59: #{tpu_custom_call.1} parent=55 // pred_region
        %p3134 = scmp.lt.s32.totalorder %s19, 1
        %s3135 = scalar_select %p3134, %s19, 1
        %s3136 = smul.addr %s3135, 8
        %s3137 = smul.addr %s3136, 8
        %s3138 = scalar_lea.vmem %s7, %s3137
      $region60: #{tpu_custom_call.1} parent=55 // pred_fallthru
        _
    $region56: #{tpu_custom_call.1} parent=5 // pred_fallthru
      _
  $region6: #{tpu_custom_call.1} parent=0 // loop_footer
    %s17 = sadd.s32 1, %s13
  $region7: #{tpu_custom_call.1} parent=0 // loop_footer_branch
    %12 = sbr.rel target = $region3
  $region8: #{tpu_custom_call.1} parent=0 // loop_exit
    _

</llo_original>
